<compile_context>
chip_gen: v7x
topology: tpu7x:2x2x1
jax: 0.10.0
libtpu: 0.0.40
codegen_flags: <defaults>
</compile_context>

<pallas_src>
import functools

import jax
import jax.numpy as jnp
from jax import lax
from jax.experimental import pallas as pl
from jax.experimental.pallas import tpu as pltpu


def _make_conv_kernel(K, stride, TH, Wo_pad, Ci, TN):
    """One grid step: TH output rows x TN output channels of one batch image."""

    def kernel(x_ref, w_ref, b_ref, o_ref):
        # x_ref : (H_pad, W_pad, Ci)  padded image (bf16), resident across cb/hb
        # w_ref : (K*K, Ci, TN)       per-tap filter slab (bf16)
        # b_ref : (1, TN)             bias (f32)
        # o_ref : (TH, Wo_pad, TN)    lane-dense output block
        hb = pl.program_id(2)
        row0 = hb * (TH * stride)      # first input row of this output-row block

        acc = None
        for kh in range(K):
            for kw in range(K):
                if stride == 1:
                    tap = x_ref[pl.ds(row0 + kh, TH), pl.ds(kw, Wo_pad), :]
                else:
                    # TODO(synk): for stride>1 hoist the strided column reads to a
                    # one-time space-to-depth in the wrapper (unit-stride taps).
                    tap = x_ref[pl.ds(row0 + kh, TH, stride=stride),
                                pl.ds(kw, Wo_pad, stride=stride), :]
                lhs = tap.reshape(TH * Wo_pad, Ci)          # free: Wo_pad % 8 == 0
                d = jnp.dot(lhs, w_ref[kh * K + kw],
                            preferred_element_type=jnp.float32)
                acc = d if acc is None else acc + d

        acc = acc + b_ref[...]                              # broadcast (1, TN), f32
        o_ref[...] = acc.reshape(TH, Wo_pad, TN).astype(o_ref.dtype)

    return kernel


@functools.partial(jax.jit, static_argnames=("stride",))
def conv_layer_forward(x_nchw, weight_oihw, bias, stride):
    """ConvLayer forward. x: (N, Ci, H, W); weight: (Co, Ci, K, K); bias: (Co,)."""
    N, Ci, H, W = x_nchw.shape
    Co, Ci_w, K, K_w = weight_oihw.shape
    assert Ci_w == Ci and K_w == K
    Ho = (H - K) // stride + 1
    Wo = (W - K) // stride + 1

    # --- tiling ---------------------------------------------------------------
    Co_pad = ((Co + 127) // 128) * 128            # lane-dense output channels
    TN = 256 if Co_pad % 256 == 0 else 128        # MXU N / store width per step
    n_cb = Co_pad // TN
    Wo_pad = ((Wo + 7) // 8) * 8                  # sublane-aligned output width
    M_TARGET = 512                                # rows per matmul (~256 is enough on v5e)
    TH = min(Ho, max(1, M_TARGET // Wo_pad))
    n_hb = pl.cdiv(Ho, TH)
    Ho_pad = n_hb * TH
    # Pad the image so every (padded) output position reads in-bounds zeros.
    H_pad = max(H, (Ho_pad - 1) * stride + K)
    W_pad = max(W, (Wo_pad - 1) * stride + K)

    # --- layout plumbing (no compute) ------------------------------------------
    x_nhwc = jnp.transpose(x_nchw, (0, 2, 3, 1))                     # (N, H, W, Ci)
    x_nhwc = jnp.pad(x_nhwc, ((0, 0), (0, H_pad - H), (0, W_pad - W), (0, 0)))
    x_nhwc = x_nhwc.astype(jnp.bfloat16)
    # (K*K, Ci, Co_pad): tap t = kh*K + kw holds weight[:, :, kh, kw].T
    w_taps = jnp.transpose(weight_oihw, (2, 3, 1, 0)).reshape(K * K, Ci, Co)
    w_taps = jnp.pad(w_taps, ((0, 0), (0, 0), (0, Co_pad - Co))).astype(jnp.bfloat16)
    b2d = jnp.pad(bias, (0, Co_pad - Co)).reshape(1, Co_pad).astype(jnp.float32)

    kernel = _make_conv_kernel(K, stride, TH, Wo_pad, Ci, TN)

    # --- VMEM budget / cost hint ------------------------------------------------
    img_bytes = H_pad * W_pad * Ci * 2
    w_bytes = K * K * Ci * TN * 2
    out_blk_bytes = TH * Wo_pad * TN * 4
    vmem_need = 2 * img_bytes + 2 * w_bytes + 2 * out_blk_bytes \
        + 4 * out_blk_bytes + (1 << 20)           # headroom for acc/taps temps
    vmem_limit = int(min(max(vmem_need, 16 << 20), 96 << 20))

    cost = pl.CostEstimate(
        flops=2 * N * Ho * Wo * K * K * Ci * Co,
        transcendentals=0,
        bytes_accessed=N * H_pad * W_pad * Ci * 2
        + K * K * Ci * Co_pad * 2
        + N * Ho_pad * Wo_pad * Co_pad * 4,
    )

    out = pl.pallas_call(
        kernel,
        out_shape=jax.ShapeDtypeStruct((N, Ho_pad, Wo_pad, Co_pad), x_nchw.dtype),
        grid_spec=pltpu.PrefetchScalarGridSpec(
            num_scalar_prefetch=0,
            grid=(N, n_cb, n_hb),
            in_specs=[
                # full (padded) image of batch element n, re-used across cb/hb steps
                pl.BlockSpec((None, H_pad, W_pad, Ci), lambda n, cb, hb: (n, 0, 0, 0)),
                # per-tap filter slab, tiled over output channels
                pl.BlockSpec((K * K, Ci, TN), lambda n, cb, hb: (0, 0, cb)),
                # bias tile
                pl.BlockSpec((1, TN), lambda n, cb, hb: (0, cb)),
            ],
            out_specs=pl.BlockSpec((None, TH, Wo_pad, TN),
                                   lambda n, cb, hb: (n, hb, 0, cb)),
        ),
        compiler_params=pltpu.CompilerParams(
            dimension_semantics=("parallel", "parallel", "parallel"),
            vmem_limit_bytes=vmem_limit,
        ),
        cost_estimate=cost,
    )(x_nhwc, w_taps, b2d)

    out = out[:, :Ho, :Wo, :Co]                   # drop tiling / channel padding
    return jnp.transpose(out, (0, 3, 1, 2))       # back to PyTorch NCHW


def _check(stride_t, key):
    N, cin, cout = 2, 4, 8
    H = W = 16
    K = 3
    kx, kw, kb = jax.random.split(key, 3)
    x = jax.random.normal(kx, (N, cin, H, W), dtype=jnp.float32)
    # Deterministic synthetic init (Conv2d-like scale), not a checkpoint load.
    weight = 0.1 * jax.random.normal(kw, (cout, cin, K, K), dtype=jnp.float32)
    bias = 0.1 * jax.random.normal(kb, (cout,), dtype=jnp.float32)

    out = jax.block_until_ready(conv_layer_forward(x, weight, bias, stride_t))

    ref = lax.conv_general_dilated(
        x, weight, window_strides=(stride_t, stride_t), padding="VALID",
        dimension_numbers=("NCHW", "OIHW", "NCHW"),
        precision=lax.Precision.HIGHEST,
    ) + bias[None, :, None, None]

    assert out.shape == ref.shape, (out.shape, ref.shape)
    # Kernel uses bf16 MXU operands with f32 accumulation; allow bf16-level
    # discrepancy vs the HIGHEST-precision f32 reference.
    max_err = float(jnp.max(jnp.abs(out - ref)))
    assert max_err < 2e-2, f"stride={stride_t}: max abs error too large: {max_err}"


if __name__ == "__main__":
    key = jax.random.PRNGKey(0)
    k1, k2 = jax.random.split(key)
    _check(stride_t=1, key=k1)   # x: (2, 4, 16, 16), kernel 3, stride 1
    _check(stride_t=2, key=k2)   # exercises the strided-tap path
    print("KERNEL_OK")
</pallas_src>

<mosaic_0001>
module attributes {stable_mosaic.version = 11 : i64} {
  func.func @kernel(%arg0: i32, %arg1: i32, %arg2: i32, %arg3: memref<1x16x18x4xbf16, #tpu.memory_space<vmem>>, %arg4: memref<9x4x128xbf16, #tpu.memory_space<vmem>>, %arg5: memref<1x128xf32, #tpu.memory_space<vmem>>, %arg6: memref<1x14x16x128xf32, #tpu.memory_space<vmem>>) attributes {dimension_semantics = [#tpu.dimension_semantics<parallel>, #tpu.dimension_semantics<parallel>, #tpu.dimension_semantics<parallel>], iteration_bounds = array<i64: 2, 1, 1>, scalar_prefetch = 0 : i64, scratch_operands = 0 : i64, tpu.core_type = #tpu.core_type<tc>, window_params = [{transform_indices = @transform_0, window_bounds = array<i64: 1, 16, 18, 4>}, {transform_indices = @transform_1, window_bounds = array<i64: 9, 4, 128>}, {transform_indices = @transform_2, window_bounds = array<i64: 1, 128>}, {transform_indices = @transform_3, window_bounds = array<i64: 1, 14, 16, 128>}]} {
    %c14_i32 = arith.constant 14 : i32
    %0 = arith.muli %arg2, %c14_i32 : i32
    %c0_i32 = arith.constant 0 : i32
    %1 = arith.addi %0, %c0_i32 : i32
    %c0 = arith.constant 0 : index
    %2 = arith.index_cast %1 : i32 to index
    %c0_0 = arith.constant 0 : index
    %c0_1 = arith.constant 0 : index
    %3 = vector.load %arg3[%c0, %2, %c0_0, %c0_1] : memref<1x16x18x4xbf16, #tpu.memory_space<vmem>>, vector<1x14x16x4xbf16>
    %4 = vector.shape_cast %3 : vector<1x14x16x4xbf16> to vector<14x16x4xbf16>
    %5 = vector.shape_cast %4 : vector<14x16x4xbf16> to vector<224x4xbf16>
    %c0_2 = arith.constant 0 : index
    %c0_3 = arith.constant 0 : index
    %c0_4 = arith.constant 0 : index
    %6 = vector.load %arg4[%c0_2, %c0_3, %c0_4] : memref<9x4x128xbf16, #tpu.memory_space<vmem>>, vector<1x4x128xbf16>
    %7 = vector.shape_cast %6 : vector<1x4x128xbf16> to vector<4x128xbf16>
    %cst = arith.constant dense<0.000000e+00> : vector<224x128xf32>
    %8 = tpu.matmul %5, %7, %cst {dimension_numbers = #tpu.dot_dimension_numbers<[1], [0], [0], [1], [0, 0, 1, 1], [], []>} : vector<224x4xbf16>, vector<4x128xbf16>, vector<224x128xf32> -> vector<224x128xf32>
    %c0_i32_5 = arith.constant 0 : i32
    %9 = arith.addi %0, %c0_i32_5 : i32
    %c0_6 = arith.constant 0 : index
    %10 = arith.index_cast %9 : i32 to index
    %c1 = arith.constant 1 : index
    %c0_7 = arith.constant 0 : index
    %11 = vector.load %arg3[%c0_6, %10, %c1, %c0_7] : memref<1x16x18x4xbf16, #tpu.memory_space<vmem>>, vector<1x14x16x4xbf16>
    %12 = vector.shape_cast %11 : vector<1x14x16x4xbf16> to vector<14x16x4xbf16>
    %13 = vector.shape_cast %12 : vector<14x16x4xbf16> to vector<224x4xbf16>
    %c1_8 = arith.constant 1 : index
    %c0_9 = arith.constant 0 : index
    %c0_10 = arith.constant 0 : index
    %14 = vector.load %arg4[%c1_8, %c0_9, %c0_10] : memref<9x4x128xbf16, #tpu.memory_space<vmem>>, vector<1x4x128xbf16>
    %15 = vector.shape_cast %14 : vector<1x4x128xbf16> to vector<4x128xbf16>
    %cst_11 = arith.constant dense<0.000000e+00> : vector<224x128xf32>
    %16 = tpu.matmul %13, %15, %cst_11 {dimension_numbers = #tpu.dot_dimension_numbers<[1], [0], [0], [1], [0, 0, 1, 1], [], []>} : vector<224x4xbf16>, vector<4x128xbf16>, vector<224x128xf32> -> vector<224x128xf32>
    %17 = arith.addf %8, %16 : vector<224x128xf32>
    %c0_i32_12 = arith.constant 0 : i32
    %18 = arith.addi %0, %c0_i32_12 : i32
    %c0_13 = arith.constant 0 : index
    %19 = arith.index_cast %18 : i32 to index
    %c2 = arith.constant 2 : index
    %c0_14 = arith.constant 0 : index
    %20 = vector.load %arg3[%c0_13, %19, %c2, %c0_14] : memref<1x16x18x4xbf16, #tpu.memory_space<vmem>>, vector<1x14x16x4xbf16>
    %21 = vector.shape_cast %20 : vector<1x14x16x4xbf16> to vector<14x16x4xbf16>
    %22 = vector.shape_cast %21 : vector<14x16x4xbf16> to vector<224x4xbf16>
    %c2_15 = arith.constant 2 : index
    %c0_16 = arith.constant 0 : index
    %c0_17 = arith.constant 0 : index
    %23 = vector.load %arg4[%c2_15, %c0_16, %c0_17] : memref<9x4x128xbf16, #tpu.memory_space<vmem>>, vector<1x4x128xbf16>
    %24 = vector.shape_cast %23 : vector<1x4x128xbf16> to vector<4x128xbf16>
    %cst_18 = arith.constant dense<0.000000e+00> : vector<224x128xf32>
    %25 = tpu.matmul %22, %24, %cst_18 {dimension_numbers = #tpu.dot_dimension_numbers<[1], [0], [0], [1], [0, 0, 1, 1], [], []>} : vector<224x4xbf16>, vector<4x128xbf16>, vector<224x128xf32> -> vector<224x128xf32>
    %26 = arith.addf %17, %25 : vector<224x128xf32>
    %c1_i32 = arith.constant 1 : i32
    %27 = arith.addi %0, %c1_i32 : i32
    %c0_19 = arith.constant 0 : index
    %28 = arith.index_cast %27 : i32 to index
    %c0_20 = arith.constant 0 : index
    %c0_21 = arith.constant 0 : index
    %29 = vector.load %arg3[%c0_19, %28, %c0_20, %c0_21] : memref<1x16x18x4xbf16, #tpu.memory_space<vmem>>, vector<1x14x16x4xbf16>
    %30 = vector.shape_cast %29 : vector<1x14x16x4xbf16> to vector<14x16x4xbf16>
    %31 = vector.shape_cast %30 : vector<14x16x4xbf16> to vector<224x4xbf16>
    %c3 = arith.constant 3 : index
    %c0_22 = arith.constant 0 : index
    %c0_23 = arith.constant 0 : index
    %32 = vector.load %arg4[%c3, %c0_22, %c0_23] : memref<9x4x128xbf16, #tpu.memory_space<vmem>>, vector<1x4x128xbf16>
    %33 = vector.shape_cast %32 : vector<1x4x128xbf16> to vector<4x128xbf16>
    %cst_24 = arith.constant dense<0.000000e+00> : vector<224x128xf32>
    %34 = tpu.matmul %31, %33, %cst_24 {dimension_numbers = #tpu.dot_dimension_numbers<[1], [0], [0], [1], [0, 0, 1, 1], [], []>} : vector<224x4xbf16>, vector<4x128xbf16>, vector<224x128xf32> -> vector<224x128xf32>
    %35 = arith.addf %26, %34 : vector<224x128xf32>
    %c1_i32_25 = arith.constant 1 : i32
    %36 = arith.addi %0, %c1_i32_25 : i32
    %c0_26 = arith.constant 0 : index
    %37 = arith.index_cast %36 : i32 to index
    %c1_27 = arith.constant 1 : index
    %c0_28 = arith.constant 0 : index
    %38 = vector.load %arg3[%c0_26, %37, %c1_27, %c0_28] : memref<1x16x18x4xbf16, #tpu.memory_space<vmem>>, vector<1x14x16x4xbf16>
    %39 = vector.shape_cast %38 : vector<1x14x16x4xbf16> to vector<14x16x4xbf16>
    %40 = vector.shape_cast %39 : vector<14x16x4xbf16> to vector<224x4xbf16>
    %c4 = arith.constant 4 : index
    %c0_29 = arith.constant 0 : index
    %c0_30 = arith.constant 0 : index
    %41 = vector.load %arg4[%c4, %c0_29, %c0_30] : memref<9x4x128xbf16, #tpu.memory_space<vmem>>, vector<1x4x128xbf16>
    %42 = vector.shape_cast %41 : vector<1x4x128xbf16> to vector<4x128xbf16>
    %cst_31 = arith.constant dense<0.000000e+00> : vector<224x128xf32>
    %43 = tpu.matmul %40, %42, %cst_31 {dimension_numbers = #tpu.dot_dimension_numbers<[1], [0], [0], [1], [0, 0, 1, 1], [], []>} : vector<224x4xbf16>, vector<4x128xbf16>, vector<224x128xf32> -> vector<224x128xf32>
    %44 = arith.addf %35, %43 : vector<224x128xf32>
    %c1_i32_32 = arith.constant 1 : i32
    %45 = arith.addi %0, %c1_i32_32 : i32
    %c0_33 = arith.constant 0 : index
    %46 = arith.index_cast %45 : i32 to index
    %c2_34 = arith.constant 2 : index
    %c0_35 = arith.constant 0 : index
    %47 = vector.load %arg3[%c0_33, %46, %c2_34, %c0_35] : memref<1x16x18x4xbf16, #tpu.memory_space<vmem>>, vector<1x14x16x4xbf16>
    %48 = vector.shape_cast %47 : vector<1x14x16x4xbf16> to vector<14x16x4xbf16>
    %49 = vector.shape_cast %48 : vector<14x16x4xbf16> to vector<224x4xbf16>
    %c5 = arith.constant 5 : index
    %c0_36 = arith.constant 0 : index
    %c0_37 = arith.constant 0 : index
    %50 = vector.load %arg4[%c5, %c0_36, %c0_37] : memref<9x4x128xbf16, #tpu.memory_space<vmem>>, vector<1x4x128xbf16>
    %51 = vector.shape_cast %50 : vector<1x4x128xbf16> to vector<4x128xbf16>
    %cst_38 = arith.constant dense<0.000000e+00> : vector<224x128xf32>
    %52 = tpu.matmul %49, %51, %cst_38 {dimension_numbers = #tpu.dot_dimension_numbers<[1], [0], [0], [1], [0, 0, 1, 1], [], []>} : vector<224x4xbf16>, vector<4x128xbf16>, vector<224x128xf32> -> vector<224x128xf32>
    %53 = arith.addf %44, %52 : vector<224x128xf32>
    %c2_i32 = arith.constant 2 : i32
    %54 = arith.addi %0, %c2_i32 : i32
    %c0_39 = arith.constant 0 : index
    %55 = arith.index_cast %54 : i32 to index
    %c0_40 = arith.constant 0 : index
    %c0_41 = arith.constant 0 : index
    %56 = vector.load %arg3[%c0_39, %55, %c0_40, %c0_41] : memref<1x16x18x4xbf16, #tpu.memory_space<vmem>>, vector<1x14x16x4xbf16>
    %57 = vector.shape_cast %56 : vector<1x14x16x4xbf16> to vector<14x16x4xbf16>
    %58 = vector.shape_cast %57 : vector<14x16x4xbf16> to vector<224x4xbf16>
    %c6 = arith.constant 6 : index
    %c0_42 = arith.constant 0 : index
    %c0_43 = arith.constant 0 : index
    %59 = vector.load %arg4[%c6, %c0_42, %c0_43] : memref<9x4x128xbf16, #tpu.memory_space<vmem>>, vector<1x4x128xbf16>
    %60 = vector.shape_cast %59 : vector<1x4x128xbf16> to vector<4x128xbf16>
    %cst_44 = arith.constant dense<0.000000e+00> : vector<224x128xf32>
    %61 = tpu.matmul %58, %60, %cst_44 {dimension_numbers = #tpu.dot_dimension_numbers<[1], [0], [0], [1], [0, 0, 1, 1], [], []>} : vector<224x4xbf16>, vector<4x128xbf16>, vector<224x128xf32> -> vector<224x128xf32>
    %62 = arith.addf %53, %61 : vector<224x128xf32>
    %c2_i32_45 = arith.constant 2 : i32
    %63 = arith.addi %0, %c2_i32_45 : i32
    %c0_46 = arith.constant 0 : index
    %64 = arith.index_cast %63 : i32 to index
    %c1_47 = arith.constant 1 : index
    %c0_48 = arith.constant 0 : index
    %65 = vector.load %arg3[%c0_46, %64, %c1_47, %c0_48] : memref<1x16x18x4xbf16, #tpu.memory_space<vmem>>, vector<1x14x16x4xbf16>
    %66 = vector.shape_cast %65 : vector<1x14x16x4xbf16> to vector<14x16x4xbf16>
    %67 = vector.shape_cast %66 : vector<14x16x4xbf16> to vector<224x4xbf16>
    %c7 = arith.constant 7 : index
    %c0_49 = arith.constant 0 : index
    %c0_50 = arith.constant 0 : index
    %68 = vector.load %arg4[%c7, %c0_49, %c0_50] : memref<9x4x128xbf16, #tpu.memory_space<vmem>>, vector<1x4x128xbf16>
    %69 = vector.shape_cast %68 : vector<1x4x128xbf16> to vector<4x128xbf16>
    %cst_51 = arith.constant dense<0.000000e+00> : vector<224x128xf32>
    %70 = tpu.matmul %67, %69, %cst_51 {dimension_numbers = #tpu.dot_dimension_numbers<[1], [0], [0], [1], [0, 0, 1, 1], [], []>} : vector<224x4xbf16>, vector<4x128xbf16>, vector<224x128xf32> -> vector<224x128xf32>
    %71 = arith.addf %62, %70 : vector<224x128xf32>
    %c2_i32_52 = arith.constant 2 : i32
    %72 = arith.addi %0, %c2_i32_52 : i32
    %c0_53 = arith.constant 0 : index
    %73 = arith.index_cast %72 : i32 to index
    %c2_54 = arith.constant 2 : index
    %c0_55 = arith.constant 0 : index
    %74 = vector.load %arg3[%c0_53, %73, %c2_54, %c0_55] : memref<1x16x18x4xbf16, #tpu.memory_space<vmem>>, vector<1x14x16x4xbf16>
    %75 = vector.shape_cast %74 : vector<1x14x16x4xbf16> to vector<14x16x4xbf16>
    %76 = vector.shape_cast %75 : vector<14x16x4xbf16> to vector<224x4xbf16>
    %c8 = arith.constant 8 : index
    %c0_56 = arith.constant 0 : index
    %c0_57 = arith.constant 0 : index
    %77 = vector.load %arg4[%c8, %c0_56, %c0_57] : memref<9x4x128xbf16, #tpu.memory_space<vmem>>, vector<1x4x128xbf16>
    %78 = vector.shape_cast %77 : vector<1x4x128xbf16> to vector<4x128xbf16>
    %cst_58 = arith.constant dense<0.000000e+00> : vector<224x128xf32>
    %79 = tpu.matmul %76, %78, %cst_58 {dimension_numbers = #tpu.dot_dimension_numbers<[1], [0], [0], [1], [0, 0, 1, 1], [], []>} : vector<224x4xbf16>, vector<4x128xbf16>, vector<224x128xf32> -> vector<224x128xf32>
    %80 = arith.addf %71, %79 : vector<224x128xf32>
    %c0_59 = arith.constant 0 : index
    %c0_60 = arith.constant 0 : index
    %81 = vector.load %arg5[%c0_59, %c0_60] : memref<1x128xf32, #tpu.memory_space<vmem>>, vector<1x128xf32>
    %82 = vector.broadcast %81 : vector<1x128xf32> to vector<224x128xf32>
    %83 = arith.addf %80, %82 : vector<224x128xf32>
    %84 = vector.shape_cast %83 : vector<224x128xf32> to vector<14x16x128xf32>
    %c0_61 = arith.constant 0 : index
    %c0_62 = arith.constant 0 : index
    %c0_63 = arith.constant 0 : index
    %c0_64 = arith.constant 0 : index
    %85 = vector.load %arg6[%c0_61, %c0_62, %c0_63, %c0_64] : memref<1x14x16x128xf32, #tpu.memory_space<vmem>>, vector<1x14x16x128xf32>
    %86 = vector.shape_cast %85 : vector<1x14x16x128xf32> to vector<14x16x128xf32>
    %87 = vector.shape_cast %84 : vector<14x16x128xf32> to vector<1x14x16x128xf32>
    tpu.vector_store %arg6[%c0_61, %c0_62, %c0_63, %c0_64], %87 {strides = array<i32>} : memref<1x14x16x128xf32, #tpu.memory_space<vmem>>, vector<1x14x16x128xf32>,
    return
  }
  func.func @transform_0(%arg0: i32, %arg1: i32, %arg2: i32) -> (i32, i32, i32, i32) {
    %c0_i32 = arith.constant 0 : i32
    %c0_i32_0 = arith.constant 0 : i32
    %c0_i32_1 = arith.constant 0 : i32
    %c0_i32_2 = arith.constant 0 : i32
    return %arg0, %c0_i32, %c0_i32_0, %c0_i32_1 : i32, i32, i32, i32
  }
  func.func @transform_1(%arg0: i32, %arg1: i32, %arg2: i32) -> (i32, i32, i32) {
    %c0_i32 = arith.constant 0 : i32
    %c0_i32_0 = arith.constant 0 : i32
    %c0_i32_1 = arith.constant 0 : i32
    return %c0_i32, %c0_i32_0, %arg1 : i32, i32, i32
  }
  func.func @transform_2(%arg0: i32, %arg1: i32, %arg2: i32) -> (i32, i32) {
    %c0_i32 = arith.constant 0 : i32
    %c0_i32_0 = arith.constant 0 : i32
    return %c0_i32, %arg1 : i32, i32
  }
  func.func @transform_3(%arg0: i32, %arg1: i32, %arg2: i32) -> (i32, i32, i32, i32) {
    %c0_i32 = arith.constant 0 : i32
    %c0_i32_0 = arith.constant 0 : i32
    return %arg0, %arg2, %c0_i32, %arg1 : i32, i32, i32, i32
  }
}

</mosaic_0001>

<llo_original>
// kernel: conv_layer_forward.1
$region0: #{conv_layer_forward.1}
  #allocation0 [shape = 'u32[]', space=smem, size = 0x4, offset = 0x4, fixed_abs, tag = 'smem constant byte address 0x4 - core index']
  #allocation1 [shape = 'u32[144,128]{1,0:T(1,128)}', space=vmem, size = 0x12000, scoped, tag = 'internal scratch']
  %s0 = inlined_call_operand.vmem [shape: bf16[2,16,18,4], index: 0, kind: input, shape index: {}]
  %s1 = inlined_call_operand.vmem [shape: bf16[9,4,128], index: 1, kind: input, shape index: {}]
  %s2 = inlined_call_operand.vmem [shape: f32[1,128], index: 2, kind: input, shape index: {}]
  %s3 = inlined_call_operand.vmem [shape: f32[2,14,16,128], index: 3, kind: output, shape index: {}]
  %s4 = sld [smem:[#allocation0]]
  $region45: #{conv_layer_forward.1} parent=0
    _
  %s6 = ssub.s32 1, %s4
  %s7 = scalar_select 0, %s6, %s4
  loop: start=0, step=1, limit=4
  $region2: #{conv_layer_forward.1} parent=0 // loop_pre_header
    _
  $region3: #{conv_layer_forward.1} parent=0 // loop_header
    %s9 = sphi 0, %s13
    %p10 = scmp.ge.s32.totalorder %s9, 4
    %s16 = sphi 0, %s35
    %s17 = sphi 0, %s31
    %s18 = sphi 0, %s27
    %s19 = sphi 0, %s16
    %s20 = sphi 0, %s17
    %s21 = sphi 0, %s18
    %s22 = sphi 0, %s19
    %s23 = sphi 0, %s20
    %s24 = sphi 0, %s21
    %s38 = sphi 0, %s40
    %s41 = sphi 0, %s38
    %s42 = sphi 0, %s41
    %s58 = sphi 0, %s42
    %s64 = sphi 0, %s66
    %s67 = sphi 0, %s64
    %s68 = sphi 0, %s67
    %s84 = sphi 0, %s68
    %s90 = sphi 0, %s92
    %s93 = sphi 0, %s90
    %s94 = sphi 0, %s93
    %s110 = sphi 0, %s94
    %s120 = sphi 0, %s122
    %s123 = sphi 0, %s120
    %s124 = sphi 0, %s123
    %s140 = sphi 0, %s124
  $region4: #{conv_layer_forward.1} parent=0 // loop_header_branch
    %12 = sbr.rel (%p10) target = $region8
  $region5: #{conv_layer_forward.1} parent=0 // loop_body
    %s14 = ssub.s32 %s9, 1
    %s15 = ssub.s32 %s9, 2
    %s25 = sadd.s32 1, %s18
    %p26 = scmp.ge.s32.totalorder %s25, 1
    %s27 = scalar_select %p26, 0, %s25
    %s28 = sadd.s32 1, %s17
    %s29 = scalar_select %p26, %s28, %s17
    %p30 = scmp.ge.s32.totalorder %s29, 1
    %s31 = scalar_select %p30, 0, %s29
    %s32 = sadd.s32 1, %s16
    %s33 = scalar_select %p30, %s32, %s16
    %p34 = scmp.ge.s32.totalorder %s33, 2
    %s35 = scalar_select %p34, 0, %s33
    %s36 = ssub.s32 %s16, %s35
    %p37 = scmp.eq.s32.totalorder %s36, 0
    %s39 = sadd.s32 %s38, 1
    %s40 = scalar_select %p37, %s38, %s39
    %p43 = pneg %p37
    %p44 = scmp.eq.s32.totalorder %s9, 1
    %p45 = por %p43, %p44
    %p46 = scmp.ne.s32.totalorder %s38, %s41
    %p47 = scmp.eq.s32.totalorder %s9, 0
    %p48 = por %p46, %p47
    %p49 = scmp.ne.s32.totalorder %s38, %s41
    %p50 = scmp.eq.s32.totalorder %s14, 1
    %p51 = por %p49, %p50
    %p52 = scmp.ne.s32.totalorder %s41, %s42
    %p53 = scmp.eq.s32.totalorder %s14, 0
    %p54 = por %p52, %p53
    %p55 = scmp.ne.s32.totalorder %s41, %s42
    %p56 = scmp.eq.s32.totalorder %s15, 1
    %p57 = por %p55, %p56
    %p59 = scmp.ne.s32.totalorder %s42, %s58
    %p60 = scmp.eq.s32.totalorder %s15, 0
    %p61 = por %p59, %p60
    %s62 = ssub.s32 %s17, %s31
    %p63 = scmp.eq.s32.totalorder %s62, 0
    %s65 = sadd.s32 %s64, 1
    %s66 = scalar_select %p63, %s64, %s65
    %p69 = pneg %p63
    %p70 = scmp.eq.s32.totalorder %s9, 1
    %p71 = por %p69, %p70
    %p72 = scmp.ne.s32.totalorder %s64, %s67
    %p73 = scmp.eq.s32.totalorder %s9, 0
    %p74 = por %p72, %p73
    %p75 = scmp.ne.s32.totalorder %s64, %s67
    %p76 = scmp.eq.s32.totalorder %s14, 1
    %p77 = por %p75, %p76
    %p78 = scmp.ne.s32.totalorder %s67, %s68
    %p79 = scmp.eq.s32.totalorder %s14, 0
    %p80 = por %p78, %p79
    %p81 = scmp.ne.s32.totalorder %s67, %s68
    %p82 = scmp.eq.s32.totalorder %s15, 1
    %p83 = por %p81, %p82
    %p85 = scmp.ne.s32.totalorder %s68, %s84
    %p86 = scmp.eq.s32.totalorder %s15, 0
    %p87 = por %p85, %p86
    %s88 = ssub.s32 %s17, %s31
    %p89 = scmp.eq.s32.totalorder %s88, 0
    %s91 = sadd.s32 %s90, 1
    %s92 = scalar_select %p89, %s90, %s91
    %p95 = pneg %p89
    %p96 = scmp.eq.s32.totalorder %s9, 1
    %p97 = por %p95, %p96
    %p98 = scmp.ne.s32.totalorder %s90, %s93
    %p99 = scmp.eq.s32.totalorder %s9, 0
    %p100 = por %p98, %p99
    %p101 = scmp.ne.s32.totalorder %s90, %s93
    %p102 = scmp.eq.s32.totalorder %s14, 1
    %p103 = por %p101, %p102
    %p104 = scmp.ne.s32.totalorder %s93, %s94
    %p105 = scmp.eq.s32.totalorder %s14, 0
    %p106 = por %p104, %p105
    %p107 = scmp.ne.s32.totalorder %s93, %s94
    %p108 = scmp.eq.s32.totalorder %s15, 1
    %p109 = por %p107, %p108
    %p111 = scmp.ne.s32.totalorder %s94, %s110
    %p112 = scmp.eq.s32.totalorder %s15, 0
    %p113 = por %p111, %p112
    %s114 = ssub.s32 %s16, %s35
    %s115 = ssub.s32 %s18, %s27
    %s116 = sor.u32 %s114, %s115
    %s117 = ssub.s32 %s17, %s31
    %s118 = sor.u32 %s116, %s117
    %p119 = scmp.eq.s32.totalorder %s118, 0
    %s121 = sadd.s32 %s120, 1
    %s122 = scalar_select %p119, %s120, %s121
    %p125 = pneg %p119
    %p126 = scmp.eq.s32.totalorder %s9, 1
    %p127 = por %p125, %p126
    %p128 = scmp.ne.s32.totalorder %s120, %s123
    %p129 = scmp.eq.s32.totalorder %s9, 0
    %p130 = por %p128, %p129
    %p131 = scmp.ne.s32.totalorder %s120, %s123
    %p132 = scmp.eq.s32.totalorder %s14, 1
    %p133 = por %p131, %p132
    %p134 = scmp.ne.s32.totalorder %s123, %s124
    %p135 = scmp.eq.s32.totalorder %s14, 0
    %p136 = por %p134, %p135
    %p137 = scmp.ne.s32.totalorder %s123, %s124
    %p138 = scmp.eq.s32.totalorder %s15, 1
    %p139 = por %p137, %p138
    %p141 = scmp.ne.s32.totalorder %s124, %s140
    %p142 = scmp.eq.s32.totalorder %s15, 0
    %p143 = por %p141, %p142
    %p144 = scmp.le.s32.totalorder 1, %s9
    %p145 = scmp.lt.s32.totalorder %s9, 3
    %p146 = pnand %p144, %p145
    %p147 = pneg %p146
    // Predicated region
    $region9: #{conv_layer_forward.1} parent=5 // pred_check
      _
    $region10: #{conv_layer_forward.1} parent=5 // pred_check_branch
      %149 = sbr.rel (%p146) target = $region12
    $region11: #{conv_layer_forward.1} parent=5 // pred_region
      %s150 = ssub.s32 %s9, 1
      // Predicated region
      $region13: #{conv_layer_forward.1} parent=11 // pred_check
        %p151 = pneg %p80
      $region14: #{conv_layer_forward.1} parent=11 // pred_check_branch
        %153 = sbr.rel (%p151) target = $region16
      $region15: #{conv_layer_forward.1} parent=11 // pred_region
        %p154 = scmp.lt.s32.totalorder %s20, 0
        %s155 = scalar_select %p154, %s20, 0
        %s156 = smul.addr %s155, 2
        %s157 = scalar_lea.vmem %s1, %s156
      $region16: #{conv_layer_forward.1} parent=11 // pred_fallthru
        _
      // Predicated region
      $region17: #{conv_layer_forward.1} parent=11 // pred_check
        %p158 = pneg %p106
      $region18: #{conv_layer_forward.1} parent=11 // pred_check_branch
        %160 = sbr.rel (%p158) target = $region20
      $region19: #{conv_layer_forward.1} parent=11 // pred_region
        %p161 = scmp.lt.s32.totalorder %s20, 0
        %s162 = scalar_select %p161, %s20, 0
        %s163 = scalar_lea.vmem %s2, %s162
      $region20: #{conv_layer_forward.1} parent=11 // pred_fallthru
        _
    $region12: #{conv_layer_forward.1} parent=5 // pred_fallthru
      _
    %p164 = scmp.lt.s32.totalorder %s9, 2
    // Predicated region
    $region21: #{conv_layer_forward.1} parent=5 // pred_check
      %p165 = pneg %p164
    $region22: #{conv_layer_forward.1} parent=5 // pred_check_branch
      %167 = sbr.rel (%p165) target = $region24
    $region23: #{conv_layer_forward.1} parent=5 // pred_region
      // Predicated region
      $region25: #{conv_layer_forward.1} parent=23 // pred_check
        %p168 = pneg %p48
      $region26: #{conv_layer_forward.1} parent=23 // pred_check_branch
        %170 = sbr.rel (%p168) target = $region28
      $region27: #{conv_layer_forward.1} parent=23 // pred_region
        %p171 = scmp.lt.s32.totalorder %s16, 1
        %s172 = scalar_select %p171, %s16, 1
        %s173 = smul.addr %s172, 48
        %s174 = smul.addr %s173, 4
        %s175 = scalar_lea.vmem %s0, %s174
      $region28: #{conv_layer_forward.1} parent=23 // pred_fallthru
        _
    $region24: #{conv_layer_forward.1} parent=5 // pred_fallthru
      _
    %p176 = scmp.le.s32.totalorder 1, %s9
    %p177 = scmp.lt.s32.totalorder %s9, 3
    %p178 = pnand %p176, %p177
    %p179 = pneg %p178
    // Predicated region
    $region29: #{conv_layer_forward.1} parent=5 // pred_check
      _
    $region30: #{conv_layer_forward.1} parent=5 // pred_check_branch
      %181 = sbr.rel (%p178) target = $region32
    $region31: #{conv_layer_forward.1} parent=5 // pred_region
      %s182 = ssub.s32 %s9, 1
      %p183 = scmp.lt.s32.totalorder %s19, 1
      %s184 = scalar_select %p183, %s19, 1
      %s185 = smul.addr %s184, 48
      %s186 = smul.addr %s185, 4
      %s187 = scalar_lea.vmem %s0, %s186
      %p188 = pneg %p54
      %p189 = pneg %p51
      %p190 = scmp.lt.s32.totalorder %s20, 0
      %s191 = scalar_select %p190, %s20, 0
      %s192 = smul.addr %s191, 2
      %s193 = scalar_lea.vmem %s1, %s192
      %p194 = pneg %p80
      %p195 = pneg %p77
      %p196 = scmp.lt.s32.totalorder %s20, 0
      %s197 = scalar_select %p196, %s20, 0
      %s198 = scalar_lea.vmem %s2, %s197
      %p199 = pneg %p106
      %p200 = pneg %p103
      %p201 = pneg %p136
      %p202 = pneg %p133
      %s203 = smul.u32 14, %s21
      %p204 = scmp.lt.s32.totalorder %s19, 1
      %s205 = scalar_select %p204, %s19, 1
      %p206 = scmp.lt.s32.totalorder %s203, 13
      %s207 = scalar_select %p206, %s203, 13
      %p208 = scmp.lt.s32.totalorder %s20, 0
      %s209 = scalar_select %p208, %s20, 0
      %s210 = smul.addr %s207, 2
      %s211 = sadd.s32 %s209, %s210
      %s212 = smul.addr %s205, 28
      %s213 = sadd.s32 %s211, %s212
      %s214 = smul.addr %s213, 8
      %s215 = scalar_lea.vmem %s3, %s214
      %p216 = scmp.lt.s32.totalorder %s19, 1
      %s217 = scalar_select %p216, %s19, 1
      %s218 = smul.addr %s217, 48
      %s219 = smul.addr %s218, 4
      %s220 = scalar_lea.vmem %s0, %s219
      %p221 = scmp.lt.s32.totalorder %s20, 0
      %s222 = scalar_select %p221, %s20, 0
      %s223 = smul.addr %s222, 2
      %s224 = scalar_lea.vmem %s1, %s223
      %p225 = scmp.lt.s32.totalorder %s20, 0
      %s226 = scalar_select %p225, %s20, 0
      %s227 = scalar_lea.vmem %s2, %s226
      %s228 = smul.u32 14, %s21
      %p229 = scmp.lt.s32.totalorder %s19, 1
      %s230 = scalar_select %p229, %s19, 1
      %p231 = scmp.lt.s32.totalorder %s228, 13
      %s232 = scalar_select %p231, %s228, 13
      %p233 = scmp.lt.s32.totalorder %s20, 0
      %s234 = scalar_select %p233, %s20, 0
      %s235 = smul.addr %s232, 2
      %s236 = sadd.s32 %s234, %s235
      %s237 = smul.addr %s230, 28
      %s238 = sadd.s32 %s236, %s237
      %s239 = smul.addr %s238, 8
      %s240 = scalar_lea.vmem %s3, %s239
      %s241 = smul.u32 14, %s21
      %s243 = smul.u32 %s21, 14
      %s244 = smul.u32 %s243, 3
      %s245 = smul.addr %s244, 4
      %s246 = scalar_lea.vmem %s220, %s245
      %v247 = vld [vmem:[%s246] sm:$0xf]
      %v248 = vld [vmem:[%s246 + $0x4] sm:$0xf]
      %v249 = vld [vmem:[%s246 + $0xc] sm:$0xf]
      %v250 = vld [vmem:[%s246 + $0x10] sm:$0xf]
      %v251 = vld [vmem:[%s246 + $0x18] sm:$0xf]
      %v252 = vld [vmem:[%s246 + $0x1c] sm:$0xf]
      %v253 = vld [vmem:[%s246 + $0x24] sm:$0xf]
      %v254 = vld [vmem:[%s246 + $0x28] sm:$0xf]
      %v255 = vld [vmem:[%s246 + $0x30] sm:$0xf]
      %v256 = vld [vmem:[%s246 + $0x34] sm:$0xf]
      %v257 = vld [vmem:[%s246 + $0x3c] sm:$0xf]
      %v258 = vld [vmem:[%s246 + $0x40] sm:$0xf]
      %v259 = vld [vmem:[%s246 + $0x48] sm:$0xf]
      %v260 = vld [vmem:[%s246 + $0x4c] sm:$0xf]
      %v261 = vld [vmem:[%s246 + $0x54] sm:$0xf]
      %v262 = vld [vmem:[%s246 + $0x58] sm:$0xf]
      %v263 = vld [vmem:[%s246 + $0x60] sm:$0xf]
      %v264 = vld [vmem:[%s246 + $0x64] sm:$0xf]
      %v265 = vld [vmem:[%s246 + $0x6c] sm:$0xf]
      %v266 = vld [vmem:[%s246 + $0x70] sm:$0xf]
      %v267 = vld [vmem:[%s246 + $0x78] sm:$0xf]
      %v268 = vld [vmem:[%s246 + $0x7c] sm:$0xf]
      %v269 = vld [vmem:[%s246 + $0x84] sm:$0xf]
      %v270 = vld [vmem:[%s246 + $0x88] sm:$0xf]
      %v271 = vld [vmem:[%s246 + $0x90] sm:$0xf]
      %v272 = vld [vmem:[%s246 + $0x94] sm:$0xf]
      %v273 = vld [vmem:[%s246 + $0x9c] sm:$0xf]
      %v274 = vld [vmem:[%s246 + $0xa0] sm:$0xf]
      %v275 = vld [vmem:[%s224] sm:$0x3]
      %v276 = vld [vmem:[%s246 + $0x8] sm:$0x1]
      %v277 = vld [vmem:[%s246 + $0x14] sm:$0x1]
      %v278 = vld [vmem:[%s246 + $0x20] sm:$0x1]
      %v279 = vld [vmem:[%s246 + $0x2c] sm:$0x1]
      %v280 = vld [vmem:[%s246 + $0x38] sm:$0x1]
      %v281 = vld [vmem:[%s246 + $0x44] sm:$0x1]
      %v282 = vld [vmem:[%s246 + $0x50] sm:$0x1]
      %v283 = vld [vmem:[%s246 + $0x5c] sm:$0x1]
      %v284 = vld [vmem:[%s246 + $0x68] sm:$0x1]
      %v285 = vld [vmem:[%s246 + $0x74] sm:$0x1]
      %v286 = vld [vmem:[%s246 + $0x80] sm:$0x1]
      %v287 = vld [vmem:[%s246 + $0x8c] sm:$0x1]
      %v288 = vld [vmem:[%s246 + $0x98] sm:$0x1]
      %v289 = vld [vmem:[%s246 + $0xa4] sm:$0x1]
      %vm290 = vsmask.f32 3328
      %vm291 = vsmask.f32 7440
      %vm292 = vmor %vm290, %vm291
      %v294 = vshrl.u32 %v247, 16
      %v296 = vrot.slane %v294, 4
      %v297 = vshll.u32 %v247, 16
      %v299 = vrot.slane %v297, 5
      %v300 = vor.u32 %v296, %v299
      %v301 = vrot.slane %v300, 4
      %v303 = vshll.u32 %v248, 16
      %v305 = vrot.slane %v303, 5
      %v306 = vsel %vm292, %v301, %v305
      %v307 = vshrl.u32 %v248, 16
      %v309 = vrot.slane %v307, 4
      %v310 = vor.u32 %v309, %v305
      %v311 = vrot.slane %v310, 4
      %v313 = vshll.u32 %v276, 16
      %v315 = vrot.slane %v313, 5
      %v316 = vsel %vm292, %v311, %v315
      %v318 = vshrl.u32 %v249, 16
      %v320 = vrot.slane %v318, 4
      %v321 = vshll.u32 %v249, 16
      %v323 = vrot.slane %v321, 5
      %v324 = vor.u32 %v320, %v323
      %v325 = vrot.slane %v324, 4
      %v327 = vshll.u32 %v250, 16
      %v329 = vrot.slane %v327, 5
      %v330 = vsel %vm292, %v325, %v329
      %v331 = vshrl.u32 %v250, 16
      %v333 = vrot.slane %v331, 4
      %v334 = vor.u32 %v333, %v329
      %v335 = vrot.slane %v334, 4
      %v337 = vshll.u32 %v277, 16
      %v339 = vrot.slane %v337, 5
      %v340 = vsel %vm292, %v335, %v339
      %v342 = vshrl.u32 %v251, 16
      %v344 = vrot.slane %v342, 4
      %v345 = vshll.u32 %v251, 16
      %v347 = vrot.slane %v345, 5
      %v348 = vor.u32 %v344, %v347
      %v349 = vrot.slane %v348, 4
      %v351 = vshll.u32 %v252, 16
      %v353 = vrot.slane %v351, 5
      %v354 = vsel %vm292, %v349, %v353
      %v355 = vshrl.u32 %v252, 16
      %v357 = vrot.slane %v355, 4
      %v358 = vor.u32 %v357, %v353
      %v359 = vrot.slane %v358, 4
      %v361 = vshll.u32 %v278, 16
      %v363 = vrot.slane %v361, 5
      %v364 = vsel %vm292, %v359, %v363
      %v366 = vshrl.u32 %v253, 16
      %v368 = vrot.slane %v366, 4
      %v369 = vshll.u32 %v253, 16
      %v371 = vrot.slane %v369, 5
      %v372 = vor.u32 %v368, %v371
      %v373 = vrot.slane %v372, 4
      %v375 = vshll.u32 %v254, 16
      %v377 = vrot.slane %v375, 5
      %v378 = vsel %vm292, %v373, %v377
      %v379 = vshrl.u32 %v254, 16
      %v381 = vrot.slane %v379, 4
      %v382 = vor.u32 %v381, %v377
      %v383 = vrot.slane %v382, 4
      %v385 = vshll.u32 %v279, 16
      %v387 = vrot.slane %v385, 5
      %v388 = vsel %vm292, %v383, %v387
      %v390 = vshrl.u32 %v255, 16
      %v392 = vrot.slane %v390, 4
      %v393 = vshll.u32 %v255, 16
      %v395 = vrot.slane %v393, 5
      %v396 = vor.u32 %v392, %v395
      %v397 = vrot.slane %v396, 4
      %v399 = vshll.u32 %v256, 16
      %v401 = vrot.slane %v399, 5
      %v402 = vsel %vm292, %v397, %v401
      %v403 = vshrl.u32 %v256, 16
      %v405 = vrot.slane %v403, 4
      %v406 = vor.u32 %v405, %v401
      %v407 = vrot.slane %v406, 4
      %v409 = vshll.u32 %v280, 16
      %v411 = vrot.slane %v409, 5
      %v412 = vsel %vm292, %v407, %v411
      %v414 = vshrl.u32 %v257, 16
      %v416 = vrot.slane %v414, 4
      %v417 = vshll.u32 %v257, 16
      %v419 = vrot.slane %v417, 5
      %v420 = vor.u32 %v416, %v419
      %v421 = vrot.slane %v420, 4
      %v423 = vshll.u32 %v258, 16
      %v425 = vrot.slane %v423, 5
      %v426 = vsel %vm292, %v421, %v425
      %v427 = vshrl.u32 %v258, 16
      %v429 = vrot.slane %v427, 4
      %v430 = vor.u32 %v429, %v425
      %v431 = vrot.slane %v430, 4
      %v433 = vshll.u32 %v281, 16
      %v435 = vrot.slane %v433, 5
      %v436 = vsel %vm292, %v431, %v435
      %v438 = vshrl.u32 %v259, 16
      %v440 = vrot.slane %v438, 4
      %v441 = vshll.u32 %v259, 16
      %v443 = vrot.slane %v441, 5
      %v444 = vor.u32 %v440, %v443
      %v445 = vrot.slane %v444, 4
      %v447 = vshll.u32 %v260, 16
      %v449 = vrot.slane %v447, 5
      %v450 = vsel %vm292, %v445, %v449
      %v451 = vshrl.u32 %v260, 16
      %v453 = vrot.slane %v451, 4
      %v454 = vor.u32 %v453, %v449
      %v455 = vrot.slane %v454, 4
      %v457 = vshll.u32 %v282, 16
      %v459 = vrot.slane %v457, 5
      %v460 = vsel %vm292, %v455, %v459
      %v462 = vshrl.u32 %v261, 16
      %v464 = vrot.slane %v462, 4
      %v465 = vshll.u32 %v261, 16
      %v467 = vrot.slane %v465, 5
      %v468 = vor.u32 %v464, %v467
      %v469 = vrot.slane %v468, 4
      %v471 = vshll.u32 %v262, 16
      %v473 = vrot.slane %v471, 5
      %v474 = vsel %vm292, %v469, %v473
      %v475 = vshrl.u32 %v262, 16
      %v477 = vrot.slane %v475, 4
      %v478 = vor.u32 %v477, %v473
      %v479 = vrot.slane %v478, 4
      %v481 = vshll.u32 %v283, 16
      %v483 = vrot.slane %v481, 5
      %v484 = vsel %vm292, %v479, %v483
      %v486 = vshrl.u32 %v263, 16
      %v488 = vrot.slane %v486, 4
      %v489 = vshll.u32 %v263, 16
      %v491 = vrot.slane %v489, 5
      %v492 = vor.u32 %v488, %v491
      %v493 = vrot.slane %v492, 4
      %v495 = vshll.u32 %v264, 16
      %v497 = vrot.slane %v495, 5
      %v498 = vsel %vm292, %v493, %v497
      %v499 = vshrl.u32 %v264, 16
      %v501 = vrot.slane %v499, 4
      %v502 = vor.u32 %v501, %v497
      %v503 = vrot.slane %v502, 4
      %v505 = vshll.u32 %v284, 16
      %v507 = vrot.slane %v505, 5
      %v508 = vsel %vm292, %v503, %v507
      %v510 = vshrl.u32 %v265, 16
      %v512 = vrot.slane %v510, 4
      %v513 = vshll.u32 %v265, 16
      %v515 = vrot.slane %v513, 5
      %v516 = vor.u32 %v512, %v515
      %v517 = vrot.slane %v516, 4
      %v519 = vshll.u32 %v266, 16
      %v521 = vrot.slane %v519, 5
      %v522 = vsel %vm292, %v517, %v521
      %v523 = vshrl.u32 %v266, 16
      %v525 = vrot.slane %v523, 4
      %v526 = vor.u32 %v525, %v521
      %v527 = vrot.slane %v526, 4
      %v529 = vshll.u32 %v285, 16
      %v531 = vrot.slane %v529, 5
      %v532 = vsel %vm292, %v527, %v531
      %v534 = vshrl.u32 %v267, 16
      %v536 = vrot.slane %v534, 4
      %v537 = vshll.u32 %v267, 16
      %v539 = vrot.slane %v537, 5
      %v540 = vor.u32 %v536, %v539
      %v541 = vrot.slane %v540, 4
      %v543 = vshll.u32 %v268, 16
      %v545 = vrot.slane %v543, 5
      %v546 = vsel %vm292, %v541, %v545
      %v547 = vshrl.u32 %v268, 16
      %v549 = vrot.slane %v547, 4
      %v550 = vor.u32 %v549, %v545
      %v551 = vrot.slane %v550, 4
      %v553 = vshll.u32 %v286, 16
      %v555 = vrot.slane %v553, 5
      %v556 = vsel %vm292, %v551, %v555
      %v558 = vshrl.u32 %v269, 16
      %v560 = vrot.slane %v558, 4
      %v561 = vshll.u32 %v269, 16
      %v563 = vrot.slane %v561, 5
      %v564 = vor.u32 %v560, %v563
      %v565 = vrot.slane %v564, 4
      %v567 = vshll.u32 %v270, 16
      %v569 = vrot.slane %v567, 5
      %v570 = vsel %vm292, %v565, %v569
      %v571 = vshrl.u32 %v270, 16
      %v573 = vrot.slane %v571, 4
      %v574 = vor.u32 %v573, %v569
      %v575 = vrot.slane %v574, 4
      %v577 = vshll.u32 %v287, 16
      %v579 = vrot.slane %v577, 5
      %v580 = vsel %vm292, %v575, %v579
      %v582 = vshrl.u32 %v271, 16
      %v584 = vrot.slane %v582, 4
      %v585 = vshll.u32 %v271, 16
      %v587 = vrot.slane %v585, 5
      %v588 = vor.u32 %v584, %v587
      %v589 = vrot.slane %v588, 4
      %v591 = vshll.u32 %v272, 16
      %v593 = vrot.slane %v591, 5
      %v594 = vsel %vm292, %v589, %v593
      %v595 = vshrl.u32 %v272, 16
      %v597 = vrot.slane %v595, 4
      %v598 = vor.u32 %v597, %v593
      %v599 = vrot.slane %v598, 4
      %v601 = vshll.u32 %v288, 16
      %v603 = vrot.slane %v601, 5
      %v604 = vsel %vm292, %v599, %v603
      %v606 = vshrl.u32 %v273, 16
      %v608 = vrot.slane %v606, 4
      %v609 = vshll.u32 %v273, 16
      %v611 = vrot.slane %v609, 5
      %v612 = vor.u32 %v608, %v611
      %v613 = vrot.slane %v612, 4
      %v615 = vshll.u32 %v274, 16
      %v617 = vrot.slane %v615, 5
      %v618 = vsel %vm292, %v613, %v617
      %v619 = vshrl.u32 %v274, 16
      %v621 = vrot.slane %v619, 4
      %v622 = vor.u32 %v621, %v617
      %v623 = vrot.slane %v622, 4
      %v625 = vshll.u32 %v289, 16
      %v627 = vrot.slane %v625, 5
      %v628 = vsel %vm292, %v623, %v627
      %s629 = scalar_lea.vmem %s224, 2
      %v630 = vld [vmem:[%s629] sm:$0x3]
      %v631 = vunpack.c.l.b16 %v306
      %v632 = vunpack.c.l.b16 %v316
      %v633 = vunpack.c.l.b16 %v330
      %v634 = vunpack.c.l.b16 %v340
      %v635 = vunpack.c.l.b16 %v354
      %v636 = vunpack.c.l.b16 %v364
      %v637 = vunpack.c.l.b16 %v378
      %v638 = vunpack.c.l.b16 %v388
      %v639 = vunpack.c.l.b16 %v402
      %v640 = vunpack.c.l.b16 %v412
      %v641 = vunpack.c.l.b16 %v426
      %v642 = vunpack.c.l.b16 %v436
      %v643 = vunpack.c.l.b16 %v450
      %v644 = vunpack.c.l.b16 %v460
      %v645 = vunpack.c.l.b16 %v474
      %v646 = vunpack.c.l.b16 %v484
      %v647 = vunpack.c.l.b16 %v498
      %v648 = vunpack.c.l.b16 %v508
      %v649 = vunpack.c.l.b16 %v522
      %v650 = vunpack.c.l.b16 %v532
      %v651 = vunpack.c.l.b16 %v546
      %v652 = vunpack.c.l.b16 %v556
      %v653 = vunpack.c.l.b16 %v570
      %v654 = vunpack.c.l.b16 %v580
      %v655 = vunpack.c.l.b16 %v594
      %v656 = vunpack.c.l.b16 %v604
      %v657 = vunpack.c.l.b16 %v618
      %v658 = vunpack.c.l.b16 %v628
      %v659 = vpack.c.b16 %v632, %v631
      %v660 = vpack.c.b16 %v634, %v633
      %v661 = vpack.c.b16 %v636, %v635
      %v662 = vpack.c.b16 %v638, %v637
      %v663 = vpack.c.b16 %v640, %v639
      %v664 = vpack.c.b16 %v642, %v641
      %v665 = vpack.c.b16 %v644, %v643
      %v666 = vpack.c.b16 %v646, %v645
      %v667 = vpack.c.b16 %v648, %v647
      %v668 = vpack.c.b16 %v650, %v649
      %v669 = vpack.c.b16 %v652, %v651
      %v670 = vpack.c.b16 %v654, %v653
      %v671 = vpack.c.b16 %v656, %v655
      %v672 = vpack.c.b16 %v658, %v657
      %vm673 = vcmask 31744
      %v675 = vsel %vm673, %v659, 0
      %v678 = vsel %vm673, %v660, 0
      %v681 = vsel %vm673, %v661, 0
      %v684 = vsel %vm673, %v662, 0
      %v687 = vsel %vm673, %v663, 0
      %v690 = vsel %vm673, %v664, 0
      %v693 = vsel %vm673, %v665, 0
      %v696 = vsel %vm673, %v666, 0
      %v699 = vsel %vm673, %v667, 0
      %v702 = vsel %vm673, %v668, 0
      %v705 = vsel %vm673, %v669, 0
      %v708 = vsel %vm673, %v670, 0
      %v711 = vsel %vm673, %v671, 0
      %v714 = vsel %vm673, %v672, 0
      %vm716 = vcmask 1041408
      %v718 = vsel %vm716, %v630, 0
      %720 = vmatprep.subr.bf16.mxu0 0
      %721 = vmatpush1.bf16.msra.mxu0 %v718
      %722 = vmatprep.subr.bf16.mxu0 0
      %723 = vmatpush1.bf16.msra.mxu0 0
      %724 = vmatprep.subr.bf16.mxu0 0
      %725 = vmatpush1.bf16.msra.mxu0 0
      %726 = vmatprep.subr.bf16.mxu0 0
      %727 = vmatpush1.bf16.msra.mxu0 0
      %728 = vmatprep.subr.bf16.mxu0 0
      %729 = vmatpush1.bf16.msra.mxu0 0
      %730 = vmatprep.subr.bf16.mxu0 0
      %731 = vmatpush1.bf16.msra.mxu0 0
      %732 = vmatprep.subr.bf16.mxu0 0
      %733 = vmatpush1.bf16.msra.mxu0 0
      %734 = vmatprep.subr.bf16.mxu0 0
      %735 = vmatpush1.bf16.msra.mxu0 0
      %736 = vmatprep.subr.bf16.mxu0 0
      %737 = vmatpush1.bf16.msra.mxu0 0
      %738 = vmatprep.subr.bf16.mxu0 0
      %739 = vmatpush1.bf16.msra.mxu0 0
      %740 = vmatprep.subr.bf16.mxu0 0
      %741 = vmatpush1.bf16.msra.mxu0 0
      %742 = vmatprep.subr.bf16.mxu0 0
      %743 = vmatpush1.bf16.msra.mxu0 0
      %744 = vmatprep.subr.bf16.mxu0 0
      %745 = vmatpush1.bf16.msra.mxu0 0
      %746 = vmatprep.subr.bf16.mxu0 0
      %747 = vmatpush1.bf16.msra.mxu0 0
      %748 = vmatprep.subr.bf16.mxu0 0
      %749 = vmatpush1.bf16.msra.mxu0 0
      %750 = vmatprep.subr.bf16.mxu0 0
      %751 = vmatpush1.bf16.msra.mxu0 0
      %752 = vmatprep.mubr.bf16.mxu0 0
      %753 = vmatmul.mubr.bf16.gmra.mrb[0].mxu0 %v675
      %v754 = vpop.f32.mrb[0].mxu0
      %v755 = vadd.f32 0.0, %v754
      %v756 = vpop.f32.mrb[0].mxu0
      %v757 = vpop.f32.mrb[0].mxu0
      %v758 = vadd.f32 0.0, %v757
      %v759 = vpop.f32.mrb[0].mxu0
      %760 = vmatprep.mubr.bf16.mxu0 0
      %761 = vmatmul.mubr.bf16.gmra.mrb[0].mxu0 %v678
      %v762 = vpop.f32.mrb[0].mxu0
      %v763 = vadd.f32 0.0, %v762
      %v764 = vpop.f32.mrb[0].mxu0
      %v765 = vpop.f32.mrb[0].mxu0
      %v766 = vadd.f32 0.0, %v765
      %v767 = vpop.f32.mrb[0].mxu0
      %768 = vmatprep.mubr.bf16.mxu0 0
      %769 = vmatmul.mubr.bf16.gmra.mrb[0].mxu0 %v681
      %v770 = vpop.f32.mrb[0].mxu0
      %v771 = vadd.f32 0.0, %v770
      %v772 = vpop.f32.mrb[0].mxu0
      %v773 = vpop.f32.mrb[0].mxu0
      %v774 = vadd.f32 0.0, %v773
      %v775 = vpop.f32.mrb[0].mxu0
      %776 = vmatprep.mubr.bf16.mxu0 0
      %777 = vmatmul.mubr.bf16.gmra.mrb[0].mxu0 %v684
      %v778 = vpop.f32.mrb[0].mxu0
      %v779 = vadd.f32 0.0, %v778
      %v780 = vpop.f32.mrb[0].mxu0
      %v781 = vpop.f32.mrb[0].mxu0
      %v782 = vadd.f32 0.0, %v781
      %v783 = vpop.f32.mrb[0].mxu0
      %784 = vmatprep.mubr.bf16.mxu0 0
      %785 = vmatmul.mubr.bf16.gmra.mrb[0].mxu0 %v687
      %v786 = vpop.f32.mrb[0].mxu0
      %v787 = vadd.f32 0.0, %v786
      %v788 = vpop.f32.mrb[0].mxu0
      %v789 = vpop.f32.mrb[0].mxu0
      %v790 = vadd.f32 0.0, %v789
      %v791 = vpop.f32.mrb[0].mxu0
      %792 = vmatprep.mubr.bf16.mxu0 0
      %793 = vmatmul.mubr.bf16.gmra.mrb[0].mxu0 %v690
      %v794 = vpop.f32.mrb[0].mxu0
      %v795 = vadd.f32 0.0, %v794
      %v796 = vpop.f32.mrb[0].mxu0
      %v797 = vpop.f32.mrb[0].mxu0
      %v798 = vadd.f32 0.0, %v797
      %v799 = vpop.f32.mrb[0].mxu0
      %800 = vmatprep.mubr.bf16.mxu0 0
      %801 = vmatmul.mubr.bf16.gmra.mrb[0].mxu0 %v693
      %v802 = vpop.f32.mrb[0].mxu0
      %v803 = vadd.f32 0.0, %v802
      %v804 = vpop.f32.mrb[0].mxu0
      %v805 = vpop.f32.mrb[0].mxu0
      %v806 = vadd.f32 0.0, %v805
      %v807 = vpop.f32.mrb[0].mxu0
      %808 = vmatprep.mubr.bf16.mxu0 0
      %809 = vmatmul.mubr.bf16.gmra.mrb[0].mxu0 %v696
      %v810 = vpop.f32.mrb[0].mxu0
      %v811 = vadd.f32 0.0, %v810
      %v812 = vpop.f32.mrb[0].mxu0
      %v813 = vpop.f32.mrb[0].mxu0
      %v814 = vadd.f32 0.0, %v813
      %v815 = vpop.f32.mrb[0].mxu0
      %816 = vmatprep.mubr.bf16.mxu0 0
      %817 = vmatmul.mubr.bf16.gmra.mrb[0].mxu0 %v699
      %v818 = vpop.f32.mrb[0].mxu0
      %v819 = vadd.f32 0.0, %v818
      %v820 = vpop.f32.mrb[0].mxu0
      %v821 = vpop.f32.mrb[0].mxu0
      %v822 = vadd.f32 0.0, %v821
      %v823 = vpop.f32.mrb[0].mxu0
      %824 = vmatprep.mubr.bf16.mxu0 0
      %825 = vmatmul.mubr.bf16.gmra.mrb[0].mxu0 %v702
      %v826 = vpop.f32.mrb[0].mxu0
      %v827 = vadd.f32 0.0, %v826
      %v828 = vpop.f32.mrb[0].mxu0
      %v829 = vpop.f32.mrb[0].mxu0
      %v830 = vadd.f32 0.0, %v829
      %v831 = vpop.f32.mrb[0].mxu0
      %832 = vmatprep.mubr.bf16.mxu0 0
      %833 = vmatmul.mubr.bf16.gmra.mrb[0].mxu0 %v705
      %v834 = vpop.f32.mrb[0].mxu0
      %v835 = vadd.f32 0.0, %v834
      %v836 = vpop.f32.mrb[0].mxu0
      %v837 = vpop.f32.mrb[0].mxu0
      %v838 = vadd.f32 0.0, %v837
      %v839 = vpop.f32.mrb[0].mxu0
      %840 = vmatprep.mubr.bf16.mxu0 0
      %841 = vmatmul.mubr.bf16.gmra.mrb[0].mxu0 %v708
      %v842 = vpop.f32.mrb[0].mxu0
      %v843 = vadd.f32 0.0, %v842
      %v844 = vpop.f32.mrb[0].mxu0
      %v845 = vpop.f32.mrb[0].mxu0
      %v846 = vadd.f32 0.0, %v845
      %v847 = vpop.f32.mrb[0].mxu0
      %848 = vmatprep.mubr.bf16.mxu0 0
      %849 = vmatmul.mubr.bf16.gmra.mrb[0].mxu0 %v711
      %v850 = vpop.f32.mrb[0].mxu0
      %v851 = vadd.f32 0.0, %v850
      %v852 = vpop.f32.mrb[0].mxu0
      %v853 = vpop.f32.mrb[0].mxu0
      %v854 = vadd.f32 0.0, %v853
      %v855 = vpop.f32.mrb[0].mxu0
      %856 = vmatprep.mubr.bf16.mxu0 0
      %857 = vmatmul.mubr.bf16.gmra.mrb[0].mxu0 %v714
      %v858 = vpop.f32.mrb[0].mxu0
      %v859 = vadd.f32 0.0, %v858
      %v860 = vpop.f32.mrb[0].mxu0
      %v861 = vpop.f32.mrb[0].mxu0
      %v862 = vadd.f32 0.0, %v861
      %v863 = vpop.f32.mrb[0].mxu0
      %864 = vdwg.mxu0
      %v893 = vunpack.c.l.b16 %v247
      %v894 = vunpack.c.l.b16 %v248
      %v895 = vunpack.c.l.b16 %v249
      %v896 = vunpack.c.l.b16 %v250
      %v897 = vunpack.c.l.b16 %v251
      %v898 = vunpack.c.l.b16 %v252
      %v899 = vunpack.c.l.b16 %v253
      %v900 = vunpack.c.l.b16 %v254
      %v901 = vunpack.c.l.b16 %v255
      %v902 = vunpack.c.l.b16 %v256
      %v903 = vunpack.c.l.b16 %v257
      %v904 = vunpack.c.l.b16 %v258
      %v905 = vunpack.c.l.b16 %v259
      %v906 = vunpack.c.l.b16 %v260
      %v907 = vunpack.c.l.b16 %v261
      %v908 = vunpack.c.l.b16 %v262
      %v909 = vunpack.c.l.b16 %v263
      %v910 = vunpack.c.l.b16 %v264
      %v911 = vunpack.c.l.b16 %v265
      %v912 = vunpack.c.l.b16 %v266
      %v913 = vunpack.c.l.b16 %v267
      %v914 = vunpack.c.l.b16 %v268
      %v915 = vunpack.c.l.b16 %v269
      %v916 = vunpack.c.l.b16 %v270
      %v917 = vunpack.c.l.b16 %v271
      %v918 = vunpack.c.l.b16 %v272
      %v919 = vunpack.c.l.b16 %v273
      %v920 = vunpack.c.l.b16 %v274
      %v921 = vpack.c.b16 %v894, %v893
      %v922 = vpack.c.b16 %v896, %v895
      %v923 = vpack.c.b16 %v898, %v897
      %v924 = vpack.c.b16 %v900, %v899
      %v925 = vpack.c.b16 %v902, %v901
      %v926 = vpack.c.b16 %v904, %v903
      %v927 = vpack.c.b16 %v906, %v905
      %v928 = vpack.c.b16 %v908, %v907
      %v929 = vpack.c.b16 %v910, %v909
      %v930 = vpack.c.b16 %v912, %v911
      %v931 = vpack.c.b16 %v914, %v913
      %v932 = vpack.c.b16 %v916, %v915
      %v933 = vpack.c.b16 %v918, %v917
      %v934 = vpack.c.b16 %v920, %v919
      %v936 = vsel %vm673, %v921, 0
      %v939 = vsel %vm673, %v922, 0
      %v942 = vsel %vm673, %v923, 0
      %v945 = vsel %vm673, %v924, 0
      %v948 = vsel %vm673, %v925, 0
      %v951 = vsel %vm673, %v926, 0
      %v954 = vsel %vm673, %v927, 0
      %v957 = vsel %vm673, %v928, 0
      %v960 = vsel %vm673, %v929, 0
      %v963 = vsel %vm673, %v930, 0
      %v966 = vsel %vm673, %v931, 0
      %v969 = vsel %vm673, %v932, 0
      %v972 = vsel %vm673, %v933, 0
      %v975 = vsel %vm673, %v934, 0
      %v978 = vsel %vm716, %v275, 0
      %980 = vmatprep.subr.bf16.mxu0 0
      %981 = vmatpush1.bf16.msra.mxu0 %v978
      %982 = vmatprep.subr.bf16.mxu0 0
      %983 = vmatpush1.bf16.msra.mxu0 0
      %984 = vmatprep.subr.bf16.mxu0 0
      %985 = vmatpush1.bf16.msra.mxu0 0
      %986 = vmatprep.subr.bf16.mxu0 0
      %987 = vmatpush1.bf16.msra.mxu0 0
      %988 = vmatprep.subr.bf16.mxu0 0
      %989 = vmatpush1.bf16.msra.mxu0 0
      %990 = vmatprep.subr.bf16.mxu0 0
      %991 = vmatpush1.bf16.msra.mxu0 0
      %992 = vmatprep.subr.bf16.mxu0 0
      %993 = vmatpush1.bf16.msra.mxu0 0
      %994 = vmatprep.subr.bf16.mxu0 0
      %995 = vmatpush1.bf16.msra.mxu0 0
      %996 = vmatprep.subr.bf16.mxu0 0
      %997 = vmatpush1.bf16.msra.mxu0 0
      %998 = vmatprep.subr.bf16.mxu0 0
      %999 = vmatpush1.bf16.msra.mxu0 0
      %1000 = vmatprep.subr.bf16.mxu0 0
      %1001 = vmatpush1.bf16.msra.mxu0 0
      %1002 = vmatprep.subr.bf16.mxu0 0
      %1003 = vmatpush1.bf16.msra.mxu0 0
      %1004 = vmatprep.subr.bf16.mxu0 0
      %1005 = vmatpush1.bf16.msra.mxu0 0
      %1006 = vmatprep.subr.bf16.mxu0 0
      %1007 = vmatpush1.bf16.msra.mxu0 0
      %1008 = vmatprep.subr.bf16.mxu0 0
      %1009 = vmatpush1.bf16.msra.mxu0 0
      %1010 = vmatprep.subr.bf16.mxu0 0
      %1011 = vmatpush1.bf16.msra.mxu0 0
      %1012 = vmatprep.mubr.bf16.mxu0 0
      %1013 = vmatmul.mubr.bf16.gmra.mrb[0].mxu0 %v936
      %v1014 = vpop.f32.mrb[0].mxu0
      %v1015 = vadd.f32 %v755, %v1014
      %v1016 = vpop.f32.mrb[0].mxu0
      %v1017 = vpop.f32.mrb[0].mxu0
      %v1018 = vadd.f32 %v758, %v1017
      %v1019 = vpop.f32.mrb[0].mxu0
      %1020 = vmatprep.mubr.bf16.mxu0 0
      %1021 = vmatmul.mubr.bf16.gmra.mrb[0].mxu0 %v939
      %v1022 = vpop.f32.mrb[0].mxu0
      %v1023 = vadd.f32 %v763, %v1022
      %v1024 = vpop.f32.mrb[0].mxu0
      %v1025 = vpop.f32.mrb[0].mxu0
      %v1026 = vadd.f32 %v766, %v1025
      %v1027 = vpop.f32.mrb[0].mxu0
      %1028 = vmatprep.mubr.bf16.mxu0 0
      %1029 = vmatmul.mubr.bf16.gmra.mrb[0].mxu0 %v942
      %v1030 = vpop.f32.mrb[0].mxu0
      %v1031 = vadd.f32 %v771, %v1030
      %v1032 = vpop.f32.mrb[0].mxu0
      %v1033 = vpop.f32.mrb[0].mxu0
      %v1034 = vadd.f32 %v774, %v1033
      %v1035 = vpop.f32.mrb[0].mxu0
      %1036 = vmatprep.mubr.bf16.mxu0 0
      %1037 = vmatmul.mubr.bf16.gmra.mrb[0].mxu0 %v945
      %v1038 = vpop.f32.mrb[0].mxu0
      %v1039 = vadd.f32 %v779, %v1038
      %v1040 = vpop.f32.mrb[0].mxu0
      %v1041 = vpop.f32.mrb[0].mxu0
      %v1042 = vadd.f32 %v782, %v1041
      %v1043 = vpop.f32.mrb[0].mxu0
      %1044 = vmatprep.mubr.bf16.mxu0 0
      %1045 = vmatmul.mubr.bf16.gmra.mrb[0].mxu0 %v948
      %v1046 = vpop.f32.mrb[0].mxu0
      %v1047 = vadd.f32 %v787, %v1046
      %v1048 = vpop.f32.mrb[0].mxu0
      %v1049 = vpop.f32.mrb[0].mxu0
      %v1050 = vadd.f32 %v790, %v1049
      %v1051 = vpop.f32.mrb[0].mxu0
      %1052 = vmatprep.mubr.bf16.mxu0 0
      %1053 = vmatmul.mubr.bf16.gmra.mrb[0].mxu0 %v951
      %v1054 = vpop.f32.mrb[0].mxu0
      %v1055 = vadd.f32 %v795, %v1054
      %v1056 = vpop.f32.mrb[0].mxu0
      %v1057 = vpop.f32.mrb[0].mxu0
      %v1058 = vadd.f32 %v798, %v1057
      %v1059 = vpop.f32.mrb[0].mxu0
      %1060 = vmatprep.mubr.bf16.mxu0 0
      %1061 = vmatmul.mubr.bf16.gmra.mrb[0].mxu0 %v954
      %v1062 = vpop.f32.mrb[0].mxu0
      %v1063 = vadd.f32 %v803, %v1062
      %v1064 = vpop.f32.mrb[0].mxu0
      %v1065 = vpop.f32.mrb[0].mxu0
      %v1066 = vadd.f32 %v806, %v1065
      %v1067 = vpop.f32.mrb[0].mxu0
      %1068 = vmatprep.mubr.bf16.mxu0 0
      %1069 = vmatmul.mubr.bf16.gmra.mrb[0].mxu0 %v957
      %v1070 = vpop.f32.mrb[0].mxu0
      %v1071 = vadd.f32 %v811, %v1070
      %v1072 = vpop.f32.mrb[0].mxu0
      %v1073 = vpop.f32.mrb[0].mxu0
      %v1074 = vadd.f32 %v814, %v1073
      %v1075 = vpop.f32.mrb[0].mxu0
      %1076 = vmatprep.mubr.bf16.mxu0 0
      %1077 = vmatmul.mubr.bf16.gmra.mrb[0].mxu0 %v960
      %v1078 = vpop.f32.mrb[0].mxu0
      %v1079 = vadd.f32 %v819, %v1078
      %v1080 = vpop.f32.mrb[0].mxu0
      %v1081 = vpop.f32.mrb[0].mxu0
      %v1082 = vadd.f32 %v822, %v1081
      %v1083 = vpop.f32.mrb[0].mxu0
      %1084 = vmatprep.mubr.bf16.mxu0 0
      %1085 = vmatmul.mubr.bf16.gmra.mrb[0].mxu0 %v963
      %v1086 = vpop.f32.mrb[0].mxu0
      %v1087 = vadd.f32 %v827, %v1086
      %v1088 = vpop.f32.mrb[0].mxu0
      %v1089 = vpop.f32.mrb[0].mxu0
      %v1090 = vadd.f32 %v830, %v1089
      %v1091 = vpop.f32.mrb[0].mxu0
      %1092 = vmatprep.mubr.bf16.mxu0 0
      %1093 = vmatmul.mubr.bf16.gmra.mrb[0].mxu0 %v966
      %v1094 = vpop.f32.mrb[0].mxu0
      %v1095 = vadd.f32 %v835, %v1094
      %v1096 = vpop.f32.mrb[0].mxu0
      %v1097 = vpop.f32.mrb[0].mxu0
      %v1098 = vadd.f32 %v838, %v1097
      %v1099 = vpop.f32.mrb[0].mxu0
      %1100 = vmatprep.mubr.bf16.mxu0 0
      %1101 = vmatmul.mubr.bf16.gmra.mrb[0].mxu0 %v969
      %v1102 = vpop.f32.mrb[0].mxu0
      %v1103 = vadd.f32 %v843, %v1102
      %v1104 = vpop.f32.mrb[0].mxu0
      %v1105 = vpop.f32.mrb[0].mxu0
      %v1106 = vadd.f32 %v846, %v1105
      %v1107 = vpop.f32.mrb[0].mxu0
      %1108 = vmatprep.mubr.bf16.mxu0 0
      %1109 = vmatmul.mubr.bf16.gmra.mrb[0].mxu0 %v972
      %v1110 = vpop.f32.mrb[0].mxu0
      %v1111 = vadd.f32 %v851, %v1110
      %v1112 = vpop.f32.mrb[0].mxu0
      %v1113 = vpop.f32.mrb[0].mxu0
      %v1114 = vadd.f32 %v854, %v1113
      %v1115 = vpop.f32.mrb[0].mxu0
      %1116 = vmatprep.mubr.bf16.mxu0 0
      %1117 = vmatmul.mubr.bf16.gmra.mrb[0].mxu0 %v975
      %v1118 = vpop.f32.mrb[0].mxu0
      %v1119 = vadd.f32 %v859, %v1118
      %v1120 = vpop.f32.mrb[0].mxu0
      %v1121 = vpop.f32.mrb[0].mxu0
      %v1122 = vadd.f32 %v862, %v1121
      %v1123 = vpop.f32.mrb[0].mxu0
      %1124 = vdwg.mxu0
      %v1125 = vld [vmem:[%s246] sm:$0xe]
      %v1126 = vld [vmem:[%s246 + $0xc] sm:$0xe]
      %v1127 = vld [vmem:[%s246 + $0x18] sm:$0xe]
      %v1128 = vld [vmem:[%s246 + $0x24] sm:$0xe]
      %v1129 = vld [vmem:[%s246 + $0x30] sm:$0xe]
      %v1130 = vld [vmem:[%s246 + $0x3c] sm:$0xe]
      %v1131 = vld [vmem:[%s246 + $0x48] sm:$0xe]
      %v1132 = vld [vmem:[%s246 + $0x54] sm:$0xe]
      %v1133 = vld [vmem:[%s246 + $0x60] sm:$0xe]
      %v1134 = vld [vmem:[%s246 + $0x6c] sm:$0xe]
      %v1135 = vld [vmem:[%s246 + $0x78] sm:$0xe]
      %v1136 = vld [vmem:[%s246 + $0x84] sm:$0xe]
      %v1137 = vld [vmem:[%s246 + $0x90] sm:$0xe]
      %v1138 = vld [vmem:[%s246 + $0x9c] sm:$0xe]
      %vm1167 = vcmask 1042432
      %vm1168 = vcmask 1046532
      %vm1169 = vmor %vm1167, %vm1168
      %v1170 = vrot.slane %v1125, 5
      %v1171 = vrot.slane %v1170, 4
      %v1172 = vrot.slane %v248, 5
      %v1173 = vsel %vm1169, %v1171, %v1172
      %v1174 = vrot.slane %v1172, 4
      %v1175 = vrot.slane %v276, 5
      %v1176 = vsel %vm1169, %v1174, %v1175
      %v1177 = vrot.slane %v1126, 5
      %v1178 = vrot.slane %v1177, 4
      %v1179 = vrot.slane %v250, 5
      %v1180 = vsel %vm1169, %v1178, %v1179
      %v1181 = vrot.slane %v1179, 4
      %v1182 = vrot.slane %v277, 5
      %v1183 = vsel %vm1169, %v1181, %v1182
      %v1184 = vrot.slane %v1127, 5
      %v1185 = vrot.slane %v1184, 4
      %v1186 = vrot.slane %v252, 5
      %v1187 = vsel %vm1169, %v1185, %v1186
      %v1188 = vrot.slane %v1186, 4
      %v1189 = vrot.slane %v278, 5
      %v1190 = vsel %vm1169, %v1188, %v1189
      %v1191 = vrot.slane %v1128, 5
      %v1192 = vrot.slane %v1191, 4
      %v1193 = vrot.slane %v254, 5
      %v1194 = vsel %vm1169, %v1192, %v1193
      %v1195 = vrot.slane %v1193, 4
      %v1196 = vrot.slane %v279, 5
      %v1197 = vsel %vm1169, %v1195, %v1196
      %v1198 = vrot.slane %v1129, 5
      %v1199 = vrot.slane %v1198, 4
      %v1200 = vrot.slane %v256, 5
      %v1201 = vsel %vm1169, %v1199, %v1200
      %v1202 = vrot.slane %v1200, 4
      %v1203 = vrot.slane %v280, 5
      %v1204 = vsel %vm1169, %v1202, %v1203
      %v1205 = vrot.slane %v1130, 5
      %v1206 = vrot.slane %v1205, 4
      %v1207 = vrot.slane %v258, 5
      %v1208 = vsel %vm1169, %v1206, %v1207
      %v1209 = vrot.slane %v1207, 4
      %v1210 = vrot.slane %v281, 5
      %v1211 = vsel %vm1169, %v1209, %v1210
      %v1212 = vrot.slane %v1131, 5
      %v1213 = vrot.slane %v1212, 4
      %v1214 = vrot.slane %v260, 5
      %v1215 = vsel %vm1169, %v1213, %v1214
      %v1216 = vrot.slane %v1214, 4
      %v1217 = vrot.slane %v282, 5
      %v1218 = vsel %vm1169, %v1216, %v1217
      %v1219 = vrot.slane %v1132, 5
      %v1220 = vrot.slane %v1219, 4
      %v1221 = vrot.slane %v262, 5
      %v1222 = vsel %vm1169, %v1220, %v1221
      %v1223 = vrot.slane %v1221, 4
      %v1224 = vrot.slane %v283, 5
      %v1225 = vsel %vm1169, %v1223, %v1224
      %v1226 = vrot.slane %v1133, 5
      %v1227 = vrot.slane %v1226, 4
      %v1228 = vrot.slane %v264, 5
      %v1229 = vsel %vm1169, %v1227, %v1228
      %v1230 = vrot.slane %v1228, 4
      %v1231 = vrot.slane %v284, 5
      %v1232 = vsel %vm1169, %v1230, %v1231
      %v1233 = vrot.slane %v1134, 5
      %v1234 = vrot.slane %v1233, 4
      %v1235 = vrot.slane %v266, 5
      %v1236 = vsel %vm1169, %v1234, %v1235
      %v1237 = vrot.slane %v1235, 4
      %v1238 = vrot.slane %v285, 5
      %v1239 = vsel %vm1169, %v1237, %v1238
      %v1240 = vrot.slane %v1135, 5
      %v1241 = vrot.slane %v1240, 4
      %v1242 = vrot.slane %v268, 5
      %v1243 = vsel %vm1169, %v1241, %v1242
      %v1244 = vrot.slane %v1242, 4
      %v1245 = vrot.slane %v286, 5
      %v1246 = vsel %vm1169, %v1244, %v1245
      %v1247 = vrot.slane %v1136, 5
      %v1248 = vrot.slane %v1247, 4
      %v1249 = vrot.slane %v270, 5
      %v1250 = vsel %vm1169, %v1248, %v1249
      %v1251 = vrot.slane %v1249, 4
      %v1252 = vrot.slane %v287, 5
      %v1253 = vsel %vm1169, %v1251, %v1252
      %v1254 = vrot.slane %v1137, 5
      %v1255 = vrot.slane %v1254, 4
      %v1256 = vrot.slane %v272, 5
      %v1257 = vsel %vm1169, %v1255, %v1256
      %v1258 = vrot.slane %v1256, 4
      %v1259 = vrot.slane %v288, 5
      %v1260 = vsel %vm1169, %v1258, %v1259
      %v1261 = vrot.slane %v1138, 5
      %v1262 = vrot.slane %v1261, 4
      %v1263 = vrot.slane %v274, 5
      %v1264 = vsel %vm1169, %v1262, %v1263
      %v1265 = vrot.slane %v1263, 4
      %v1266 = vrot.slane %v289, 5
      %v1267 = vsel %vm1169, %v1265, %v1266
      %s1268 = scalar_lea.vmem %s224, 4
      %v1269 = vld [vmem:[%s1268] sm:$0x3]
      %v1270 = vunpack.c.l.b16 %v1173
      %v1271 = vunpack.c.l.b16 %v1176
      %v1272 = vunpack.c.l.b16 %v1180
      %v1273 = vunpack.c.l.b16 %v1183
      %v1274 = vunpack.c.l.b16 %v1187
      %v1275 = vunpack.c.l.b16 %v1190
      %v1276 = vunpack.c.l.b16 %v1194
      %v1277 = vunpack.c.l.b16 %v1197
      %v1278 = vunpack.c.l.b16 %v1201
      %v1279 = vunpack.c.l.b16 %v1204
      %v1280 = vunpack.c.l.b16 %v1208
      %v1281 = vunpack.c.l.b16 %v1211
      %v1282 = vunpack.c.l.b16 %v1215
      %v1283 = vunpack.c.l.b16 %v1218
      %v1284 = vunpack.c.l.b16 %v1222
      %v1285 = vunpack.c.l.b16 %v1225
      %v1286 = vunpack.c.l.b16 %v1229
      %v1287 = vunpack.c.l.b16 %v1232
      %v1288 = vunpack.c.l.b16 %v1236
      %v1289 = vunpack.c.l.b16 %v1239
      %v1290 = vunpack.c.l.b16 %v1243
      %v1291 = vunpack.c.l.b16 %v1246
      %v1292 = vunpack.c.l.b16 %v1250
      %v1293 = vunpack.c.l.b16 %v1253
      %v1294 = vunpack.c.l.b16 %v1257
      %v1295 = vunpack.c.l.b16 %v1260
      %v1296 = vunpack.c.l.b16 %v1264
      %v1297 = vunpack.c.l.b16 %v1267
      %v1298 = vpack.c.b16 %v1271, %v1270
      %v1299 = vpack.c.b16 %v1273, %v1272
      %v1300 = vpack.c.b16 %v1275, %v1274
      %v1301 = vpack.c.b16 %v1277, %v1276
      %v1302 = vpack.c.b16 %v1279, %v1278
      %v1303 = vpack.c.b16 %v1281, %v1280
      %v1304 = vpack.c.b16 %v1283, %v1282
      %v1305 = vpack.c.b16 %v1285, %v1284
      %v1306 = vpack.c.b16 %v1287, %v1286
      %v1307 = vpack.c.b16 %v1289, %v1288
      %v1308 = vpack.c.b16 %v1291, %v1290
      %v1309 = vpack.c.b16 %v1293, %v1292
      %v1310 = vpack.c.b16 %v1295, %v1294
      %v1311 = vpack.c.b16 %v1297, %v1296
      %v1313 = vsel %vm673, %v1298, 0
      %v1316 = vsel %vm673, %v1299, 0
      %v1319 = vsel %vm673, %v1300, 0
      %v1322 = vsel %vm673, %v1301, 0
      %v1325 = vsel %vm673, %v1302, 0
      %v1328 = vsel %vm673, %v1303, 0
      %v1331 = vsel %vm673, %v1304, 0
      %v1334 = vsel %vm673, %v1305, 0
      %v1337 = vsel %vm673, %v1306, 0
      %v1340 = vsel %vm673, %v1307, 0
      %v1343 = vsel %vm673, %v1308, 0
      %v1346 = vsel %vm673, %v1309, 0
      %v1349 = vsel %vm673, %v1310, 0
      %v1352 = vsel %vm673, %v1311, 0
      %v1355 = vsel %vm716, %v1269, 0
      %1357 = vmatprep.subr.bf16.mxu0 0
      %1358 = vmatpush1.bf16.msra.mxu0 %v1355
      %1359 = vmatprep.subr.bf16.mxu0 0
      %1360 = vmatpush1.bf16.msra.mxu0 0
      %1361 = vmatprep.subr.bf16.mxu0 0
      %1362 = vmatpush1.bf16.msra.mxu0 0
      %1363 = vmatprep.subr.bf16.mxu0 0
      %1364 = vmatpush1.bf16.msra.mxu0 0
      %1365 = vmatprep.subr.bf16.mxu0 0
      %1366 = vmatpush1.bf16.msra.mxu0 0
      %1367 = vmatprep.subr.bf16.mxu0 0
      %1368 = vmatpush1.bf16.msra.mxu0 0
      %1369 = vmatprep.subr.bf16.mxu0 0
      %1370 = vmatpush1.bf16.msra.mxu0 0
      %1371 = vmatprep.subr.bf16.mxu0 0
      %1372 = vmatpush1.bf16.msra.mxu0 0
      %1373 = vmatprep.subr.bf16.mxu0 0
      %1374 = vmatpush1.bf16.msra.mxu0 0
      %1375 = vmatprep.subr.bf16.mxu0 0
      %1376 = vmatpush1.bf16.msra.mxu0 0
      %1377 = vmatprep.subr.bf16.mxu0 0
      %1378 = vmatpush1.bf16.msra.mxu0 0
      %1379 = vmatprep.subr.bf16.mxu0 0
      %1380 = vmatpush1.bf16.msra.mxu0 0
      %1381 = vmatprep.subr.bf16.mxu0 0
      %1382 = vmatpush1.bf16.msra.mxu0 0
      %1383 = vmatprep.subr.bf16.mxu0 0
      %1384 = vmatpush1.bf16.msra.mxu0 0
      %1385 = vmatprep.subr.bf16.mxu0 0
      %1386 = vmatpush1.bf16.msra.mxu0 0
      %1387 = vmatprep.subr.bf16.mxu0 0
      %1388 = vmatpush1.bf16.msra.mxu0 0
      %1389 = vmatprep.mubr.bf16.mxu0 0
      %1390 = vmatmul.mubr.bf16.gmra.mrb[0].mxu0 %v1313
      %v1391 = vpop.f32.mrb[0].mxu0
      %v1392 = vadd.f32 0.0, %v1391
      %v1393 = vpop.f32.mrb[0].mxu0
      %v1394 = vpop.f32.mrb[0].mxu0
      %v1395 = vadd.f32 0.0, %v1394
      %v1396 = vpop.f32.mrb[0].mxu0
      %1397 = vmatprep.mubr.bf16.mxu0 0
      %1398 = vmatmul.mubr.bf16.gmra.mrb[0].mxu0 %v1316
      %v1399 = vpop.f32.mrb[0].mxu0
      %v1400 = vadd.f32 0.0, %v1399
      %v1401 = vpop.f32.mrb[0].mxu0
      %v1402 = vpop.f32.mrb[0].mxu0
      %v1403 = vadd.f32 0.0, %v1402
      %v1404 = vpop.f32.mrb[0].mxu0
      %1405 = vmatprep.mubr.bf16.mxu0 0
      %1406 = vmatmul.mubr.bf16.gmra.mrb[0].mxu0 %v1319
      %v1407 = vpop.f32.mrb[0].mxu0
      %v1408 = vadd.f32 0.0, %v1407
      %v1409 = vpop.f32.mrb[0].mxu0
      %v1410 = vpop.f32.mrb[0].mxu0
      %v1411 = vadd.f32 0.0, %v1410
      %v1412 = vpop.f32.mrb[0].mxu0
      %1413 = vmatprep.mubr.bf16.mxu0 0
      %1414 = vmatmul.mubr.bf16.gmra.mrb[0].mxu0 %v1322
      %v1415 = vpop.f32.mrb[0].mxu0
      %v1416 = vadd.f32 0.0, %v1415
      %v1417 = vpop.f32.mrb[0].mxu0
      %v1418 = vpop.f32.mrb[0].mxu0
      %v1419 = vadd.f32 0.0, %v1418
      %v1420 = vpop.f32.mrb[0].mxu0
      %1421 = vmatprep.mubr.bf16.mxu0 0
      %1422 = vmatmul.mubr.bf16.gmra.mrb[0].mxu0 %v1325
      %v1423 = vpop.f32.mrb[0].mxu0
      %v1424 = vadd.f32 0.0, %v1423
      %v1425 = vpop.f32.mrb[0].mxu0
      %v1426 = vpop.f32.mrb[0].mxu0
      %v1427 = vadd.f32 0.0, %v1426
      %v1428 = vpop.f32.mrb[0].mxu0
      %1429 = vmatprep.mubr.bf16.mxu0 0
      %1430 = vmatmul.mubr.bf16.gmra.mrb[0].mxu0 %v1328
      %v1431 = vpop.f32.mrb[0].mxu0
      %v1432 = vadd.f32 0.0, %v1431
      %v1433 = vpop.f32.mrb[0].mxu0
      %v1434 = vpop.f32.mrb[0].mxu0
      %v1435 = vadd.f32 0.0, %v1434
      %v1436 = vpop.f32.mrb[0].mxu0
      %1437 = vmatprep.mubr.bf16.mxu0 0
      %1438 = vmatmul.mubr.bf16.gmra.mrb[0].mxu0 %v1331
      %v1439 = vpop.f32.mrb[0].mxu0
      %v1440 = vadd.f32 0.0, %v1439
      %v1441 = vpop.f32.mrb[0].mxu0
      %v1442 = vpop.f32.mrb[0].mxu0
      %v1443 = vadd.f32 0.0, %v1442
      %v1444 = vpop.f32.mrb[0].mxu0
      %1445 = vmatprep.mubr.bf16.mxu0 0
      %1446 = vmatmul.mubr.bf16.gmra.mrb[0].mxu0 %v1334
      %v1447 = vpop.f32.mrb[0].mxu0
      %v1448 = vadd.f32 0.0, %v1447
      %v1449 = vpop.f32.mrb[0].mxu0
      %v1450 = vpop.f32.mrb[0].mxu0
      %v1451 = vadd.f32 0.0, %v1450
      %v1452 = vpop.f32.mrb[0].mxu0
      %1453 = vmatprep.mubr.bf16.mxu0 0
      %1454 = vmatmul.mubr.bf16.gmra.mrb[0].mxu0 %v1337
      %v1455 = vpop.f32.mrb[0].mxu0
      %v1456 = vadd.f32 0.0, %v1455
      %v1457 = vpop.f32.mrb[0].mxu0
      %v1458 = vpop.f32.mrb[0].mxu0
      %v1459 = vadd.f32 0.0, %v1458
      %v1460 = vpop.f32.mrb[0].mxu0
      %1461 = vmatprep.mubr.bf16.mxu0 0
      %1462 = vmatmul.mubr.bf16.gmra.mrb[0].mxu0 %v1340
      %v1463 = vpop.f32.mrb[0].mxu0
      %v1464 = vadd.f32 0.0, %v1463
      %v1465 = vpop.f32.mrb[0].mxu0
      %v1466 = vpop.f32.mrb[0].mxu0
      %v1467 = vadd.f32 0.0, %v1466
      %v1468 = vpop.f32.mrb[0].mxu0
      %1469 = vmatprep.mubr.bf16.mxu0 0
      %1470 = vmatmul.mubr.bf16.gmra.mrb[0].mxu0 %v1343
      %v1471 = vpop.f32.mrb[0].mxu0
      %v1472 = vadd.f32 0.0, %v1471
      %v1473 = vpop.f32.mrb[0].mxu0
      %v1474 = vpop.f32.mrb[0].mxu0
      %v1475 = vadd.f32 0.0, %v1474
      %v1476 = vpop.f32.mrb[0].mxu0
      %1477 = vmatprep.mubr.bf16.mxu0 0
      %1478 = vmatmul.mubr.bf16.gmra.mrb[0].mxu0 %v1346
      %v1479 = vpop.f32.mrb[0].mxu0
      %v1480 = vadd.f32 0.0, %v1479
      %v1481 = vpop.f32.mrb[0].mxu0
      %v1482 = vpop.f32.mrb[0].mxu0
      %v1483 = vadd.f32 0.0, %v1482
      %v1484 = vpop.f32.mrb[0].mxu0
      %1485 = vmatprep.mubr.bf16.mxu0 0
      %1486 = vmatmul.mubr.bf16.gmra.mrb[0].mxu0 %v1349
      %v1487 = vpop.f32.mrb[0].mxu0
      %v1488 = vadd.f32 0.0, %v1487
      %v1489 = vpop.f32.mrb[0].mxu0
      %v1490 = vpop.f32.mrb[0].mxu0
      %v1491 = vadd.f32 0.0, %v1490
      %v1492 = vpop.f32.mrb[0].mxu0
      %1493 = vmatprep.mubr.bf16.mxu0 0
      %1494 = vmatmul.mubr.bf16.gmra.mrb[0].mxu0 %v1352
      %v1495 = vpop.f32.mrb[0].mxu0
      %v1496 = vadd.f32 0.0, %v1495
      %v1497 = vpop.f32.mrb[0].mxu0
      %v1498 = vpop.f32.mrb[0].mxu0
      %v1499 = vadd.f32 0.0, %v1498
      %v1500 = vpop.f32.mrb[0].mxu0
      %1501 = vdwg.mxu0
      %v1502 = vadd.f32 %v1015, %v1392
      %v1503 = vadd.f32 %v1018, %v1395
      %v1504 = vadd.f32 %v1023, %v1400
      %v1505 = vadd.f32 %v1026, %v1403
      %v1506 = vadd.f32 %v1031, %v1408
      %v1507 = vadd.f32 %v1034, %v1411
      %v1508 = vadd.f32 %v1039, %v1416
      %v1509 = vadd.f32 %v1042, %v1419
      %v1510 = vadd.f32 %v1047, %v1424
      %v1511 = vadd.f32 %v1050, %v1427
      %v1512 = vadd.f32 %v1055, %v1432
      %v1513 = vadd.f32 %v1058, %v1435
      %v1514 = vadd.f32 %v1063, %v1440
      %v1515 = vadd.f32 %v1066, %v1443
      %v1516 = vadd.f32 %v1071, %v1448
      %v1517 = vadd.f32 %v1074, %v1451
      %v1518 = vadd.f32 %v1079, %v1456
      %v1519 = vadd.f32 %v1082, %v1459
      %v1520 = vadd.f32 %v1087, %v1464
      %v1521 = vadd.f32 %v1090, %v1467
      %v1522 = vadd.f32 %v1095, %v1472
      %v1523 = vadd.f32 %v1098, %v1475
      %v1524 = vadd.f32 %v1103, %v1480
      %v1525 = vadd.f32 %v1106, %v1483
      %v1526 = vadd.f32 %v1111, %v1488
      %v1527 = vadd.f32 %v1114, %v1491
      %v1528 = vadd.f32 %v1119, %v1496
      %v1529 = vadd.f32 %v1122, %v1499
      %s1530 = sadd.s32 %s243, 1
      %s1531 = smul.u32 %s1530, 3
      %s1532 = smul.addr %s1531, 4
      %s1533 = scalar_lea.vmem %s220, %s1532
      %v1534 = vld [vmem:[%s1533] sm:$0xf]
      %v1535 = vld [vmem:[%s1533 + $0x4] sm:$0xf]
      %v1536 = vld [vmem:[%s1533 + $0xc] sm:$0xf]
      %v1537 = vld [vmem:[%s1533 + $0x10] sm:$0xf]
      %v1538 = vld [vmem:[%s1533 + $0x18] sm:$0xf]
      %v1539 = vld [vmem:[%s1533 + $0x1c] sm:$0xf]
      %v1540 = vld [vmem:[%s1533 + $0x24] sm:$0xf]
      %v1541 = vld [vmem:[%s1533 + $0x28] sm:$0xf]
      %v1542 = vld [vmem:[%s1533 + $0x30] sm:$0xf]
      %v1543 = vld [vmem:[%s1533 + $0x34] sm:$0xf]
      %v1544 = vld [vmem:[%s1533 + $0x3c] sm:$0xf]
      %v1545 = vld [vmem:[%s1533 + $0x40] sm:$0xf]
      %v1546 = vld [vmem:[%s1533 + $0x48] sm:$0xf]
      %v1547 = vld [vmem:[%s1533 + $0x4c] sm:$0xf]
      %v1548 = vld [vmem:[%s1533 + $0x54] sm:$0xf]
      %v1549 = vld [vmem:[%s1533 + $0x58] sm:$0xf]
      %v1550 = vld [vmem:[%s1533 + $0x60] sm:$0xf]
      %v1551 = vld [vmem:[%s1533 + $0x64] sm:$0xf]
      %v1552 = vld [vmem:[%s1533 + $0x6c] sm:$0xf]
      %v1553 = vld [vmem:[%s1533 + $0x70] sm:$0xf]
      %v1554 = vld [vmem:[%s1533 + $0x78] sm:$0xf]
      %v1555 = vld [vmem:[%s1533 + $0x7c] sm:$0xf]
      %v1556 = vld [vmem:[%s1533 + $0x84] sm:$0xf]
      %v1557 = vld [vmem:[%s1533 + $0x88] sm:$0xf]
      %v1558 = vld [vmem:[%s1533 + $0x90] sm:$0xf]
      %v1559 = vld [vmem:[%s1533 + $0x94] sm:$0xf]
      %v1560 = vld [vmem:[%s1533 + $0x9c] sm:$0xf]
      %v1561 = vld [vmem:[%s1533 + $0xa0] sm:$0xf]
      %s1562 = scalar_lea.vmem %s224, 6
      %v1563 = vld [vmem:[%s1562] sm:$0x3]
      %v1592 = vunpack.c.l.b16 %v1534
      %v1593 = vunpack.c.l.b16 %v1535
      %v1594 = vunpack.c.l.b16 %v1536
      %v1595 = vunpack.c.l.b16 %v1537
      %v1596 = vunpack.c.l.b16 %v1538
      %v1597 = vunpack.c.l.b16 %v1539
      %v1598 = vunpack.c.l.b16 %v1540
      %v1599 = vunpack.c.l.b16 %v1541
      %v1600 = vunpack.c.l.b16 %v1542
      %v1601 = vunpack.c.l.b16 %v1543
      %v1602 = vunpack.c.l.b16 %v1544
      %v1603 = vunpack.c.l.b16 %v1545
      %v1604 = vunpack.c.l.b16 %v1546
      %v1605 = vunpack.c.l.b16 %v1547
      %v1606 = vunpack.c.l.b16 %v1548
      %v1607 = vunpack.c.l.b16 %v1549
      %v1608 = vunpack.c.l.b16 %v1550
      %v1609 = vunpack.c.l.b16 %v1551
      %v1610 = vunpack.c.l.b16 %v1552
      %v1611 = vunpack.c.l.b16 %v1553
      %v1612 = vunpack.c.l.b16 %v1554
      %v1613 = vunpack.c.l.b16 %v1555
      %v1614 = vunpack.c.l.b16 %v1556
      %v1615 = vunpack.c.l.b16 %v1557
      %v1616 = vunpack.c.l.b16 %v1558
      %v1617 = vunpack.c.l.b16 %v1559
      %v1618 = vunpack.c.l.b16 %v1560
      %v1619 = vunpack.c.l.b16 %v1561
      %v1620 = vpack.c.b16 %v1593, %v1592
      %v1621 = vpack.c.b16 %v1595, %v1594
      %v1622 = vpack.c.b16 %v1597, %v1596
      %v1623 = vpack.c.b16 %v1599, %v1598
      %v1624 = vpack.c.b16 %v1601, %v1600
      %v1625 = vpack.c.b16 %v1603, %v1602
      %v1626 = vpack.c.b16 %v1605, %v1604
      %v1627 = vpack.c.b16 %v1607, %v1606
      %v1628 = vpack.c.b16 %v1609, %v1608
      %v1629 = vpack.c.b16 %v1611, %v1610
      %v1630 = vpack.c.b16 %v1613, %v1612
      %v1631 = vpack.c.b16 %v1615, %v1614
      %v1632 = vpack.c.b16 %v1617, %v1616
      %v1633 = vpack.c.b16 %v1619, %v1618
      %v1635 = vsel %vm673, %v1620, 0
      %v1638 = vsel %vm673, %v1621, 0
      %v1641 = vsel %vm673, %v1622, 0
      %v1644 = vsel %vm673, %v1623, 0
      %v1647 = vsel %vm673, %v1624, 0
      %v1650 = vsel %vm673, %v1625, 0
      %v1653 = vsel %vm673, %v1626, 0
      %v1656 = vsel %vm673, %v1627, 0
      %v1659 = vsel %vm673, %v1628, 0
      %v1662 = vsel %vm673, %v1629, 0
      %v1665 = vsel %vm673, %v1630, 0
      %v1668 = vsel %vm673, %v1631, 0
      %v1671 = vsel %vm673, %v1632, 0
      %v1674 = vsel %vm673, %v1633, 0
      %v1677 = vsel %vm716, %v1563, 0
      %1679 = vmatprep.subr.bf16.mxu0 0
      %1680 = vmatpush1.bf16.msra.mxu0 %v1677
      %1681 = vmatprep.subr.bf16.mxu0 0
      %1682 = vmatpush1.bf16.msra.mxu0 0
      %1683 = vmatprep.subr.bf16.mxu0 0
      %1684 = vmatpush1.bf16.msra.mxu0 0
      %1685 = vmatprep.subr.bf16.mxu0 0
      %1686 = vmatpush1.bf16.msra.mxu0 0
      %1687 = vmatprep.subr.bf16.mxu0 0
      %1688 = vmatpush1.bf16.msra.mxu0 0
      %1689 = vmatprep.subr.bf16.mxu0 0
      %1690 = vmatpush1.bf16.msra.mxu0 0
      %1691 = vmatprep.subr.bf16.mxu0 0
      %1692 = vmatpush1.bf16.msra.mxu0 0
      %1693 = vmatprep.subr.bf16.mxu0 0
      %1694 = vmatpush1.bf16.msra.mxu0 0
      %1695 = vmatprep.subr.bf16.mxu0 0
      %1696 = vmatpush1.bf16.msra.mxu0 0
      %1697 = vmatprep.subr.bf16.mxu0 0
      %1698 = vmatpush1.bf16.msra.mxu0 0
      %1699 = vmatprep.subr.bf16.mxu0 0
      %1700 = vmatpush1.bf16.msra.mxu0 0
      %1701 = vmatprep.subr.bf16.mxu0 0
      %1702 = vmatpush1.bf16.msra.mxu0 0
      %1703 = vmatprep.subr.bf16.mxu0 0
      %1704 = vmatpush1.bf16.msra.mxu0 0
      %1705 = vmatprep.subr.bf16.mxu0 0
      %1706 = vmatpush1.bf16.msra.mxu0 0
      %1707 = vmatprep.subr.bf16.mxu0 0
      %1708 = vmatpush1.bf16.msra.mxu0 0
      %1709 = vmatprep.subr.bf16.mxu0 0
      %1710 = vmatpush1.bf16.msra.mxu0 0
      %1711 = vmatprep.mubr.bf16.mxu0 0
      %1712 = vmatmul.mubr.bf16.gmra.mrb[0].mxu0 %v1635
      %v1713 = vpop.f32.mrb[0].mxu0
      %v1714 = vadd.f32 0.0, %v1713
      %v1715 = vpop.f32.mrb[0].mxu0
      %v1716 = vpop.f32.mrb[0].mxu0
      %v1717 = vadd.f32 0.0, %v1716
      %v1718 = vpop.f32.mrb[0].mxu0
      %1719 = vmatprep.mubr.bf16.mxu0 0
      %1720 = vmatmul.mubr.bf16.gmra.mrb[0].mxu0 %v1638
      %v1721 = vpop.f32.mrb[0].mxu0
      %v1722 = vadd.f32 0.0, %v1721
      %v1723 = vpop.f32.mrb[0].mxu0
      %v1724 = vpop.f32.mrb[0].mxu0
      %v1725 = vadd.f32 0.0, %v1724
      %v1726 = vpop.f32.mrb[0].mxu0
      %1727 = vmatprep.mubr.bf16.mxu0 0
      %1728 = vmatmul.mubr.bf16.gmra.mrb[0].mxu0 %v1641
      %v1729 = vpop.f32.mrb[0].mxu0
      %v1730 = vadd.f32 0.0, %v1729
      %v1731 = vpop.f32.mrb[0].mxu0
      %v1732 = vpop.f32.mrb[0].mxu0
      %v1733 = vadd.f32 0.0, %v1732
      %v1734 = vpop.f32.mrb[0].mxu0
      %1735 = vmatprep.mubr.bf16.mxu0 0
      %1736 = vmatmul.mubr.bf16.gmra.mrb[0].mxu0 %v1644
      %v1737 = vpop.f32.mrb[0].mxu0
      %v1738 = vadd.f32 0.0, %v1737
      %v1739 = vpop.f32.mrb[0].mxu0
      %v1740 = vpop.f32.mrb[0].mxu0
      %v1741 = vadd.f32 0.0, %v1740
      %v1742 = vpop.f32.mrb[0].mxu0
      %1743 = vmatprep.mubr.bf16.mxu0 0
      %1744 = vmatmul.mubr.bf16.gmra.mrb[0].mxu0 %v1647
      %v1745 = vpop.f32.mrb[0].mxu0
      %v1746 = vadd.f32 0.0, %v1745
      %v1747 = vpop.f32.mrb[0].mxu0
      %v1748 = vpop.f32.mrb[0].mxu0
      %v1749 = vadd.f32 0.0, %v1748
      %v1750 = vpop.f32.mrb[0].mxu0
      %1751 = vmatprep.mubr.bf16.mxu0 0
      %1752 = vmatmul.mubr.bf16.gmra.mrb[0].mxu0 %v1650
      %v1753 = vpop.f32.mrb[0].mxu0
      %v1754 = vadd.f32 0.0, %v1753
      %v1755 = vpop.f32.mrb[0].mxu0
      %v1756 = vpop.f32.mrb[0].mxu0
      %v1757 = vadd.f32 0.0, %v1756
      %v1758 = vpop.f32.mrb[0].mxu0
      %1759 = vmatprep.mubr.bf16.mxu0 0
      %1760 = vmatmul.mubr.bf16.gmra.mrb[0].mxu0 %v1653
      %v1761 = vpop.f32.mrb[0].mxu0
      %v1762 = vadd.f32 0.0, %v1761
      %v1763 = vpop.f32.mrb[0].mxu0
      %v1764 = vpop.f32.mrb[0].mxu0
      %v1765 = vadd.f32 0.0, %v1764
      %v1766 = vpop.f32.mrb[0].mxu0
      %1767 = vmatprep.mubr.bf16.mxu0 0
      %1768 = vmatmul.mubr.bf16.gmra.mrb[0].mxu0 %v1656
      %v1769 = vpop.f32.mrb[0].mxu0
      %v1770 = vadd.f32 0.0, %v1769
      %v1771 = vpop.f32.mrb[0].mxu0
      %v1772 = vpop.f32.mrb[0].mxu0
      %v1773 = vadd.f32 0.0, %v1772
      %v1774 = vpop.f32.mrb[0].mxu0
      %1775 = vmatprep.mubr.bf16.mxu0 0
      %1776 = vmatmul.mubr.bf16.gmra.mrb[0].mxu0 %v1659
      %v1777 = vpop.f32.mrb[0].mxu0
      %v1778 = vadd.f32 0.0, %v1777
      %v1779 = vpop.f32.mrb[0].mxu0
      %v1780 = vpop.f32.mrb[0].mxu0
      %v1781 = vadd.f32 0.0, %v1780
      %v1782 = vpop.f32.mrb[0].mxu0
      %1783 = vmatprep.mubr.bf16.mxu0 0
      %1784 = vmatmul.mubr.bf16.gmra.mrb[0].mxu0 %v1662
      %v1785 = vpop.f32.mrb[0].mxu0
      %v1786 = vadd.f32 0.0, %v1785
      %v1787 = vpop.f32.mrb[0].mxu0
      %v1788 = vpop.f32.mrb[0].mxu0
      %v1789 = vadd.f32 0.0, %v1788
      %v1790 = vpop.f32.mrb[0].mxu0
      %1791 = vmatprep.mubr.bf16.mxu0 0
      %1792 = vmatmul.mubr.bf16.gmra.mrb[0].mxu0 %v1665
      %v1793 = vpop.f32.mrb[0].mxu0
      %v1794 = vadd.f32 0.0, %v1793
      %v1795 = vpop.f32.mrb[0].mxu0
      %v1796 = vpop.f32.mrb[0].mxu0
      %v1797 = vadd.f32 0.0, %v1796
      %v1798 = vpop.f32.mrb[0].mxu0
      %1799 = vmatprep.mubr.bf16.mxu0 0
      %1800 = vmatmul.mubr.bf16.gmra.mrb[0].mxu0 %v1668
      %v1801 = vpop.f32.mrb[0].mxu0
      %v1802 = vadd.f32 0.0, %v1801
      %v1803 = vpop.f32.mrb[0].mxu0
      %v1804 = vpop.f32.mrb[0].mxu0
      %v1805 = vadd.f32 0.0, %v1804
      %v1806 = vpop.f32.mrb[0].mxu0
      %1807 = vmatprep.mubr.bf16.mxu0 0
      %1808 = vmatmul.mubr.bf16.gmra.mrb[0].mxu0 %v1671
      %v1809 = vpop.f32.mrb[0].mxu0
      %v1810 = vadd.f32 0.0, %v1809
      %v1811 = vpop.f32.mrb[0].mxu0
      %v1812 = vpop.f32.mrb[0].mxu0
      %v1813 = vadd.f32 0.0, %v1812
      %v1814 = vpop.f32.mrb[0].mxu0
      %1815 = vmatprep.mubr.bf16.mxu0 0
      %1816 = vmatmul.mubr.bf16.gmra.mrb[0].mxu0 %v1674
      %v1817 = vpop.f32.mrb[0].mxu0
      %v1818 = vadd.f32 0.0, %v1817
      %v1819 = vpop.f32.mrb[0].mxu0
      %v1820 = vpop.f32.mrb[0].mxu0
      %v1821 = vadd.f32 0.0, %v1820
      %v1822 = vpop.f32.mrb[0].mxu0
      %1823 = vdwg.mxu0
      %v1824 = vadd.f32 %v1502, %v1714
      %v1825 = vadd.f32 %v1503, %v1717
      %v1826 = vadd.f32 %v1504, %v1722
      %v1827 = vadd.f32 %v1505, %v1725
      %v1828 = vadd.f32 %v1506, %v1730
      %v1829 = vadd.f32 %v1507, %v1733
      %v1830 = vadd.f32 %v1508, %v1738
      %v1831 = vadd.f32 %v1509, %v1741
      %v1832 = vadd.f32 %v1510, %v1746
      %v1833 = vadd.f32 %v1511, %v1749
      %v1834 = vadd.f32 %v1512, %v1754
      %v1835 = vadd.f32 %v1513, %v1757
      %v1836 = vadd.f32 %v1514, %v1762
      %v1837 = vadd.f32 %v1515, %v1765
      %v1838 = vadd.f32 %v1516, %v1770
      %v1839 = vadd.f32 %v1517, %v1773
      %v1840 = vadd.f32 %v1518, %v1778
      %v1841 = vadd.f32 %v1519, %v1781
      %v1842 = vadd.f32 %v1520, %v1786
      %v1843 = vadd.f32 %v1521, %v1789
      %v1844 = vadd.f32 %v1522, %v1794
      %v1845 = vadd.f32 %v1523, %v1797
      %v1846 = vadd.f32 %v1524, %v1802
      %v1847 = vadd.f32 %v1525, %v1805
      %v1848 = vadd.f32 %v1526, %v1810
      %v1849 = vadd.f32 %v1527, %v1813
      %v1850 = vadd.f32 %v1528, %v1818
      %v1851 = vadd.f32 %v1529, %v1821
      %v1852 = vld [vmem:[%s1533] sm:$0xf]
      %v1853 = vld [vmem:[%s1533 + $0x4] sm:$0xf]
      %v1854 = vld [vmem:[%s1533 + $0x8] sm:$0x1]
      %v1855 = vld [vmem:[%s1533 + $0xc] sm:$0xf]
      %v1856 = vld [vmem:[%s1533 + $0x10] sm:$0xf]
      %v1857 = vld [vmem:[%s1533 + $0x14] sm:$0x1]
      %v1858 = vld [vmem:[%s1533 + $0x18] sm:$0xf]
      %v1859 = vld [vmem:[%s1533 + $0x1c] sm:$0xf]
      %v1860 = vld [vmem:[%s1533 + $0x20] sm:$0x1]
      %v1861 = vld [vmem:[%s1533 + $0x24] sm:$0xf]
      %v1862 = vld [vmem:[%s1533 + $0x28] sm:$0xf]
      %v1863 = vld [vmem:[%s1533 + $0x2c] sm:$0x1]
      %v1864 = vld [vmem:[%s1533 + $0x30] sm:$0xf]
      %v1865 = vld [vmem:[%s1533 + $0x34] sm:$0xf]
      %v1866 = vld [vmem:[%s1533 + $0x38] sm:$0x1]
      %v1867 = vld [vmem:[%s1533 + $0x3c] sm:$0xf]
      %v1868 = vld [vmem:[%s1533 + $0x40] sm:$0xf]
      %v1869 = vld [vmem:[%s1533 + $0x44] sm:$0x1]
      %v1870 = vld [vmem:[%s1533 + $0x48] sm:$0xf]
      %v1871 = vld [vmem:[%s1533 + $0x4c] sm:$0xf]
      %v1872 = vld [vmem:[%s1533 + $0x50] sm:$0x1]
      %v1873 = vld [vmem:[%s1533 + $0x54] sm:$0xf]
      %v1874 = vld [vmem:[%s1533 + $0x58] sm:$0xf]
      %v1875 = vld [vmem:[%s1533 + $0x5c] sm:$0x1]
      %v1876 = vld [vmem:[%s1533 + $0x60] sm:$0xf]
      %v1877 = vld [vmem:[%s1533 + $0x64] sm:$0xf]
      %v1878 = vld [vmem:[%s1533 + $0x68] sm:$0x1]
      %v1879 = vld [vmem:[%s1533 + $0x6c] sm:$0xf]
      %v1880 = vld [vmem:[%s1533 + $0x70] sm:$0xf]
      %v1881 = vld [vmem:[%s1533 + $0x74] sm:$0x1]
      %v1882 = vld [vmem:[%s1533 + $0x78] sm:$0xf]
      %v1883 = vld [vmem:[%s1533 + $0x7c] sm:$0xf]
      %v1884 = vld [vmem:[%s1533 + $0x80] sm:$0x1]
      %v1885 = vld [vmem:[%s1533 + $0x84] sm:$0xf]
      %v1886 = vld [vmem:[%s1533 + $0x88] sm:$0xf]
      %v1887 = vld [vmem:[%s1533 + $0x8c] sm:$0x1]
      %v1888 = vld [vmem:[%s1533 + $0x90] sm:$0xf]
      %v1889 = vld [vmem:[%s1533 + $0x94] sm:$0xf]
      %v1890 = vld [vmem:[%s1533 + $0x98] sm:$0x1]
      %v1891 = vld [vmem:[%s1533 + $0x9c] sm:$0xf]
      %v1892 = vld [vmem:[%s1533 + $0xa0] sm:$0xf]
      %v1893 = vld [vmem:[%s1533 + $0xa4] sm:$0x1]
      %v1895 = vshrl.u32 %v1852, 16
      %v1897 = vrot.slane %v1895, 4
      %v1898 = vshll.u32 %v1852, 16
      %v1900 = vrot.slane %v1898, 5
      %v1901 = vor.u32 %v1897, %v1900
      %v1902 = vrot.slane %v1901, 4
      %v1904 = vshll.u32 %v1853, 16
      %v1906 = vrot.slane %v1904, 5
      %v1907 = vsel %vm292, %v1902, %v1906
      %v1908 = vshrl.u32 %v1853, 16
      %v1910 = vrot.slane %v1908, 4
      %v1911 = vor.u32 %v1910, %v1906
      %v1912 = vrot.slane %v1911, 4
      %v1914 = vshll.u32 %v1854, 16
      %v1916 = vrot.slane %v1914, 5
      %v1917 = vsel %vm292, %v1912, %v1916
      %v1919 = vshrl.u32 %v1855, 16
      %v1921 = vrot.slane %v1919, 4
      %v1922 = vshll.u32 %v1855, 16
      %v1924 = vrot.slane %v1922, 5
      %v1925 = vor.u32 %v1921, %v1924
      %v1926 = vrot.slane %v1925, 4
      %v1928 = vshll.u32 %v1856, 16
      %v1930 = vrot.slane %v1928, 5
      %v1931 = vsel %vm292, %v1926, %v1930
      %v1932 = vshrl.u32 %v1856, 16
      %v1934 = vrot.slane %v1932, 4
      %v1935 = vor.u32 %v1934, %v1930
      %v1936 = vrot.slane %v1935, 4
      %v1938 = vshll.u32 %v1857, 16
      %v1940 = vrot.slane %v1938, 5
      %v1941 = vsel %vm292, %v1936, %v1940
      %v1943 = vshrl.u32 %v1858, 16
      %v1945 = vrot.slane %v1943, 4
      %v1946 = vshll.u32 %v1858, 16
      %v1948 = vrot.slane %v1946, 5
      %v1949 = vor.u32 %v1945, %v1948
      %v1950 = vrot.slane %v1949, 4
      %v1952 = vshll.u32 %v1859, 16
      %v1954 = vrot.slane %v1952, 5
      %v1955 = vsel %vm292, %v1950, %v1954
      %v1956 = vshrl.u32 %v1859, 16
      %v1958 = vrot.slane %v1956, 4
      %v1959 = vor.u32 %v1958, %v1954
      %v1960 = vrot.slane %v1959, 4
      %v1962 = vshll.u32 %v1860, 16
      %v1964 = vrot.slane %v1962, 5
      %v1965 = vsel %vm292, %v1960, %v1964
      %v1967 = vshrl.u32 %v1861, 16
      %v1969 = vrot.slane %v1967, 4
      %v1970 = vshll.u32 %v1861, 16
      %v1972 = vrot.slane %v1970, 5
      %v1973 = vor.u32 %v1969, %v1972
      %v1974 = vrot.slane %v1973, 4
      %v1976 = vshll.u32 %v1862, 16
      %v1978 = vrot.slane %v1976, 5
      %v1979 = vsel %vm292, %v1974, %v1978
      %v1980 = vshrl.u32 %v1862, 16
      %v1982 = vrot.slane %v1980, 4
      %v1983 = vor.u32 %v1982, %v1978
      %v1984 = vrot.slane %v1983, 4
      %v1986 = vshll.u32 %v1863, 16
      %v1988 = vrot.slane %v1986, 5
      %v1989 = vsel %vm292, %v1984, %v1988
      %v1991 = vshrl.u32 %v1864, 16
      %v1993 = vrot.slane %v1991, 4
      %v1994 = vshll.u32 %v1864, 16
      %v1996 = vrot.slane %v1994, 5
      %v1997 = vor.u32 %v1993, %v1996
      %v1998 = vrot.slane %v1997, 4
      %v2000 = vshll.u32 %v1865, 16
      %v2002 = vrot.slane %v2000, 5
      %v2003 = vsel %vm292, %v1998, %v2002
      %v2004 = vshrl.u32 %v1865, 16
      %v2006 = vrot.slane %v2004, 4
      %v2007 = vor.u32 %v2006, %v2002
      %v2008 = vrot.slane %v2007, 4
      %v2010 = vshll.u32 %v1866, 16
      %v2012 = vrot.slane %v2010, 5
      %v2013 = vsel %vm292, %v2008, %v2012
      %v2015 = vshrl.u32 %v1867, 16
      %v2017 = vrot.slane %v2015, 4
      %v2018 = vshll.u32 %v1867, 16
      %v2020 = vrot.slane %v2018, 5
      %v2021 = vor.u32 %v2017, %v2020
      %v2022 = vrot.slane %v2021, 4
      %v2024 = vshll.u32 %v1868, 16
      %v2026 = vrot.slane %v2024, 5
      %v2027 = vsel %vm292, %v2022, %v2026
      %v2028 = vshrl.u32 %v1868, 16
      %v2030 = vrot.slane %v2028, 4
      %v2031 = vor.u32 %v2030, %v2026
      %v2032 = vrot.slane %v2031, 4
      %v2034 = vshll.u32 %v1869, 16
      %v2036 = vrot.slane %v2034, 5
      %v2037 = vsel %vm292, %v2032, %v2036
      %v2039 = vshrl.u32 %v1870, 16
      %v2041 = vrot.slane %v2039, 4
      %v2042 = vshll.u32 %v1870, 16
      %v2044 = vrot.slane %v2042, 5
      %v2045 = vor.u32 %v2041, %v2044
      %v2046 = vrot.slane %v2045, 4
      %v2048 = vshll.u32 %v1871, 16
      %v2050 = vrot.slane %v2048, 5
      %v2051 = vsel %vm292, %v2046, %v2050
      %v2052 = vshrl.u32 %v1871, 16
      %v2054 = vrot.slane %v2052, 4
      %v2055 = vor.u32 %v2054, %v2050
      %v2056 = vrot.slane %v2055, 4
      %v2058 = vshll.u32 %v1872, 16
      %v2060 = vrot.slane %v2058, 5
      %v2061 = vsel %vm292, %v2056, %v2060
      %v2063 = vshrl.u32 %v1873, 16
      %v2065 = vrot.slane %v2063, 4
      %v2066 = vshll.u32 %v1873, 16
      %v2068 = vrot.slane %v2066, 5
      %v2069 = vor.u32 %v2065, %v2068
      %v2070 = vrot.slane %v2069, 4
      %v2072 = vshll.u32 %v1874, 16
      %v2074 = vrot.slane %v2072, 5
      %v2075 = vsel %vm292, %v2070, %v2074
      %v2076 = vshrl.u32 %v1874, 16
      %v2078 = vrot.slane %v2076, 4
      %v2079 = vor.u32 %v2078, %v2074
      %v2080 = vrot.slane %v2079, 4
      %v2082 = vshll.u32 %v1875, 16
      %v2084 = vrot.slane %v2082, 5
      %v2085 = vsel %vm292, %v2080, %v2084
      %v2087 = vshrl.u32 %v1876, 16
      %v2089 = vrot.slane %v2087, 4
      %v2090 = vshll.u32 %v1876, 16
      %v2092 = vrot.slane %v2090, 5
      %v2093 = vor.u32 %v2089, %v2092
      %v2094 = vrot.slane %v2093, 4
      %v2096 = vshll.u32 %v1877, 16
      %v2098 = vrot.slane %v2096, 5
      %v2099 = vsel %vm292, %v2094, %v2098
      %v2100 = vshrl.u32 %v1877, 16
      %v2102 = vrot.slane %v2100, 4
      %v2103 = vor.u32 %v2102, %v2098
      %v2104 = vrot.slane %v2103, 4
      %v2106 = vshll.u32 %v1878, 16
      %v2108 = vrot.slane %v2106, 5
      %v2109 = vsel %vm292, %v2104, %v2108
      %v2111 = vshrl.u32 %v1879, 16
      %v2113 = vrot.slane %v2111, 4
      %v2114 = vshll.u32 %v1879, 16
      %v2116 = vrot.slane %v2114, 5
      %v2117 = vor.u32 %v2113, %v2116
      %v2118 = vrot.slane %v2117, 4
      %v2120 = vshll.u32 %v1880, 16
      %v2122 = vrot.slane %v2120, 5
      %v2123 = vsel %vm292, %v2118, %v2122
      %v2124 = vshrl.u32 %v1880, 16
      %v2126 = vrot.slane %v2124, 4
      %v2127 = vor.u32 %v2126, %v2122
      %v2128 = vrot.slane %v2127, 4
      %v2130 = vshll.u32 %v1881, 16
      %v2132 = vrot.slane %v2130, 5
      %v2133 = vsel %vm292, %v2128, %v2132
      %v2135 = vshrl.u32 %v1882, 16
      %v2137 = vrot.slane %v2135, 4
      %v2138 = vshll.u32 %v1882, 16
      %v2140 = vrot.slane %v2138, 5
      %v2141 = vor.u32 %v2137, %v2140
      %v2142 = vrot.slane %v2141, 4
      %v2144 = vshll.u32 %v1883, 16
      %v2146 = vrot.slane %v2144, 5
      %v2147 = vsel %vm292, %v2142, %v2146
      %v2148 = vshrl.u32 %v1883, 16
      %v2150 = vrot.slane %v2148, 4
      %v2151 = vor.u32 %v2150, %v2146
      %v2152 = vrot.slane %v2151, 4
      %v2154 = vshll.u32 %v1884, 16
      %v2156 = vrot.slane %v2154, 5
      %v2157 = vsel %vm292, %v2152, %v2156
      %v2159 = vshrl.u32 %v1885, 16
      %v2161 = vrot.slane %v2159, 4
      %v2162 = vshll.u32 %v1885, 16
      %v2164 = vrot.slane %v2162, 5
      %v2165 = vor.u32 %v2161, %v2164
      %v2166 = vrot.slane %v2165, 4
      %v2168 = vshll.u32 %v1886, 16
      %v2170 = vrot.slane %v2168, 5
      %v2171 = vsel %vm292, %v2166, %v2170
      %v2172 = vshrl.u32 %v1886, 16
      %v2174 = vrot.slane %v2172, 4
      %v2175 = vor.u32 %v2174, %v2170
      %v2176 = vrot.slane %v2175, 4
      %v2178 = vshll.u32 %v1887, 16
      %v2180 = vrot.slane %v2178, 5
      %v2181 = vsel %vm292, %v2176, %v2180
      %v2183 = vshrl.u32 %v1888, 16
      %v2185 = vrot.slane %v2183, 4
      %v2186 = vshll.u32 %v1888, 16
      %v2188 = vrot.slane %v2186, 5
      %v2189 = vor.u32 %v2185, %v2188
      %v2190 = vrot.slane %v2189, 4
      %v2192 = vshll.u32 %v1889, 16
      %v2194 = vrot.slane %v2192, 5
      %v2195 = vsel %vm292, %v2190, %v2194
      %v2196 = vshrl.u32 %v1889, 16
      %v2198 = vrot.slane %v2196, 4
      %v2199 = vor.u32 %v2198, %v2194
      %v2200 = vrot.slane %v2199, 4
      %v2202 = vshll.u32 %v1890, 16
      %v2204 = vrot.slane %v2202, 5
      %v2205 = vsel %vm292, %v2200, %v2204
      %v2207 = vshrl.u32 %v1891, 16
      %v2209 = vrot.slane %v2207, 4
      %v2210 = vshll.u32 %v1891, 16
      %v2212 = vrot.slane %v2210, 5
      %v2213 = vor.u32 %v2209, %v2212
      %v2214 = vrot.slane %v2213, 4
      %v2216 = vshll.u32 %v1892, 16
      %v2218 = vrot.slane %v2216, 5
      %v2219 = vsel %vm292, %v2214, %v2218
      %v2220 = vshrl.u32 %v1892, 16
      %v2222 = vrot.slane %v2220, 4
      %v2223 = vor.u32 %v2222, %v2218
      %v2224 = vrot.slane %v2223, 4
      %v2226 = vshll.u32 %v1893, 16
      %v2228 = vrot.slane %v2226, 5
      %v2229 = vsel %vm292, %v2224, %v2228
      %s2230 = scalar_lea.vmem %s224, 8
      %v2231 = vld [vmem:[%s2230] sm:$0x3]
      %v2232 = vunpack.c.l.b16 %v1907
      %v2233 = vunpack.c.l.b16 %v1917
      %v2234 = vunpack.c.l.b16 %v1931
      %v2235 = vunpack.c.l.b16 %v1941
      %v2236 = vunpack.c.l.b16 %v1955
      %v2237 = vunpack.c.l.b16 %v1965
      %v2238 = vunpack.c.l.b16 %v1979
      %v2239 = vunpack.c.l.b16 %v1989
      %v2240 = vunpack.c.l.b16 %v2003
      %v2241 = vunpack.c.l.b16 %v2013
      %v2242 = vunpack.c.l.b16 %v2027
      %v2243 = vunpack.c.l.b16 %v2037
      %v2244 = vunpack.c.l.b16 %v2051
      %v2245 = vunpack.c.l.b16 %v2061
      %v2246 = vunpack.c.l.b16 %v2075
      %v2247 = vunpack.c.l.b16 %v2085
      %v2248 = vunpack.c.l.b16 %v2099
      %v2249 = vunpack.c.l.b16 %v2109
      %v2250 = vunpack.c.l.b16 %v2123
      %v2251 = vunpack.c.l.b16 %v2133
      %v2252 = vunpack.c.l.b16 %v2147
      %v2253 = vunpack.c.l.b16 %v2157
      %v2254 = vunpack.c.l.b16 %v2171
      %v2255 = vunpack.c.l.b16 %v2181
      %v2256 = vunpack.c.l.b16 %v2195
      %v2257 = vunpack.c.l.b16 %v2205
      %v2258 = vunpack.c.l.b16 %v2219
      %v2259 = vunpack.c.l.b16 %v2229
      %v2260 = vpack.c.b16 %v2233, %v2232
      %v2261 = vpack.c.b16 %v2235, %v2234
      %v2262 = vpack.c.b16 %v2237, %v2236
      %v2263 = vpack.c.b16 %v2239, %v2238
      %v2264 = vpack.c.b16 %v2241, %v2240
      %v2265 = vpack.c.b16 %v2243, %v2242
      %v2266 = vpack.c.b16 %v2245, %v2244
      %v2267 = vpack.c.b16 %v2247, %v2246
      %v2268 = vpack.c.b16 %v2249, %v2248
      %v2269 = vpack.c.b16 %v2251, %v2250
      %v2270 = vpack.c.b16 %v2253, %v2252
      %v2271 = vpack.c.b16 %v2255, %v2254
      %v2272 = vpack.c.b16 %v2257, %v2256
      %v2273 = vpack.c.b16 %v2259, %v2258
      %v2275 = vsel %vm673, %v2260, 0
      %v2278 = vsel %vm673, %v2261, 0
      %v2281 = vsel %vm673, %v2262, 0
      %v2284 = vsel %vm673, %v2263, 0
      %v2287 = vsel %vm673, %v2264, 0
      %v2290 = vsel %vm673, %v2265, 0
      %v2293 = vsel %vm673, %v2266, 0
      %v2296 = vsel %vm673, %v2267, 0
      %v2299 = vsel %vm673, %v2268, 0
      %v2302 = vsel %vm673, %v2269, 0
      %v2305 = vsel %vm673, %v2270, 0
      %v2308 = vsel %vm673, %v2271, 0
      %v2311 = vsel %vm673, %v2272, 0
      %v2314 = vsel %vm673, %v2273, 0
      %v2317 = vsel %vm716, %v2231, 0
      %2319 = vmatprep.subr.bf16.mxu0 0
      %2320 = vmatpush1.bf16.msra.mxu0 %v2317
      %2321 = vmatprep.subr.bf16.mxu0 0
      %2322 = vmatpush1.bf16.msra.mxu0 0
      %2323 = vmatprep.subr.bf16.mxu0 0
      %2324 = vmatpush1.bf16.msra.mxu0 0
      %2325 = vmatprep.subr.bf16.mxu0 0
      %2326 = vmatpush1.bf16.msra.mxu0 0
      %2327 = vmatprep.subr.bf16.mxu0 0
      %2328 = vmatpush1.bf16.msra.mxu0 0
      %2329 = vmatprep.subr.bf16.mxu0 0
      %2330 = vmatpush1.bf16.msra.mxu0 0
      %2331 = vmatprep.subr.bf16.mxu0 0
      %2332 = vmatpush1.bf16.msra.mxu0 0
      %2333 = vmatprep.subr.bf16.mxu0 0
      %2334 = vmatpush1.bf16.msra.mxu0 0
      %2335 = vmatprep.subr.bf16.mxu0 0
      %2336 = vmatpush1.bf16.msra.mxu0 0
      %2337 = vmatprep.subr.bf16.mxu0 0
      %2338 = vmatpush1.bf16.msra.mxu0 0
      %2339 = vmatprep.subr.bf16.mxu0 0
      %2340 = vmatpush1.bf16.msra.mxu0 0
      %2341 = vmatprep.subr.bf16.mxu0 0
      %2342 = vmatpush1.bf16.msra.mxu0 0
      %2343 = vmatprep.subr.bf16.mxu0 0
      %2344 = vmatpush1.bf16.msra.mxu0 0
      %2345 = vmatprep.subr.bf16.mxu0 0
      %2346 = vmatpush1.bf16.msra.mxu0 0
      %2347 = vmatprep.subr.bf16.mxu0 0
      %2348 = vmatpush1.bf16.msra.mxu0 0
      %2349 = vmatprep.subr.bf16.mxu0 0
      %2350 = vmatpush1.bf16.msra.mxu0 0
      %2351 = vmatprep.mubr.bf16.mxu0 0
      %2352 = vmatmul.mubr.bf16.gmra.mrb[0].mxu0 %v2275
      %v2353 = vpop.f32.mrb[0].mxu0
      %v2354 = vadd.f32 0.0, %v2353
      %v2355 = vpop.f32.mrb[0].mxu0
      %v2356 = vpop.f32.mrb[0].mxu0
      %v2357 = vadd.f32 0.0, %v2356
      %v2358 = vpop.f32.mrb[0].mxu0
      %2359 = vmatprep.mubr.bf16.mxu0 0
      %2360 = vmatmul.mubr.bf16.gmra.mrb[0].mxu0 %v2278
      %v2361 = vpop.f32.mrb[0].mxu0
      %v2362 = vadd.f32 0.0, %v2361
      %v2363 = vpop.f32.mrb[0].mxu0
      %v2364 = vpop.f32.mrb[0].mxu0
      %v2365 = vadd.f32 0.0, %v2364
      %v2366 = vpop.f32.mrb[0].mxu0
      %2367 = vmatprep.mubr.bf16.mxu0 0
      %2368 = vmatmul.mubr.bf16.gmra.mrb[0].mxu0 %v2281
      %v2369 = vpop.f32.mrb[0].mxu0
      %v2370 = vadd.f32 0.0, %v2369
      %v2371 = vpop.f32.mrb[0].mxu0
      %v2372 = vpop.f32.mrb[0].mxu0
      %v2373 = vadd.f32 0.0, %v2372
      %v2374 = vpop.f32.mrb[0].mxu0
      %2375 = vmatprep.mubr.bf16.mxu0 0
      %2376 = vmatmul.mubr.bf16.gmra.mrb[0].mxu0 %v2284
      %v2377 = vpop.f32.mrb[0].mxu0
      %v2378 = vadd.f32 0.0, %v2377
      %v2379 = vpop.f32.mrb[0].mxu0
      %v2380 = vpop.f32.mrb[0].mxu0
      %v2381 = vadd.f32 0.0, %v2380
      %v2382 = vpop.f32.mrb[0].mxu0
      %2383 = vmatprep.mubr.bf16.mxu0 0
      %2384 = vmatmul.mubr.bf16.gmra.mrb[0].mxu0 %v2287
      %v2385 = vpop.f32.mrb[0].mxu0
      %v2386 = vadd.f32 0.0, %v2385
      %v2387 = vpop.f32.mrb[0].mxu0
      %v2388 = vpop.f32.mrb[0].mxu0
      %v2389 = vadd.f32 0.0, %v2388
      %v2390 = vpop.f32.mrb[0].mxu0
      %2391 = vmatprep.mubr.bf16.mxu0 0
      %2392 = vmatmul.mubr.bf16.gmra.mrb[0].mxu0 %v2290
      %v2393 = vpop.f32.mrb[0].mxu0
      %v2394 = vadd.f32 0.0, %v2393
      %v2395 = vpop.f32.mrb[0].mxu0
      %v2396 = vpop.f32.mrb[0].mxu0
      %v2397 = vadd.f32 0.0, %v2396
      %v2398 = vpop.f32.mrb[0].mxu0
      %2399 = vmatprep.mubr.bf16.mxu0 0
      %2400 = vmatmul.mubr.bf16.gmra.mrb[0].mxu0 %v2293
      %v2401 = vpop.f32.mrb[0].mxu0
      %v2402 = vadd.f32 0.0, %v2401
      %v2403 = vpop.f32.mrb[0].mxu0
      %v2404 = vpop.f32.mrb[0].mxu0
      %v2405 = vadd.f32 0.0, %v2404
      %v2406 = vpop.f32.mrb[0].mxu0
      %2407 = vmatprep.mubr.bf16.mxu0 0
      %2408 = vmatmul.mubr.bf16.gmra.mrb[0].mxu0 %v2296
      %v2409 = vpop.f32.mrb[0].mxu0
      %v2410 = vadd.f32 0.0, %v2409
      %v2411 = vpop.f32.mrb[0].mxu0
      %v2412 = vpop.f32.mrb[0].mxu0
      %v2413 = vadd.f32 0.0, %v2412
      %v2414 = vpop.f32.mrb[0].mxu0
      %2415 = vmatprep.mubr.bf16.mxu0 0
      %2416 = vmatmul.mubr.bf16.gmra.mrb[0].mxu0 %v2299
      %v2417 = vpop.f32.mrb[0].mxu0
      %v2418 = vadd.f32 0.0, %v2417
      %v2419 = vpop.f32.mrb[0].mxu0
      %v2420 = vpop.f32.mrb[0].mxu0
      %v2421 = vadd.f32 0.0, %v2420
      %v2422 = vpop.f32.mrb[0].mxu0
      %2423 = vmatprep.mubr.bf16.mxu0 0
      %2424 = vmatmul.mubr.bf16.gmra.mrb[0].mxu0 %v2302
      %v2425 = vpop.f32.mrb[0].mxu0
      %v2426 = vadd.f32 0.0, %v2425
      %v2427 = vpop.f32.mrb[0].mxu0
      %v2428 = vpop.f32.mrb[0].mxu0
      %v2429 = vadd.f32 0.0, %v2428
      %v2430 = vpop.f32.mrb[0].mxu0
      %2431 = vmatprep.mubr.bf16.mxu0 0
      %2432 = vmatmul.mubr.bf16.gmra.mrb[0].mxu0 %v2305
      %v2433 = vpop.f32.mrb[0].mxu0
      %v2434 = vadd.f32 0.0, %v2433
      %v2435 = vpop.f32.mrb[0].mxu0
      %v2436 = vpop.f32.mrb[0].mxu0
      %v2437 = vadd.f32 0.0, %v2436
      %v2438 = vpop.f32.mrb[0].mxu0
      %2439 = vmatprep.mubr.bf16.mxu0 0
      %2440 = vmatmul.mubr.bf16.gmra.mrb[0].mxu0 %v2308
      %v2441 = vpop.f32.mrb[0].mxu0
      %v2442 = vadd.f32 0.0, %v2441
      %v2443 = vpop.f32.mrb[0].mxu0
      %v2444 = vpop.f32.mrb[0].mxu0
      %v2445 = vadd.f32 0.0, %v2444
      %v2446 = vpop.f32.mrb[0].mxu0
      %2447 = vmatprep.mubr.bf16.mxu0 0
      %2448 = vmatmul.mubr.bf16.gmra.mrb[0].mxu0 %v2311
      %v2449 = vpop.f32.mrb[0].mxu0
      %v2450 = vadd.f32 0.0, %v2449
      %v2451 = vpop.f32.mrb[0].mxu0
      %v2452 = vpop.f32.mrb[0].mxu0
      %v2453 = vadd.f32 0.0, %v2452
      %v2454 = vpop.f32.mrb[0].mxu0
      %2455 = vmatprep.mubr.bf16.mxu0 0
      %2456 = vmatmul.mubr.bf16.gmra.mrb[0].mxu0 %v2314
      %v2457 = vpop.f32.mrb[0].mxu0
      %v2458 = vadd.f32 0.0, %v2457
      %v2459 = vpop.f32.mrb[0].mxu0
      %v2460 = vpop.f32.mrb[0].mxu0
      %v2461 = vadd.f32 0.0, %v2460
      %v2462 = vpop.f32.mrb[0].mxu0
      %2463 = vdwg.mxu0
      %v2464 = vadd.f32 %v1824, %v2354
      %v2465 = vadd.f32 %v1825, %v2357
      %v2466 = vadd.f32 %v1826, %v2362
      %v2467 = vadd.f32 %v1827, %v2365
      %v2468 = vadd.f32 %v1828, %v2370
      %v2469 = vadd.f32 %v1829, %v2373
      %v2470 = vadd.f32 %v1830, %v2378
      %v2471 = vadd.f32 %v1831, %v2381
      %v2472 = vadd.f32 %v1832, %v2386
      %v2473 = vadd.f32 %v1833, %v2389
      %v2474 = vadd.f32 %v1834, %v2394
      %v2475 = vadd.f32 %v1835, %v2397
      %v2476 = vadd.f32 %v1836, %v2402
      %v2477 = vadd.f32 %v1837, %v2405
      %v2478 = vadd.f32 %v1838, %v2410
      %v2479 = vadd.f32 %v1839, %v2413
      %v2480 = vadd.f32 %v1840, %v2418
      %v2481 = vadd.f32 %v1841, %v2421
      %v2482 = vadd.f32 %v1842, %v2426
      %v2483 = vadd.f32 %v1843, %v2429
      %v2484 = vadd.f32 %v1844, %v2434
      %v2485 = vadd.f32 %v1845, %v2437
      %v2486 = vadd.f32 %v1846, %v2442
      %v2487 = vadd.f32 %v1847, %v2445
      %v2488 = vadd.f32 %v1848, %v2450
      %v2489 = vadd.f32 %v1849, %v2453
      %v2490 = vadd.f32 %v1850, %v2458
      %v2491 = vadd.f32 %v1851, %v2461
      %v2492 = vld [vmem:[%s1533] sm:$0xe]
      %v2493 = vld [vmem:[%s1533 + $0xc] sm:$0xe]
      %v2494 = vld [vmem:[%s1533 + $0x18] sm:$0xe]
      %v2495 = vld [vmem:[%s1533 + $0x24] sm:$0xe]
      %v2496 = vld [vmem:[%s1533 + $0x30] sm:$0xe]
      %v2497 = vld [vmem:[%s1533 + $0x3c] sm:$0xe]
      %v2498 = vld [vmem:[%s1533 + $0x48] sm:$0xe]
      %v2499 = vld [vmem:[%s1533 + $0x54] sm:$0xe]
      %v2500 = vld [vmem:[%s1533 + $0x60] sm:$0xe]
      %v2501 = vld [vmem:[%s1533 + $0x6c] sm:$0xe]
      %v2502 = vld [vmem:[%s1533 + $0x78] sm:$0xe]
      %v2503 = vld [vmem:[%s1533 + $0x84] sm:$0xe]
      %v2504 = vld [vmem:[%s1533 + $0x90] sm:$0xe]
      %v2505 = vld [vmem:[%s1533 + $0x9c] sm:$0xe]
      %v2548 = vrot.slane %v2492, 5
      %v2549 = vrot.slane %v2548, 4
      %v2550 = vrot.slane %v1853, 5
      %v2551 = vsel %vm1169, %v2549, %v2550
      %v2552 = vrot.slane %v2550, 4
      %v2553 = vrot.slane %v1854, 5
      %v2554 = vsel %vm1169, %v2552, %v2553
      %v2555 = vrot.slane %v2493, 5
      %v2556 = vrot.slane %v2555, 4
      %v2557 = vrot.slane %v1856, 5
      %v2558 = vsel %vm1169, %v2556, %v2557
      %v2559 = vrot.slane %v2557, 4
      %v2560 = vrot.slane %v1857, 5
      %v2561 = vsel %vm1169, %v2559, %v2560
      %v2562 = vrot.slane %v2494, 5
      %v2563 = vrot.slane %v2562, 4
      %v2564 = vrot.slane %v1859, 5
      %v2565 = vsel %vm1169, %v2563, %v2564
      %v2566 = vrot.slane %v2564, 4
      %v2567 = vrot.slane %v1860, 5
      %v2568 = vsel %vm1169, %v2566, %v2567
      %v2569 = vrot.slane %v2495, 5
      %v2570 = vrot.slane %v2569, 4
      %v2571 = vrot.slane %v1862, 5
      %v2572 = vsel %vm1169, %v2570, %v2571
      %v2573 = vrot.slane %v2571, 4
      %v2574 = vrot.slane %v1863, 5
      %v2575 = vsel %vm1169, %v2573, %v2574
      %v2576 = vrot.slane %v2496, 5
      %v2577 = vrot.slane %v2576, 4
      %v2578 = vrot.slane %v1865, 5
      %v2579 = vsel %vm1169, %v2577, %v2578
      %v2580 = vrot.slane %v2578, 4
      %v2581 = vrot.slane %v1866, 5
      %v2582 = vsel %vm1169, %v2580, %v2581
      %v2583 = vrot.slane %v2497, 5
      %v2584 = vrot.slane %v2583, 4
      %v2585 = vrot.slane %v1868, 5
      %v2586 = vsel %vm1169, %v2584, %v2585
      %v2587 = vrot.slane %v2585, 4
      %v2588 = vrot.slane %v1869, 5
      %v2589 = vsel %vm1169, %v2587, %v2588
      %v2590 = vrot.slane %v2498, 5
      %v2591 = vrot.slane %v2590, 4
      %v2592 = vrot.slane %v1871, 5
      %v2593 = vsel %vm1169, %v2591, %v2592
      %v2594 = vrot.slane %v2592, 4
      %v2595 = vrot.slane %v1872, 5
      %v2596 = vsel %vm1169, %v2594, %v2595
      %v2597 = vrot.slane %v2499, 5
      %v2598 = vrot.slane %v2597, 4
      %v2599 = vrot.slane %v1874, 5
      %v2600 = vsel %vm1169, %v2598, %v2599
      %v2601 = vrot.slane %v2599, 4
      %v2602 = vrot.slane %v1875, 5
      %v2603 = vsel %vm1169, %v2601, %v2602
      %v2604 = vrot.slane %v2500, 5
      %v2605 = vrot.slane %v2604, 4
      %v2606 = vrot.slane %v1877, 5
      %v2607 = vsel %vm1169, %v2605, %v2606
      %v2608 = vrot.slane %v2606, 4
      %v2609 = vrot.slane %v1878, 5
      %v2610 = vsel %vm1169, %v2608, %v2609
      %v2611 = vrot.slane %v2501, 5
      %v2612 = vrot.slane %v2611, 4
      %v2613 = vrot.slane %v1880, 5
      %v2614 = vsel %vm1169, %v2612, %v2613
      %v2615 = vrot.slane %v2613, 4
      %v2616 = vrot.slane %v1881, 5
      %v2617 = vsel %vm1169, %v2615, %v2616
      %v2618 = vrot.slane %v2502, 5
      %v2619 = vrot.slane %v2618, 4
      %v2620 = vrot.slane %v1883, 5
      %v2621 = vsel %vm1169, %v2619, %v2620
      %v2622 = vrot.slane %v2620, 4
      %v2623 = vrot.slane %v1884, 5
      %v2624 = vsel %vm1169, %v2622, %v2623
      %v2625 = vrot.slane %v2503, 5
      %v2626 = vrot.slane %v2625, 4
      %v2627 = vrot.slane %v1886, 5
      %v2628 = vsel %vm1169, %v2626, %v2627
      %v2629 = vrot.slane %v2627, 4
      %v2630 = vrot.slane %v1887, 5
      %v2631 = vsel %vm1169, %v2629, %v2630
      %v2632 = vrot.slane %v2504, 5
      %v2633 = vrot.slane %v2632, 4
      %v2634 = vrot.slane %v1889, 5
      %v2635 = vsel %vm1169, %v2633, %v2634
      %v2636 = vrot.slane %v2634, 4
      %v2637 = vrot.slane %v1890, 5
      %v2638 = vsel %vm1169, %v2636, %v2637
      %v2639 = vrot.slane %v2505, 5
      %v2640 = vrot.slane %v2639, 4
      %v2641 = vrot.slane %v1892, 5
      %v2642 = vsel %vm1169, %v2640, %v2641
      %v2643 = vrot.slane %v2641, 4
      %v2644 = vrot.slane %v1893, 5
      %v2645 = vsel %vm1169, %v2643, %v2644
      %s2646 = scalar_lea.vmem %s224, 10
      %v2647 = vld [vmem:[%s2646] sm:$0x3]
      %v2648 = vunpack.c.l.b16 %v2551
      %v2649 = vunpack.c.l.b16 %v2554
      %v2650 = vunpack.c.l.b16 %v2558
      %v2651 = vunpack.c.l.b16 %v2561
      %v2652 = vunpack.c.l.b16 %v2565
      %v2653 = vunpack.c.l.b16 %v2568
      %v2654 = vunpack.c.l.b16 %v2572
      %v2655 = vunpack.c.l.b16 %v2575
      %v2656 = vunpack.c.l.b16 %v2579
      %v2657 = vunpack.c.l.b16 %v2582
      %v2658 = vunpack.c.l.b16 %v2586
      %v2659 = vunpack.c.l.b16 %v2589
      %v2660 = vunpack.c.l.b16 %v2593
      %v2661 = vunpack.c.l.b16 %v2596
      %v2662 = vunpack.c.l.b16 %v2600
      %v2663 = vunpack.c.l.b16 %v2603
      %v2664 = vunpack.c.l.b16 %v2607
      %v2665 = vunpack.c.l.b16 %v2610
      %v2666 = vunpack.c.l.b16 %v2614
      %v2667 = vunpack.c.l.b16 %v2617
      %v2668 = vunpack.c.l.b16 %v2621
      %v2669 = vunpack.c.l.b16 %v2624
      %v2670 = vunpack.c.l.b16 %v2628
      %v2671 = vunpack.c.l.b16 %v2631
      %v2672 = vunpack.c.l.b16 %v2635
      %v2673 = vunpack.c.l.b16 %v2638
      %v2674 = vunpack.c.l.b16 %v2642
      %v2675 = vunpack.c.l.b16 %v2645
      %v2676 = vpack.c.b16 %v2649, %v2648
      %v2677 = vpack.c.b16 %v2651, %v2650
      %v2678 = vpack.c.b16 %v2653, %v2652
      %v2679 = vpack.c.b16 %v2655, %v2654
      %v2680 = vpack.c.b16 %v2657, %v2656
      %v2681 = vpack.c.b16 %v2659, %v2658
      %v2682 = vpack.c.b16 %v2661, %v2660
      %v2683 = vpack.c.b16 %v2663, %v2662
      %v2684 = vpack.c.b16 %v2665, %v2664
      %v2685 = vpack.c.b16 %v2667, %v2666
      %v2686 = vpack.c.b16 %v2669, %v2668
      %v2687 = vpack.c.b16 %v2671, %v2670
      %v2688 = vpack.c.b16 %v2673, %v2672
      %v2689 = vpack.c.b16 %v2675, %v2674
      %v2691 = vsel %vm673, %v2676, 0
      %v2694 = vsel %vm673, %v2677, 0
      %v2697 = vsel %vm673, %v2678, 0
      %v2700 = vsel %vm673, %v2679, 0
      %v2703 = vsel %vm673, %v2680, 0
      %v2706 = vsel %vm673, %v2681, 0
      %v2709 = vsel %vm673, %v2682, 0
      %v2712 = vsel %vm673, %v2683, 0
      %v2715 = vsel %vm673, %v2684, 0
      %v2718 = vsel %vm673, %v2685, 0
      %v2721 = vsel %vm673, %v2686, 0
      %v2724 = vsel %vm673, %v2687, 0
      %v2727 = vsel %vm673, %v2688, 0
      %v2730 = vsel %vm673, %v2689, 0
      %v2733 = vsel %vm716, %v2647, 0
      %2735 = vmatprep.subr.bf16.mxu0 0
      %2736 = vmatpush1.bf16.msra.mxu0 %v2733
      %2737 = vmatprep.subr.bf16.mxu0 0
      %2738 = vmatpush1.bf16.msra.mxu0 0
      %2739 = vmatprep.subr.bf16.mxu0 0
      %2740 = vmatpush1.bf16.msra.mxu0 0
      %2741 = vmatprep.subr.bf16.mxu0 0
      %2742 = vmatpush1.bf16.msra.mxu0 0
      %2743 = vmatprep.subr.bf16.mxu0 0
      %2744 = vmatpush1.bf16.msra.mxu0 0
      %2745 = vmatprep.subr.bf16.mxu0 0
      %2746 = vmatpush1.bf16.msra.mxu0 0
      %2747 = vmatprep.subr.bf16.mxu0 0
      %2748 = vmatpush1.bf16.msra.mxu0 0
      %2749 = vmatprep.subr.bf16.mxu0 0
      %2750 = vmatpush1.bf16.msra.mxu0 0
      %2751 = vmatprep.subr.bf16.mxu0 0
      %2752 = vmatpush1.bf16.msra.mxu0 0
      %2753 = vmatprep.subr.bf16.mxu0 0
      %2754 = vmatpush1.bf16.msra.mxu0 0
      %2755 = vmatprep.subr.bf16.mxu0 0
      %2756 = vmatpush1.bf16.msra.mxu0 0
      %2757 = vmatprep.subr.bf16.mxu0 0
      %2758 = vmatpush1.bf16.msra.mxu0 0
      %2759 = vmatprep.subr.bf16.mxu0 0
      %2760 = vmatpush1.bf16.msra.mxu0 0
      %2761 = vmatprep.subr.bf16.mxu0 0
      %2762 = vmatpush1.bf16.msra.mxu0 0
      %2763 = vmatprep.subr.bf16.mxu0 0
      %2764 = vmatpush1.bf16.msra.mxu0 0
      %2765 = vmatprep.subr.bf16.mxu0 0
      %2766 = vmatpush1.bf16.msra.mxu0 0
      %2767 = vmatprep.mubr.bf16.mxu0 0
      %2768 = vmatmul.mubr.bf16.gmra.mrb[0].mxu0 %v2691
      %v2769 = vpop.f32.mrb[0].mxu0
      %v2770 = vadd.f32 0.0, %v2769
      %v2771 = vpop.f32.mrb[0].mxu0
      %v2772 = vpop.f32.mrb[0].mxu0
      %v2773 = vadd.f32 0.0, %v2772
      %v2774 = vpop.f32.mrb[0].mxu0
      %2775 = vmatprep.mubr.bf16.mxu0 0
      %2776 = vmatmul.mubr.bf16.gmra.mrb[0].mxu0 %v2694
      %v2777 = vpop.f32.mrb[0].mxu0
      %v2778 = vadd.f32 0.0, %v2777
      %v2779 = vpop.f32.mrb[0].mxu0
      %v2780 = vpop.f32.mrb[0].mxu0
      %v2781 = vadd.f32 0.0, %v2780
      %v2782 = vpop.f32.mrb[0].mxu0
      %2783 = vmatprep.mubr.bf16.mxu0 0
      %2784 = vmatmul.mubr.bf16.gmra.mrb[0].mxu0 %v2697
      %v2785 = vpop.f32.mrb[0].mxu0
      %v2786 = vadd.f32 0.0, %v2785
      %v2787 = vpop.f32.mrb[0].mxu0
      %v2788 = vpop.f32.mrb[0].mxu0
      %v2789 = vadd.f32 0.0, %v2788
      %v2790 = vpop.f32.mrb[0].mxu0
      %2791 = vmatprep.mubr.bf16.mxu0 0
      %2792 = vmatmul.mubr.bf16.gmra.mrb[0].mxu0 %v2700
      %v2793 = vpop.f32.mrb[0].mxu0
      %v2794 = vadd.f32 0.0, %v2793
      %v2795 = vpop.f32.mrb[0].mxu0
      %v2796 = vpop.f32.mrb[0].mxu0
      %v2797 = vadd.f32 0.0, %v2796
      %v2798 = vpop.f32.mrb[0].mxu0
      %2799 = vmatprep.mubr.bf16.mxu0 0
      %2800 = vmatmul.mubr.bf16.gmra.mrb[0].mxu0 %v2703
      %v2801 = vpop.f32.mrb[0].mxu0
      %v2802 = vadd.f32 0.0, %v2801
      %v2803 = vpop.f32.mrb[0].mxu0
      %v2804 = vpop.f32.mrb[0].mxu0
      %v2805 = vadd.f32 0.0, %v2804
      %v2806 = vpop.f32.mrb[0].mxu0
      %2807 = vmatprep.mubr.bf16.mxu0 0
      %2808 = vmatmul.mubr.bf16.gmra.mrb[0].mxu0 %v2706
      %v2809 = vpop.f32.mrb[0].mxu0
      %v2810 = vadd.f32 0.0, %v2809
      %v2811 = vpop.f32.mrb[0].mxu0
      %v2812 = vpop.f32.mrb[0].mxu0
      %v2813 = vadd.f32 0.0, %v2812
      %v2814 = vpop.f32.mrb[0].mxu0
      %2815 = vmatprep.mubr.bf16.mxu0 0
      %2816 = vmatmul.mubr.bf16.gmra.mrb[0].mxu0 %v2709
      %v2817 = vpop.f32.mrb[0].mxu0
      %v2818 = vadd.f32 0.0, %v2817
      %v2819 = vpop.f32.mrb[0].mxu0
      %v2820 = vpop.f32.mrb[0].mxu0
      %v2821 = vadd.f32 0.0, %v2820
      %v2822 = vpop.f32.mrb[0].mxu0
      %2823 = vmatprep.mubr.bf16.mxu0 0
      %2824 = vmatmul.mubr.bf16.gmra.mrb[0].mxu0 %v2712
      %v2825 = vpop.f32.mrb[0].mxu0
      %v2826 = vadd.f32 0.0, %v2825
      %v2827 = vpop.f32.mrb[0].mxu0
      %v2828 = vpop.f32.mrb[0].mxu0
      %v2829 = vadd.f32 0.0, %v2828
      %v2830 = vpop.f32.mrb[0].mxu0
      %2831 = vmatprep.mubr.bf16.mxu0 0
      %2832 = vmatmul.mubr.bf16.gmra.mrb[0].mxu0 %v2715
      %v2833 = vpop.f32.mrb[0].mxu0
      %v2834 = vadd.f32 0.0, %v2833
      %v2835 = vpop.f32.mrb[0].mxu0
      %v2836 = vpop.f32.mrb[0].mxu0
      %v2837 = vadd.f32 0.0, %v2836
      %v2838 = vpop.f32.mrb[0].mxu0
      %2839 = vmatprep.mubr.bf16.mxu0 0
      %2840 = vmatmul.mubr.bf16.gmra.mrb[0].mxu0 %v2718
      %v2841 = vpop.f32.mrb[0].mxu0
      %v2842 = vadd.f32 0.0, %v2841
      %v2843 = vpop.f32.mrb[0].mxu0
      %v2844 = vpop.f32.mrb[0].mxu0
      %v2845 = vadd.f32 0.0, %v2844
      %v2846 = vpop.f32.mrb[0].mxu0
      %2847 = vmatprep.mubr.bf16.mxu0 0
      %2848 = vmatmul.mubr.bf16.gmra.mrb[0].mxu0 %v2721
      %v2849 = vpop.f32.mrb[0].mxu0
      %v2850 = vadd.f32 0.0, %v2849
      %v2851 = vpop.f32.mrb[0].mxu0
      %v2852 = vpop.f32.mrb[0].mxu0
      %v2853 = vadd.f32 0.0, %v2852
      %v2854 = vpop.f32.mrb[0].mxu0
      %2855 = vmatprep.mubr.bf16.mxu0 0
      %2856 = vmatmul.mubr.bf16.gmra.mrb[0].mxu0 %v2724
      %v2857 = vpop.f32.mrb[0].mxu0
      %v2858 = vadd.f32 0.0, %v2857
      %v2859 = vpop.f32.mrb[0].mxu0
      %v2860 = vpop.f32.mrb[0].mxu0
      %v2861 = vadd.f32 0.0, %v2860
      %v2862 = vpop.f32.mrb[0].mxu0
      %2863 = vmatprep.mubr.bf16.mxu0 0
      %2864 = vmatmul.mubr.bf16.gmra.mrb[0].mxu0 %v2727
      %v2865 = vpop.f32.mrb[0].mxu0
      %v2866 = vadd.f32 0.0, %v2865
      %v2867 = vpop.f32.mrb[0].mxu0
      %v2868 = vpop.f32.mrb[0].mxu0
      %v2869 = vadd.f32 0.0, %v2868
      %v2870 = vpop.f32.mrb[0].mxu0
      %2871 = vmatprep.mubr.bf16.mxu0 0
      %2872 = vmatmul.mubr.bf16.gmra.mrb[0].mxu0 %v2730
      %v2873 = vpop.f32.mrb[0].mxu0
      %v2874 = vadd.f32 0.0, %v2873
      %v2875 = vpop.f32.mrb[0].mxu0
      %v2876 = vpop.f32.mrb[0].mxu0
      %v2877 = vadd.f32 0.0, %v2876
      %v2878 = vpop.f32.mrb[0].mxu0
      %2879 = vdwg.mxu0
      %v2880 = vadd.f32 %v2464, %v2770
      %v2881 = vadd.f32 %v2465, %v2773
      %v2882 = vadd.f32 %v2466, %v2778
      %v2883 = vadd.f32 %v2467, %v2781
      %v2884 = vadd.f32 %v2468, %v2786
      %v2885 = vadd.f32 %v2469, %v2789
      %v2886 = vadd.f32 %v2470, %v2794
      %v2887 = vadd.f32 %v2471, %v2797
      %v2888 = vadd.f32 %v2472, %v2802
      %v2889 = vadd.f32 %v2473, %v2805
      %v2890 = vadd.f32 %v2474, %v2810
      %v2891 = vadd.f32 %v2475, %v2813
      %v2892 = vadd.f32 %v2476, %v2818
      %v2893 = vadd.f32 %v2477, %v2821
      %v2894 = vadd.f32 %v2478, %v2826
      %v2895 = vadd.f32 %v2479, %v2829
      %v2896 = vadd.f32 %v2480, %v2834
      %v2897 = vadd.f32 %v2481, %v2837
      %v2898 = vadd.f32 %v2482, %v2842
      %v2899 = vadd.f32 %v2483, %v2845
      %v2900 = vadd.f32 %v2484, %v2850
      %v2901 = vadd.f32 %v2485, %v2853
      %v2902 = vadd.f32 %v2486, %v2858
      %v2903 = vadd.f32 %v2487, %v2861
      %v2904 = vadd.f32 %v2488, %v2866
      %v2905 = vadd.f32 %v2489, %v2869
      %v2906 = vadd.f32 %v2490, %v2874
      %v2907 = vadd.f32 %v2491, %v2877
      %s2908 = sadd.s32 %s243, 2
      %s2909 = smul.u32 %s2908, 3
      %s2910 = smul.addr %s2909, 4
      %s2911 = scalar_lea.vmem %s220, %s2910
      %v2912 = vld [vmem:[%s2911] sm:$0xf]
      %v2913 = vld [vmem:[%s2911 + $0x4] sm:$0xf]
      %v2914 = vld [vmem:[%s2911 + $0xc] sm:$0xf]
      %v2915 = vld [vmem:[%s2911 + $0x10] sm:$0xf]
      %v2916 = vld [vmem:[%s2911 + $0x18] sm:$0xf]
      %v2917 = vld [vmem:[%s2911 + $0x1c] sm:$0xf]
      %v2918 = vld [vmem:[%s2911 + $0x24] sm:$0xf]
      %v2919 = vld [vmem:[%s2911 + $0x28] sm:$0xf]
      %v2920 = vld [vmem:[%s2911 + $0x30] sm:$0xf]
      %v2921 = vld [vmem:[%s2911 + $0x34] sm:$0xf]
      %v2922 = vld [vmem:[%s2911 + $0x3c] sm:$0xf]
      %v2923 = vld [vmem:[%s2911 + $0x40] sm:$0xf]
      %v2924 = vld [vmem:[%s2911 + $0x48] sm:$0xf]
      %v2925 = vld [vmem:[%s2911 + $0x4c] sm:$0xf]
      %v2926 = vld [vmem:[%s2911 + $0x54] sm:$0xf]
      %v2927 = vld [vmem:[%s2911 + $0x58] sm:$0xf]
      %v2928 = vld [vmem:[%s2911 + $0x60] sm:$0xf]
      %v2929 = vld [vmem:[%s2911 + $0x64] sm:$0xf]
      %v2930 = vld [vmem:[%s2911 + $0x6c] sm:$0xf]
      %v2931 = vld [vmem:[%s2911 + $0x70] sm:$0xf]
      %v2932 = vld [vmem:[%s2911 + $0x78] sm:$0xf]
      %v2933 = vld [vmem:[%s2911 + $0x7c] sm:$0xf]
      %v2934 = vld [vmem:[%s2911 + $0x84] sm:$0xf]
      %v2935 = vld [vmem:[%s2911 + $0x88] sm:$0xf]
      %v2936 = vld [vmem:[%s2911 + $0x90] sm:$0xf]
      %v2937 = vld [vmem:[%s2911 + $0x94] sm:$0xf]
      %v2938 = vld [vmem:[%s2911 + $0x9c] sm:$0xf]
      %v2939 = vld [vmem:[%s2911 + $0xa0] sm:$0xf]
      %s2940 = scalar_lea.vmem %s224, 12
      %v2941 = vld [vmem:[%s2940] sm:$0x3]
      %v2970 = vunpack.c.l.b16 %v2912
      %v2971 = vunpack.c.l.b16 %v2913
      %v2972 = vunpack.c.l.b16 %v2914
      %v2973 = vunpack.c.l.b16 %v2915
      %v2974 = vunpack.c.l.b16 %v2916
      %v2975 = vunpack.c.l.b16 %v2917
      %v2976 = vunpack.c.l.b16 %v2918
      %v2977 = vunpack.c.l.b16 %v2919
      %v2978 = vunpack.c.l.b16 %v2920
      %v2979 = vunpack.c.l.b16 %v2921
      %v2980 = vunpack.c.l.b16 %v2922
      %v2981 = vunpack.c.l.b16 %v2923
      %v2982 = vunpack.c.l.b16 %v2924
      %v2983 = vunpack.c.l.b16 %v2925
      %v2984 = vunpack.c.l.b16 %v2926
      %v2985 = vunpack.c.l.b16 %v2927
      %v2986 = vunpack.c.l.b16 %v2928
      %v2987 = vunpack.c.l.b16 %v2929
      %v2988 = vunpack.c.l.b16 %v2930
      %v2989 = vunpack.c.l.b16 %v2931
      %v2990 = vunpack.c.l.b16 %v2932
      %v2991 = vunpack.c.l.b16 %v2933
      %v2992 = vunpack.c.l.b16 %v2934
      %v2993 = vunpack.c.l.b16 %v2935
      %v2994 = vunpack.c.l.b16 %v2936
      %v2995 = vunpack.c.l.b16 %v2937
      %v2996 = vunpack.c.l.b16 %v2938
      %v2997 = vunpack.c.l.b16 %v2939
      %v2998 = vpack.c.b16 %v2971, %v2970
      %v2999 = vpack.c.b16 %v2973, %v2972
      %v3000 = vpack.c.b16 %v2975, %v2974
      %v3001 = vpack.c.b16 %v2977, %v2976
      %v3002 = vpack.c.b16 %v2979, %v2978
      %v3003 = vpack.c.b16 %v2981, %v2980
      %v3004 = vpack.c.b16 %v2983, %v2982
      %v3005 = vpack.c.b16 %v2985, %v2984
      %v3006 = vpack.c.b16 %v2987, %v2986
      %v3007 = vpack.c.b16 %v2989, %v2988
      %v3008 = vpack.c.b16 %v2991, %v2990
      %v3009 = vpack.c.b16 %v2993, %v2992
      %v3010 = vpack.c.b16 %v2995, %v2994
      %v3011 = vpack.c.b16 %v2997, %v2996
      %v3013 = vsel %vm673, %v2998, 0
      %v3016 = vsel %vm673, %v2999, 0
      %v3019 = vsel %vm673, %v3000, 0
      %v3022 = vsel %vm673, %v3001, 0
      %v3025 = vsel %vm673, %v3002, 0
      %v3028 = vsel %vm673, %v3003, 0
      %v3031 = vsel %vm673, %v3004, 0
      %v3034 = vsel %vm673, %v3005, 0
      %v3037 = vsel %vm673, %v3006, 0
      %v3040 = vsel %vm673, %v3007, 0
      %v3043 = vsel %vm673, %v3008, 0
      %v3046 = vsel %vm673, %v3009, 0
      %v3049 = vsel %vm673, %v3010, 0
      %v3052 = vsel %vm673, %v3011, 0
      %v3055 = vsel %vm716, %v2941, 0
      %3057 = vmatprep.subr.bf16.mxu0 0
      %3058 = vmatpush1.bf16.msra.mxu0 %v3055
      %3059 = vmatprep.subr.bf16.mxu0 0
      %3060 = vmatpush1.bf16.msra.mxu0 0
      %3061 = vmatprep.subr.bf16.mxu0 0
      %3062 = vmatpush1.bf16.msra.mxu0 0
      %3063 = vmatprep.subr.bf16.mxu0 0
      %3064 = vmatpush1.bf16.msra.mxu0 0
      %3065 = vmatprep.subr.bf16.mxu0 0
      %3066 = vmatpush1.bf16.msra.mxu0 0
      %3067 = vmatprep.subr.bf16.mxu0 0
      %3068 = vmatpush1.bf16.msra.mxu0 0
      %3069 = vmatprep.subr.bf16.mxu0 0
      %3070 = vmatpush1.bf16.msra.mxu0 0
      %3071 = vmatprep.subr.bf16.mxu0 0
      %3072 = vmatpush1.bf16.msra.mxu0 0
      %3073 = vmatprep.subr.bf16.mxu0 0
      %3074 = vmatpush1.bf16.msra.mxu0 0
      %3075 = vmatprep.subr.bf16.mxu0 0
      %3076 = vmatpush1.bf16.msra.mxu0 0
      %3077 = vmatprep.subr.bf16.mxu0 0
      %3078 = vmatpush1.bf16.msra.mxu0 0
      %3079 = vmatprep.subr.bf16.mxu0 0
      %3080 = vmatpush1.bf16.msra.mxu0 0
      %3081 = vmatprep.subr.bf16.mxu0 0
      %3082 = vmatpush1.bf16.msra.mxu0 0
      %3083 = vmatprep.subr.bf16.mxu0 0
      %3084 = vmatpush1.bf16.msra.mxu0 0
      %3085 = vmatprep.subr.bf16.mxu0 0
      %3086 = vmatpush1.bf16.msra.mxu0 0
      %3087 = vmatprep.subr.bf16.mxu0 0
      %3088 = vmatpush1.bf16.msra.mxu0 0
      %3089 = vmatprep.mubr.bf16.mxu0 0
      %3090 = vmatmul.mubr.bf16.gmra.mrb[0].mxu0 %v3013
      %v3091 = vpop.f32.mrb[0].mxu0
      %v3092 = vadd.f32 0.0, %v3091
      %v3093 = vpop.f32.mrb[0].mxu0
      %v3094 = vpop.f32.mrb[0].mxu0
      %v3095 = vadd.f32 0.0, %v3094
      %v3096 = vpop.f32.mrb[0].mxu0
      %3097 = vmatprep.mubr.bf16.mxu0 0
      %3098 = vmatmul.mubr.bf16.gmra.mrb[0].mxu0 %v3016
      %v3099 = vpop.f32.mrb[0].mxu0
      %v3100 = vadd.f32 0.0, %v3099
      %v3101 = vpop.f32.mrb[0].mxu0
      %v3102 = vpop.f32.mrb[0].mxu0
      %v3103 = vadd.f32 0.0, %v3102
      %v3104 = vpop.f32.mrb[0].mxu0
      %3105 = vmatprep.mubr.bf16.mxu0 0
      %3106 = vmatmul.mubr.bf16.gmra.mrb[0].mxu0 %v3019
      %v3107 = vpop.f32.mrb[0].mxu0
      %v3108 = vadd.f32 0.0, %v3107
      %v3109 = vpop.f32.mrb[0].mxu0
      %v3110 = vpop.f32.mrb[0].mxu0
      %v3111 = vadd.f32 0.0, %v3110
      %v3112 = vpop.f32.mrb[0].mxu0
      %3113 = vmatprep.mubr.bf16.mxu0 0
      %3114 = vmatmul.mubr.bf16.gmra.mrb[0].mxu0 %v3022
      %v3115 = vpop.f32.mrb[0].mxu0
      %v3116 = vadd.f32 0.0, %v3115
      %v3117 = vpop.f32.mrb[0].mxu0
      %v3118 = vpop.f32.mrb[0].mxu0
      %v3119 = vadd.f32 0.0, %v3118
      %v3120 = vpop.f32.mrb[0].mxu0
      %3121 = vmatprep.mubr.bf16.mxu0 0
      %3122 = vmatmul.mubr.bf16.gmra.mrb[0].mxu0 %v3025
      %v3123 = vpop.f32.mrb[0].mxu0
      %v3124 = vadd.f32 0.0, %v3123
      %v3125 = vpop.f32.mrb[0].mxu0
      %v3126 = vpop.f32.mrb[0].mxu0
      %v3127 = vadd.f32 0.0, %v3126
      %v3128 = vpop.f32.mrb[0].mxu0
      %3129 = vmatprep.mubr.bf16.mxu0 0
      %3130 = vmatmul.mubr.bf16.gmra.mrb[0].mxu0 %v3028
      %v3131 = vpop.f32.mrb[0].mxu0
      %v3132 = vadd.f32 0.0, %v3131
      %v3133 = vpop.f32.mrb[0].mxu0
      %v3134 = vpop.f32.mrb[0].mxu0
      %v3135 = vadd.f32 0.0, %v3134
      %v3136 = vpop.f32.mrb[0].mxu0
      %3137 = vmatprep.mubr.bf16.mxu0 0
      %3138 = vmatmul.mubr.bf16.gmra.mrb[0].mxu0 %v3031
      %v3139 = vpop.f32.mrb[0].mxu0
      %v3140 = vadd.f32 0.0, %v3139
      %v3141 = vpop.f32.mrb[0].mxu0
      %v3142 = vpop.f32.mrb[0].mxu0
      %v3143 = vadd.f32 0.0, %v3142
      %v3144 = vpop.f32.mrb[0].mxu0
      %3145 = vmatprep.mubr.bf16.mxu0 0
      %3146 = vmatmul.mubr.bf16.gmra.mrb[0].mxu0 %v3034
      %v3147 = vpop.f32.mrb[0].mxu0
      %v3148 = vadd.f32 0.0, %v3147
      %v3149 = vpop.f32.mrb[0].mxu0
      %v3150 = vpop.f32.mrb[0].mxu0
      %v3151 = vadd.f32 0.0, %v3150
      %v3152 = vpop.f32.mrb[0].mxu0
      %3153 = vmatprep.mubr.bf16.mxu0 0
      %3154 = vmatmul.mubr.bf16.gmra.mrb[0].mxu0 %v3037
      %v3155 = vpop.f32.mrb[0].mxu0
      %v3156 = vadd.f32 0.0, %v3155
      %v3157 = vpop.f32.mrb[0].mxu0
      %v3158 = vpop.f32.mrb[0].mxu0
      %v3159 = vadd.f32 0.0, %v3158
      %v3160 = vpop.f32.mrb[0].mxu0
      %3161 = vmatprep.mubr.bf16.mxu0 0
      %3162 = vmatmul.mubr.bf16.gmra.mrb[0].mxu0 %v3040
      %v3163 = vpop.f32.mrb[0].mxu0
      %v3164 = vadd.f32 0.0, %v3163
      %v3165 = vpop.f32.mrb[0].mxu0
      %v3166 = vpop.f32.mrb[0].mxu0
      %v3167 = vadd.f32 0.0, %v3166
      %v3168 = vpop.f32.mrb[0].mxu0
      %3169 = vmatprep.mubr.bf16.mxu0 0
      %3170 = vmatmul.mubr.bf16.gmra.mrb[0].mxu0 %v3043
      %v3171 = vpop.f32.mrb[0].mxu0
      %v3172 = vadd.f32 0.0, %v3171
      %v3173 = vpop.f32.mrb[0].mxu0
      %v3174 = vpop.f32.mrb[0].mxu0
      %v3175 = vadd.f32 0.0, %v3174
      %v3176 = vpop.f32.mrb[0].mxu0
      %3177 = vmatprep.mubr.bf16.mxu0 0
      %3178 = vmatmul.mubr.bf16.gmra.mrb[0].mxu0 %v3046
      %v3179 = vpop.f32.mrb[0].mxu0
      %v3180 = vadd.f32 0.0, %v3179
      %v3181 = vpop.f32.mrb[0].mxu0
      %v3182 = vpop.f32.mrb[0].mxu0
      %v3183 = vadd.f32 0.0, %v3182
      %v3184 = vpop.f32.mrb[0].mxu0
      %3185 = vmatprep.mubr.bf16.mxu0 0
      %3186 = vmatmul.mubr.bf16.gmra.mrb[0].mxu0 %v3049
      %v3187 = vpop.f32.mrb[0].mxu0
      %v3188 = vadd.f32 0.0, %v3187
      %v3189 = vpop.f32.mrb[0].mxu0
      %v3190 = vpop.f32.mrb[0].mxu0
      %v3191 = vadd.f32 0.0, %v3190
      %v3192 = vpop.f32.mrb[0].mxu0
      %3193 = vmatprep.mubr.bf16.mxu0 0
      %3194 = vmatmul.mubr.bf16.gmra.mrb[0].mxu0 %v3052
      %v3195 = vpop.f32.mrb[0].mxu0
      %v3196 = vadd.f32 0.0, %v3195
      %v3197 = vpop.f32.mrb[0].mxu0
      %v3198 = vpop.f32.mrb[0].mxu0
      %v3199 = vadd.f32 0.0, %v3198
      %v3200 = vpop.f32.mrb[0].mxu0
      %3201 = vdwg.mxu0
      %v3202 = vadd.f32 %v2880, %v3092
      %v3203 = vadd.f32 %v2881, %v3095
      %v3204 = vadd.f32 %v2882, %v3100
      %v3205 = vadd.f32 %v2883, %v3103
      %v3206 = vadd.f32 %v2884, %v3108
      %v3207 = vadd.f32 %v2885, %v3111
      %v3208 = vadd.f32 %v2886, %v3116
      %v3209 = vadd.f32 %v2887, %v3119
      %v3210 = vadd.f32 %v2888, %v3124
      %v3211 = vadd.f32 %v2889, %v3127
      %v3212 = vadd.f32 %v2890, %v3132
      %v3213 = vadd.f32 %v2891, %v3135
      %v3214 = vadd.f32 %v2892, %v3140
      %v3215 = vadd.f32 %v2893, %v3143
      %v3216 = vadd.f32 %v2894, %v3148
      %v3217 = vadd.f32 %v2895, %v3151
      %v3218 = vadd.f32 %v2896, %v3156
      %v3219 = vadd.f32 %v2897, %v3159
      %v3220 = vadd.f32 %v2898, %v3164
      %v3221 = vadd.f32 %v2899, %v3167
      %v3222 = vadd.f32 %v2900, %v3172
      %v3223 = vadd.f32 %v2901, %v3175
      %v3224 = vadd.f32 %v2902, %v3180
      %v3225 = vadd.f32 %v2903, %v3183
      %v3226 = vadd.f32 %v2904, %v3188
      %v3227 = vadd.f32 %v2905, %v3191
      %v3228 = vadd.f32 %v2906, %v3196
      %v3229 = vadd.f32 %v2907, %v3199
      %v3230 = vld [vmem:[%s2911] sm:$0xf]
      %v3231 = vld [vmem:[%s2911 + $0x4] sm:$0xf]
      %v3232 = vld [vmem:[%s2911 + $0x8] sm:$0x1]
      %v3233 = vld [vmem:[%s2911 + $0xc] sm:$0xf]
      %v3234 = vld [vmem:[%s2911 + $0x10] sm:$0xf]
      %v3235 = vld [vmem:[%s2911 + $0x14] sm:$0x1]
      %v3236 = vld [vmem:[%s2911 + $0x18] sm:$0xf]
      %v3237 = vld [vmem:[%s2911 + $0x1c] sm:$0xf]
      %v3238 = vld [vmem:[%s2911 + $0x20] sm:$0x1]
      %v3239 = vld [vmem:[%s2911 + $0x24] sm:$0xf]
      %v3240 = vld [vmem:[%s2911 + $0x28] sm:$0xf]
      %v3241 = vld [vmem:[%s2911 + $0x2c] sm:$0x1]
      %v3242 = vld [vmem:[%s2911 + $0x30] sm:$0xf]
      %v3243 = vld [vmem:[%s2911 + $0x34] sm:$0xf]
      %v3244 = vld [vmem:[%s2911 + $0x38] sm:$0x1]
      %v3245 = vld [vmem:[%s2911 + $0x3c] sm:$0xf]
      %v3246 = vld [vmem:[%s2911 + $0x40] sm:$0xf]
      %v3247 = vld [vmem:[%s2911 + $0x44] sm:$0x1]
      %v3248 = vld [vmem:[%s2911 + $0x48] sm:$0xf]
      %v3249 = vld [vmem:[%s2911 + $0x4c] sm:$0xf]
      %v3250 = vld [vmem:[%s2911 + $0x50] sm:$0x1]
      %v3251 = vld [vmem:[%s2911 + $0x54] sm:$0xf]
      %v3252 = vld [vmem:[%s2911 + $0x58] sm:$0xf]
      %v3253 = vld [vmem:[%s2911 + $0x5c] sm:$0x1]
      %v3254 = vld [vmem:[%s2911 + $0x60] sm:$0xf]
      %v3255 = vld [vmem:[%s2911 + $0x64] sm:$0xf]
      %v3256 = vld [vmem:[%s2911 + $0x68] sm:$0x1]
      %v3257 = vld [vmem:[%s2911 + $0x6c] sm:$0xf]
      %v3258 = vld [vmem:[%s2911 + $0x70] sm:$0xf]
      %v3259 = vld [vmem:[%s2911 + $0x74] sm:$0x1]
      %v3260 = vld [vmem:[%s2911 + $0x78] sm:$0xf]
      %v3261 = vld [vmem:[%s2911 + $0x7c] sm:$0xf]
      %v3262 = vld [vmem:[%s2911 + $0x80] sm:$0x1]
      %v3263 = vld [vmem:[%s2911 + $0x84] sm:$0xf]
      %v3264 = vld [vmem:[%s2911 + $0x88] sm:$0xf]
      %v3265 = vld [vmem:[%s2911 + $0x8c] sm:$0x1]
      %v3266 = vld [vmem:[%s2911 + $0x90] sm:$0xf]
      %v3267 = vld [vmem:[%s2911 + $0x94] sm:$0xf]
      %v3268 = vld [vmem:[%s2911 + $0x98] sm:$0x1]
      %v3269 = vld [vmem:[%s2911 + $0x9c] sm:$0xf]
      %v3270 = vld [vmem:[%s2911 + $0xa0] sm:$0xf]
      %v3271 = vld [vmem:[%s2911 + $0xa4] sm:$0x1]
      %v3273 = vshrl.u32 %v3230, 16
      %v3275 = vrot.slane %v3273, 4
      %v3276 = vshll.u32 %v3230, 16
      %v3278 = vrot.slane %v3276, 5
      %v3279 = vor.u32 %v3275, %v3278
      %v3280 = vrot.slane %v3279, 4
      %v3282 = vshll.u32 %v3231, 16
      %v3284 = vrot.slane %v3282, 5
      %v3285 = vsel %vm292, %v3280, %v3284
      %v3286 = vshrl.u32 %v3231, 16
      %v3288 = vrot.slane %v3286, 4
      %v3289 = vor.u32 %v3288, %v3284
      %v3290 = vrot.slane %v3289, 4
      %v3292 = vshll.u32 %v3232, 16
      %v3294 = vrot.slane %v3292, 5
      %v3295 = vsel %vm292, %v3290, %v3294
      %v3297 = vshrl.u32 %v3233, 16
      %v3299 = vrot.slane %v3297, 4
      %v3300 = vshll.u32 %v3233, 16
      %v3302 = vrot.slane %v3300, 5
      %v3303 = vor.u32 %v3299, %v3302
      %v3304 = vrot.slane %v3303, 4
      %v3306 = vshll.u32 %v3234, 16
      %v3308 = vrot.slane %v3306, 5
      %v3309 = vsel %vm292, %v3304, %v3308
      %v3310 = vshrl.u32 %v3234, 16
      %v3312 = vrot.slane %v3310, 4
      %v3313 = vor.u32 %v3312, %v3308
      %v3314 = vrot.slane %v3313, 4
      %v3316 = vshll.u32 %v3235, 16
      %v3318 = vrot.slane %v3316, 5
      %v3319 = vsel %vm292, %v3314, %v3318
      %v3321 = vshrl.u32 %v3236, 16
      %v3323 = vrot.slane %v3321, 4
      %v3324 = vshll.u32 %v3236, 16
      %v3326 = vrot.slane %v3324, 5
      %v3327 = vor.u32 %v3323, %v3326
      %v3328 = vrot.slane %v3327, 4
      %v3330 = vshll.u32 %v3237, 16
      %v3332 = vrot.slane %v3330, 5
      %v3333 = vsel %vm292, %v3328, %v3332
      %v3334 = vshrl.u32 %v3237, 16
      %v3336 = vrot.slane %v3334, 4
      %v3337 = vor.u32 %v3336, %v3332
      %v3338 = vrot.slane %v3337, 4
      %v3340 = vshll.u32 %v3238, 16
      %v3342 = vrot.slane %v3340, 5
      %v3343 = vsel %vm292, %v3338, %v3342
      %v3345 = vshrl.u32 %v3239, 16
      %v3347 = vrot.slane %v3345, 4
      %v3348 = vshll.u32 %v3239, 16
      %v3350 = vrot.slane %v3348, 5
      %v3351 = vor.u32 %v3347, %v3350
      %v3352 = vrot.slane %v3351, 4
      %v3354 = vshll.u32 %v3240, 16
      %v3356 = vrot.slane %v3354, 5
      %v3357 = vsel %vm292, %v3352, %v3356
      %v3358 = vshrl.u32 %v3240, 16
      %v3360 = vrot.slane %v3358, 4
      %v3361 = vor.u32 %v3360, %v3356
      %v3362 = vrot.slane %v3361, 4
      %v3364 = vshll.u32 %v3241, 16
      %v3366 = vrot.slane %v3364, 5
      %v3367 = vsel %vm292, %v3362, %v3366
      %v3369 = vshrl.u32 %v3242, 16
      %v3371 = vrot.slane %v3369, 4
      %v3372 = vshll.u32 %v3242, 16
      %v3374 = vrot.slane %v3372, 5
      %v3375 = vor.u32 %v3371, %v3374
      %v3376 = vrot.slane %v3375, 4
      %v3378 = vshll.u32 %v3243, 16
      %v3380 = vrot.slane %v3378, 5
      %v3381 = vsel %vm292, %v3376, %v3380
      %v3382 = vshrl.u32 %v3243, 16
      %v3384 = vrot.slane %v3382, 4
      %v3385 = vor.u32 %v3384, %v3380
      %v3386 = vrot.slane %v3385, 4
      %v3388 = vshll.u32 %v3244, 16
      %v3390 = vrot.slane %v3388, 5
      %v3391 = vsel %vm292, %v3386, %v3390
      %v3393 = vshrl.u32 %v3245, 16
      %v3395 = vrot.slane %v3393, 4
      %v3396 = vshll.u32 %v3245, 16
      %v3398 = vrot.slane %v3396, 5
      %v3399 = vor.u32 %v3395, %v3398
      %v3400 = vrot.slane %v3399, 4
      %v3402 = vshll.u32 %v3246, 16
      %v3404 = vrot.slane %v3402, 5
      %v3405 = vsel %vm292, %v3400, %v3404
      %v3406 = vshrl.u32 %v3246, 16
      %v3408 = vrot.slane %v3406, 4
      %v3409 = vor.u32 %v3408, %v3404
      %v3410 = vrot.slane %v3409, 4
      %v3412 = vshll.u32 %v3247, 16
      %v3414 = vrot.slane %v3412, 5
      %v3415 = vsel %vm292, %v3410, %v3414
      %v3417 = vshrl.u32 %v3248, 16
      %v3419 = vrot.slane %v3417, 4
      %v3420 = vshll.u32 %v3248, 16
      %v3422 = vrot.slane %v3420, 5
      %v3423 = vor.u32 %v3419, %v3422
      %v3424 = vrot.slane %v3423, 4
      %v3426 = vshll.u32 %v3249, 16
      %v3428 = vrot.slane %v3426, 5
      %v3429 = vsel %vm292, %v3424, %v3428
      %v3430 = vshrl.u32 %v3249, 16
      %v3432 = vrot.slane %v3430, 4
      %v3433 = vor.u32 %v3432, %v3428
      %v3434 = vrot.slane %v3433, 4
      %v3436 = vshll.u32 %v3250, 16
      %v3438 = vrot.slane %v3436, 5
      %v3439 = vsel %vm292, %v3434, %v3438
      %v3441 = vshrl.u32 %v3251, 16
      %v3443 = vrot.slane %v3441, 4
      %v3444 = vshll.u32 %v3251, 16
      %v3446 = vrot.slane %v3444, 5
      %v3447 = vor.u32 %v3443, %v3446
      %v3448 = vrot.slane %v3447, 4
      %v3450 = vshll.u32 %v3252, 16
      %v3452 = vrot.slane %v3450, 5
      %v3453 = vsel %vm292, %v3448, %v3452
      %v3454 = vshrl.u32 %v3252, 16
      %v3456 = vrot.slane %v3454, 4
      %v3457 = vor.u32 %v3456, %v3452
      %v3458 = vrot.slane %v3457, 4
      %v3460 = vshll.u32 %v3253, 16
      %v3462 = vrot.slane %v3460, 5
      %v3463 = vsel %vm292, %v3458, %v3462
      %v3465 = vshrl.u32 %v3254, 16
      %v3467 = vrot.slane %v3465, 4
      %v3468 = vshll.u32 %v3254, 16
      %v3470 = vrot.slane %v3468, 5
      %v3471 = vor.u32 %v3467, %v3470
      %v3472 = vrot.slane %v3471, 4
      %v3474 = vshll.u32 %v3255, 16
      %v3476 = vrot.slane %v3474, 5
      %v3477 = vsel %vm292, %v3472, %v3476
      %v3478 = vshrl.u32 %v3255, 16
      %v3480 = vrot.slane %v3478, 4
      %v3481 = vor.u32 %v3480, %v3476
      %v3482 = vrot.slane %v3481, 4
      %v3484 = vshll.u32 %v3256, 16
      %v3486 = vrot.slane %v3484, 5
      %v3487 = vsel %vm292, %v3482, %v3486
      %v3489 = vshrl.u32 %v3257, 16
      %v3491 = vrot.slane %v3489, 4
      %v3492 = vshll.u32 %v3257, 16
      %v3494 = vrot.slane %v3492, 5
      %v3495 = vor.u32 %v3491, %v3494
      %v3496 = vrot.slane %v3495, 4
      %v3498 = vshll.u32 %v3258, 16
      %v3500 = vrot.slane %v3498, 5
      %v3501 = vsel %vm292, %v3496, %v3500
      %v3502 = vshrl.u32 %v3258, 16
      %v3504 = vrot.slane %v3502, 4
      %v3505 = vor.u32 %v3504, %v3500
      %v3506 = vrot.slane %v3505, 4
      %v3508 = vshll.u32 %v3259, 16
      %v3510 = vrot.slane %v3508, 5
      %v3511 = vsel %vm292, %v3506, %v3510
      %v3513 = vshrl.u32 %v3260, 16
      %v3515 = vrot.slane %v3513, 4
      %v3516 = vshll.u32 %v3260, 16
      %v3518 = vrot.slane %v3516, 5
      %v3519 = vor.u32 %v3515, %v3518
      %v3520 = vrot.slane %v3519, 4
      %v3522 = vshll.u32 %v3261, 16
      %v3524 = vrot.slane %v3522, 5
      %v3525 = vsel %vm292, %v3520, %v3524
      %v3526 = vshrl.u32 %v3261, 16
      %v3528 = vrot.slane %v3526, 4
      %v3529 = vor.u32 %v3528, %v3524
      %v3530 = vrot.slane %v3529, 4
      %v3532 = vshll.u32 %v3262, 16
      %v3534 = vrot.slane %v3532, 5
      %v3535 = vsel %vm292, %v3530, %v3534
      %v3537 = vshrl.u32 %v3263, 16
      %v3539 = vrot.slane %v3537, 4
      %v3540 = vshll.u32 %v3263, 16
      %v3542 = vrot.slane %v3540, 5
      %v3543 = vor.u32 %v3539, %v3542
      %v3544 = vrot.slane %v3543, 4
      %v3546 = vshll.u32 %v3264, 16
      %v3548 = vrot.slane %v3546, 5
      %v3549 = vsel %vm292, %v3544, %v3548
      %v3550 = vshrl.u32 %v3264, 16
      %v3552 = vrot.slane %v3550, 4
      %v3553 = vor.u32 %v3552, %v3548
      %v3554 = vrot.slane %v3553, 4
      %v3556 = vshll.u32 %v3265, 16
      %v3558 = vrot.slane %v3556, 5
      %v3559 = vsel %vm292, %v3554, %v3558
      %v3561 = vshrl.u32 %v3266, 16
      %v3563 = vrot.slane %v3561, 4
      %v3564 = vshll.u32 %v3266, 16
      %v3566 = vrot.slane %v3564, 5
      %v3567 = vor.u32 %v3563, %v3566
      %v3568 = vrot.slane %v3567, 4
      %v3570 = vshll.u32 %v3267, 16
      %v3572 = vrot.slane %v3570, 5
      %v3573 = vsel %vm292, %v3568, %v3572
      %v3574 = vshrl.u32 %v3267, 16
      %v3576 = vrot.slane %v3574, 4
      %v3577 = vor.u32 %v3576, %v3572
      %v3578 = vrot.slane %v3577, 4
      %v3580 = vshll.u32 %v3268, 16
      %v3582 = vrot.slane %v3580, 5
      %v3583 = vsel %vm292, %v3578, %v3582
      %v3585 = vshrl.u32 %v3269, 16
      %v3587 = vrot.slane %v3585, 4
      %v3588 = vshll.u32 %v3269, 16
      %v3590 = vrot.slane %v3588, 5
      %v3591 = vor.u32 %v3587, %v3590
      %v3592 = vrot.slane %v3591, 4
      %v3594 = vshll.u32 %v3270, 16
      %v3596 = vrot.slane %v3594, 5
      %v3597 = vsel %vm292, %v3592, %v3596
      %v3598 = vshrl.u32 %v3270, 16
      %v3600 = vrot.slane %v3598, 4
      %v3601 = vor.u32 %v3600, %v3596
      %v3602 = vrot.slane %v3601, 4
      %v3604 = vshll.u32 %v3271, 16
      %v3606 = vrot.slane %v3604, 5
      %v3607 = vsel %vm292, %v3602, %v3606
      %s3608 = scalar_lea.vmem %s224, 14
      %v3609 = vld [vmem:[%s3608] sm:$0x3]
      %v3610 = vunpack.c.l.b16 %v3285
      %v3611 = vunpack.c.l.b16 %v3295
      %v3612 = vunpack.c.l.b16 %v3309
      %v3613 = vunpack.c.l.b16 %v3319
      %v3614 = vunpack.c.l.b16 %v3333
      %v3615 = vunpack.c.l.b16 %v3343
      %v3616 = vunpack.c.l.b16 %v3357
      %v3617 = vunpack.c.l.b16 %v3367
      %v3618 = vunpack.c.l.b16 %v3381
      %v3619 = vunpack.c.l.b16 %v3391
      %v3620 = vunpack.c.l.b16 %v3405
      %v3621 = vunpack.c.l.b16 %v3415
      %v3622 = vunpack.c.l.b16 %v3429
      %v3623 = vunpack.c.l.b16 %v3439
      %v3624 = vunpack.c.l.b16 %v3453
      %v3625 = vunpack.c.l.b16 %v3463
      %v3626 = vunpack.c.l.b16 %v3477
      %v3627 = vunpack.c.l.b16 %v3487
      %v3628 = vunpack.c.l.b16 %v3501
      %v3629 = vunpack.c.l.b16 %v3511
      %v3630 = vunpack.c.l.b16 %v3525
      %v3631 = vunpack.c.l.b16 %v3535
      %v3632 = vunpack.c.l.b16 %v3549
      %v3633 = vunpack.c.l.b16 %v3559
      %v3634 = vunpack.c.l.b16 %v3573
      %v3635 = vunpack.c.l.b16 %v3583
      %v3636 = vunpack.c.l.b16 %v3597
      %v3637 = vunpack.c.l.b16 %v3607
      %v3638 = vpack.c.b16 %v3611, %v3610
      %v3639 = vpack.c.b16 %v3613, %v3612
      %v3640 = vpack.c.b16 %v3615, %v3614
      %v3641 = vpack.c.b16 %v3617, %v3616
      %v3642 = vpack.c.b16 %v3619, %v3618
      %v3643 = vpack.c.b16 %v3621, %v3620
      %v3644 = vpack.c.b16 %v3623, %v3622
      %v3645 = vpack.c.b16 %v3625, %v3624
      %v3646 = vpack.c.b16 %v3627, %v3626
      %v3647 = vpack.c.b16 %v3629, %v3628
      %v3648 = vpack.c.b16 %v3631, %v3630
      %v3649 = vpack.c.b16 %v3633, %v3632
      %v3650 = vpack.c.b16 %v3635, %v3634
      %v3651 = vpack.c.b16 %v3637, %v3636
      %v3653 = vsel %vm673, %v3638, 0
      %v3656 = vsel %vm673, %v3639, 0
      %v3659 = vsel %vm673, %v3640, 0
      %v3662 = vsel %vm673, %v3641, 0
      %v3665 = vsel %vm673, %v3642, 0
      %v3668 = vsel %vm673, %v3643, 0
      %v3671 = vsel %vm673, %v3644, 0
      %v3674 = vsel %vm673, %v3645, 0
      %v3677 = vsel %vm673, %v3646, 0
      %v3680 = vsel %vm673, %v3647, 0
      %v3683 = vsel %vm673, %v3648, 0
      %v3686 = vsel %vm673, %v3649, 0
      %v3689 = vsel %vm673, %v3650, 0
      %v3692 = vsel %vm673, %v3651, 0
      %v3695 = vsel %vm716, %v3609, 0
      %3697 = vmatprep.subr.bf16.mxu0 0
      %3698 = vmatpush1.bf16.msra.mxu0 %v3695
      %3699 = vmatprep.subr.bf16.mxu0 0
      %3700 = vmatpush1.bf16.msra.mxu0 0
      %3701 = vmatprep.subr.bf16.mxu0 0
      %3702 = vmatpush1.bf16.msra.mxu0 0
      %3703 = vmatprep.subr.bf16.mxu0 0
      %3704 = vmatpush1.bf16.msra.mxu0 0
      %3705 = vmatprep.subr.bf16.mxu0 0
      %3706 = vmatpush1.bf16.msra.mxu0 0
      %3707 = vmatprep.subr.bf16.mxu0 0
      %3708 = vmatpush1.bf16.msra.mxu0 0
      %3709 = vmatprep.subr.bf16.mxu0 0
      %3710 = vmatpush1.bf16.msra.mxu0 0
      %3711 = vmatprep.subr.bf16.mxu0 0
      %3712 = vmatpush1.bf16.msra.mxu0 0
      %3713 = vmatprep.subr.bf16.mxu0 0
      %3714 = vmatpush1.bf16.msra.mxu0 0
      %3715 = vmatprep.subr.bf16.mxu0 0
      %3716 = vmatpush1.bf16.msra.mxu0 0
      %3717 = vmatprep.subr.bf16.mxu0 0
      %3718 = vmatpush1.bf16.msra.mxu0 0
      %3719 = vmatprep.subr.bf16.mxu0 0
      %3720 = vmatpush1.bf16.msra.mxu0 0
      %3721 = vmatprep.subr.bf16.mxu0 0
      %3722 = vmatpush1.bf16.msra.mxu0 0
      %3723 = vmatprep.subr.bf16.mxu0 0
      %3724 = vmatpush1.bf16.msra.mxu0 0
      %3725 = vmatprep.subr.bf16.mxu0 0
      %3726 = vmatpush1.bf16.msra.mxu0 0
      %3727 = vmatprep.subr.bf16.mxu0 0
      %3728 = vmatpush1.bf16.msra.mxu0 0
      %3729 = vmatprep.mubr.bf16.mxu0 0
      %3730 = vmatmul.mubr.bf16.gmra.mrb[0].mxu0 %v3653
      %v3731 = vpop.f32.mrb[0].mxu0
      %v3732 = vadd.f32 0.0, %v3731
      %v3733 = vpop.f32.mrb[0].mxu0
      %v3734 = vpop.f32.mrb[0].mxu0
      %v3735 = vadd.f32 0.0, %v3734
      %v3736 = vpop.f32.mrb[0].mxu0
      %3737 = vmatprep.mubr.bf16.mxu0 0
      %3738 = vmatmul.mubr.bf16.gmra.mrb[0].mxu0 %v3656
      %v3739 = vpop.f32.mrb[0].mxu0
      %v3740 = vadd.f32 0.0, %v3739
      %v3741 = vpop.f32.mrb[0].mxu0
      %v3742 = vpop.f32.mrb[0].mxu0
      %v3743 = vadd.f32 0.0, %v3742
      %v3744 = vpop.f32.mrb[0].mxu0
      %3745 = vmatprep.mubr.bf16.mxu0 0
      %3746 = vmatmul.mubr.bf16.gmra.mrb[0].mxu0 %v3659
      %v3747 = vpop.f32.mrb[0].mxu0
      %v3748 = vadd.f32 0.0, %v3747
      %v3749 = vpop.f32.mrb[0].mxu0
      %v3750 = vpop.f32.mrb[0].mxu0
      %v3751 = vadd.f32 0.0, %v3750
      %v3752 = vpop.f32.mrb[0].mxu0
      %3753 = vmatprep.mubr.bf16.mxu0 0
      %3754 = vmatmul.mubr.bf16.gmra.mrb[0].mxu0 %v3662
      %v3755 = vpop.f32.mrb[0].mxu0
      %v3756 = vadd.f32 0.0, %v3755
      %v3757 = vpop.f32.mrb[0].mxu0
      %v3758 = vpop.f32.mrb[0].mxu0
      %v3759 = vadd.f32 0.0, %v3758
      %v3760 = vpop.f32.mrb[0].mxu0
      %3761 = vmatprep.mubr.bf16.mxu0 0
      %3762 = vmatmul.mubr.bf16.gmra.mrb[0].mxu0 %v3665
      %v3763 = vpop.f32.mrb[0].mxu0
      %v3764 = vadd.f32 0.0, %v3763
      %v3765 = vpop.f32.mrb[0].mxu0
      %v3766 = vpop.f32.mrb[0].mxu0
      %v3767 = vadd.f32 0.0, %v3766
      %v3768 = vpop.f32.mrb[0].mxu0
      %3769 = vmatprep.mubr.bf16.mxu0 0
      %3770 = vmatmul.mubr.bf16.gmra.mrb[0].mxu0 %v3668
      %v3771 = vpop.f32.mrb[0].mxu0
      %v3772 = vadd.f32 0.0, %v3771
      %v3773 = vpop.f32.mrb[0].mxu0
      %v3774 = vpop.f32.mrb[0].mxu0
      %v3775 = vadd.f32 0.0, %v3774
      %v3776 = vpop.f32.mrb[0].mxu0
      %3777 = vmatprep.mubr.bf16.mxu0 0
      %3778 = vmatmul.mubr.bf16.gmra.mrb[0].mxu0 %v3671
      %v3779 = vpop.f32.mrb[0].mxu0
      %v3780 = vadd.f32 0.0, %v3779
      %v3781 = vpop.f32.mrb[0].mxu0
      %v3782 = vpop.f32.mrb[0].mxu0
      %v3783 = vadd.f32 0.0, %v3782
      %v3784 = vpop.f32.mrb[0].mxu0
      %3785 = vmatprep.mubr.bf16.mxu0 0
      %3786 = vmatmul.mubr.bf16.gmra.mrb[0].mxu0 %v3674
      %v3787 = vpop.f32.mrb[0].mxu0
      %v3788 = vadd.f32 0.0, %v3787
      %v3789 = vpop.f32.mrb[0].mxu0
      %v3790 = vpop.f32.mrb[0].mxu0
      %v3791 = vadd.f32 0.0, %v3790
      %v3792 = vpop.f32.mrb[0].mxu0
      %3793 = vmatprep.mubr.bf16.mxu0 0
      %3794 = vmatmul.mubr.bf16.gmra.mrb[0].mxu0 %v3677
      %v3795 = vpop.f32.mrb[0].mxu0
      %v3796 = vadd.f32 0.0, %v3795
      %v3797 = vpop.f32.mrb[0].mxu0
      %v3798 = vpop.f32.mrb[0].mxu0
      %v3799 = vadd.f32 0.0, %v3798
      %v3800 = vpop.f32.mrb[0].mxu0
      %3801 = vmatprep.mubr.bf16.mxu0 0
      %3802 = vmatmul.mubr.bf16.gmra.mrb[0].mxu0 %v3680
      %v3803 = vpop.f32.mrb[0].mxu0
      %v3804 = vadd.f32 0.0, %v3803
      %v3805 = vpop.f32.mrb[0].mxu0
      %v3806 = vpop.f32.mrb[0].mxu0
      %v3807 = vadd.f32 0.0, %v3806
      %v3808 = vpop.f32.mrb[0].mxu0
      %3809 = vmatprep.mubr.bf16.mxu0 0
      %3810 = vmatmul.mubr.bf16.gmra.mrb[0].mxu0 %v3683
      %v3811 = vpop.f32.mrb[0].mxu0
      %v3812 = vadd.f32 0.0, %v3811
      %v3813 = vpop.f32.mrb[0].mxu0
      %v3814 = vpop.f32.mrb[0].mxu0
      %v3815 = vadd.f32 0.0, %v3814
      %v3816 = vpop.f32.mrb[0].mxu0
      %3817 = vmatprep.mubr.bf16.mxu0 0
      %3818 = vmatmul.mubr.bf16.gmra.mrb[0].mxu0 %v3686
      %v3819 = vpop.f32.mrb[0].mxu0
      %v3820 = vadd.f32 0.0, %v3819
      %v3821 = vpop.f32.mrb[0].mxu0
      %v3822 = vpop.f32.mrb[0].mxu0
      %v3823 = vadd.f32 0.0, %v3822
      %v3824 = vpop.f32.mrb[0].mxu0
      %3825 = vmatprep.mubr.bf16.mxu0 0
      %3826 = vmatmul.mubr.bf16.gmra.mrb[0].mxu0 %v3689
      %v3827 = vpop.f32.mrb[0].mxu0
      %v3828 = vadd.f32 0.0, %v3827
      %v3829 = vpop.f32.mrb[0].mxu0
      %v3830 = vpop.f32.mrb[0].mxu0
      %v3831 = vadd.f32 0.0, %v3830
      %v3832 = vpop.f32.mrb[0].mxu0
      %3833 = vmatprep.mubr.bf16.mxu0 0
      %3834 = vmatmul.mubr.bf16.gmra.mrb[0].mxu0 %v3692
      %v3835 = vpop.f32.mrb[0].mxu0
      %v3836 = vadd.f32 0.0, %v3835
      %v3837 = vpop.f32.mrb[0].mxu0
      %v3838 = vpop.f32.mrb[0].mxu0
      %v3839 = vadd.f32 0.0, %v3838
      %v3840 = vpop.f32.mrb[0].mxu0
      %3841 = vdwg.mxu0
      %v3842 = vadd.f32 %v3202, %v3732
      %v3843 = vadd.f32 %v3203, %v3735
      %v3844 = vadd.f32 %v3204, %v3740
      %v3845 = vadd.f32 %v3205, %v3743
      %v3846 = vadd.f32 %v3206, %v3748
      %v3847 = vadd.f32 %v3207, %v3751
      %v3848 = vadd.f32 %v3208, %v3756
      %v3849 = vadd.f32 %v3209, %v3759
      %v3850 = vadd.f32 %v3210, %v3764
      %v3851 = vadd.f32 %v3211, %v3767
      %v3852 = vadd.f32 %v3212, %v3772
      %v3853 = vadd.f32 %v3213, %v3775
      %v3854 = vadd.f32 %v3214, %v3780
      %v3855 = vadd.f32 %v3215, %v3783
      %v3856 = vadd.f32 %v3216, %v3788
      %v3857 = vadd.f32 %v3217, %v3791
      %v3858 = vadd.f32 %v3218, %v3796
      %v3859 = vadd.f32 %v3219, %v3799
      %v3860 = vadd.f32 %v3220, %v3804
      %v3861 = vadd.f32 %v3221, %v3807
      %v3862 = vadd.f32 %v3222, %v3812
      %v3863 = vadd.f32 %v3223, %v3815
      %v3864 = vadd.f32 %v3224, %v3820
      %v3865 = vadd.f32 %v3225, %v3823
      %v3866 = vadd.f32 %v3226, %v3828
      %v3867 = vadd.f32 %v3227, %v3831
      %v3868 = vadd.f32 %v3228, %v3836
      %v3869 = vadd.f32 %v3229, %v3839
      %v3870 = vld [vmem:[%s2911] sm:$0xe]
      %v3871 = vld [vmem:[%s2911 + $0xc] sm:$0xe]
      %v3872 = vld [vmem:[%s2911 + $0x18] sm:$0xe]
      %v3873 = vld [vmem:[%s2911 + $0x24] sm:$0xe]
      %v3874 = vld [vmem:[%s2911 + $0x30] sm:$0xe]
      %v3875 = vld [vmem:[%s2911 + $0x3c] sm:$0xe]
      %v3876 = vld [vmem:[%s2911 + $0x48] sm:$0xe]
      %v3877 = vld [vmem:[%s2911 + $0x54] sm:$0xe]
      %v3878 = vld [vmem:[%s2911 + $0x60] sm:$0xe]
      %v3879 = vld [vmem:[%s2911 + $0x6c] sm:$0xe]
      %v3880 = vld [vmem:[%s2911 + $0x78] sm:$0xe]
      %v3881 = vld [vmem:[%s2911 + $0x84] sm:$0xe]
      %v3882 = vld [vmem:[%s2911 + $0x90] sm:$0xe]
      %v3883 = vld [vmem:[%s2911 + $0x9c] sm:$0xe]
      %v3926 = vrot.slane %v3870, 5
      %v3927 = vrot.slane %v3926, 4
      %v3928 = vrot.slane %v3231, 5
      %v3929 = vsel %vm1169, %v3927, %v3928
      %v3930 = vrot.slane %v3928, 4
      %v3931 = vrot.slane %v3232, 5
      %v3932 = vsel %vm1169, %v3930, %v3931
      %v3933 = vrot.slane %v3871, 5
      %v3934 = vrot.slane %v3933, 4
      %v3935 = vrot.slane %v3234, 5
      %v3936 = vsel %vm1169, %v3934, %v3935
      %v3937 = vrot.slane %v3935, 4
      %v3938 = vrot.slane %v3235, 5
      %v3939 = vsel %vm1169, %v3937, %v3938
      %v3940 = vrot.slane %v3872, 5
      %v3941 = vrot.slane %v3940, 4
      %v3942 = vrot.slane %v3237, 5
      %v3943 = vsel %vm1169, %v3941, %v3942
      %v3944 = vrot.slane %v3942, 4
      %v3945 = vrot.slane %v3238, 5
      %v3946 = vsel %vm1169, %v3944, %v3945
      %v3947 = vrot.slane %v3873, 5
      %v3948 = vrot.slane %v3947, 4
      %v3949 = vrot.slane %v3240, 5
      %v3950 = vsel %vm1169, %v3948, %v3949
      %v3951 = vrot.slane %v3949, 4
      %v3952 = vrot.slane %v3241, 5
      %v3953 = vsel %vm1169, %v3951, %v3952
      %v3954 = vrot.slane %v3874, 5
      %v3955 = vrot.slane %v3954, 4
      %v3956 = vrot.slane %v3243, 5
      %v3957 = vsel %vm1169, %v3955, %v3956
      %v3958 = vrot.slane %v3956, 4
      %v3959 = vrot.slane %v3244, 5
      %v3960 = vsel %vm1169, %v3958, %v3959
      %v3961 = vrot.slane %v3875, 5
      %v3962 = vrot.slane %v3961, 4
      %v3963 = vrot.slane %v3246, 5
      %v3964 = vsel %vm1169, %v3962, %v3963
      %v3965 = vrot.slane %v3963, 4
      %v3966 = vrot.slane %v3247, 5
      %v3967 = vsel %vm1169, %v3965, %v3966
      %v3968 = vrot.slane %v3876, 5
      %v3969 = vrot.slane %v3968, 4
      %v3970 = vrot.slane %v3249, 5
      %v3971 = vsel %vm1169, %v3969, %v3970
      %v3972 = vrot.slane %v3970, 4
      %v3973 = vrot.slane %v3250, 5
      %v3974 = vsel %vm1169, %v3972, %v3973
      %v3975 = vrot.slane %v3877, 5
      %v3976 = vrot.slane %v3975, 4
      %v3977 = vrot.slane %v3252, 5
      %v3978 = vsel %vm1169, %v3976, %v3977
      %v3979 = vrot.slane %v3977, 4
      %v3980 = vrot.slane %v3253, 5
      %v3981 = vsel %vm1169, %v3979, %v3980
      %v3982 = vrot.slane %v3878, 5
      %v3983 = vrot.slane %v3982, 4
      %v3984 = vrot.slane %v3255, 5
      %v3985 = vsel %vm1169, %v3983, %v3984
      %v3986 = vrot.slane %v3984, 4
      %v3987 = vrot.slane %v3256, 5
      %v3988 = vsel %vm1169, %v3986, %v3987
      %v3989 = vrot.slane %v3879, 5
      %v3990 = vrot.slane %v3989, 4
      %v3991 = vrot.slane %v3258, 5
      %v3992 = vsel %vm1169, %v3990, %v3991
      %v3993 = vrot.slane %v3991, 4
      %v3994 = vrot.slane %v3259, 5
      %v3995 = vsel %vm1169, %v3993, %v3994
      %v3996 = vrot.slane %v3880, 5
      %v3997 = vrot.slane %v3996, 4
      %v3998 = vrot.slane %v3261, 5
      %v3999 = vsel %vm1169, %v3997, %v3998
      %v4000 = vrot.slane %v3998, 4
      %v4001 = vrot.slane %v3262, 5
      %v4002 = vsel %vm1169, %v4000, %v4001
      %v4003 = vrot.slane %v3881, 5
      %v4004 = vrot.slane %v4003, 4
      %v4005 = vrot.slane %v3264, 5
      %v4006 = vsel %vm1169, %v4004, %v4005
      %v4007 = vrot.slane %v4005, 4
      %v4008 = vrot.slane %v3265, 5
      %v4009 = vsel %vm1169, %v4007, %v4008
      %v4010 = vrot.slane %v3882, 5
      %v4011 = vrot.slane %v4010, 4
      %v4012 = vrot.slane %v3267, 5
      %v4013 = vsel %vm1169, %v4011, %v4012
      %v4014 = vrot.slane %v4012, 4
      %v4015 = vrot.slane %v3268, 5
      %v4016 = vsel %vm1169, %v4014, %v4015
      %v4017 = vrot.slane %v3883, 5
      %v4018 = vrot.slane %v4017, 4
      %v4019 = vrot.slane %v3270, 5
      %v4020 = vsel %vm1169, %v4018, %v4019
      %v4021 = vrot.slane %v4019, 4
      %v4022 = vrot.slane %v3271, 5
      %v4023 = vsel %vm1169, %v4021, %v4022
      %s4024 = scalar_lea.vmem %s224, 16
      %v4025 = vld [vmem:[%s4024] sm:$0x3]
      %v4026 = vunpack.c.l.b16 %v3929
      %v4027 = vunpack.c.l.b16 %v3932
      %v4028 = vunpack.c.l.b16 %v3936
      %v4029 = vunpack.c.l.b16 %v3939
      %v4030 = vunpack.c.l.b16 %v3943
      %v4031 = vunpack.c.l.b16 %v3946
      %v4032 = vunpack.c.l.b16 %v3950
      %v4033 = vunpack.c.l.b16 %v3953
      %v4034 = vunpack.c.l.b16 %v3957
      %v4035 = vunpack.c.l.b16 %v3960
      %v4036 = vunpack.c.l.b16 %v3964
      %v4037 = vunpack.c.l.b16 %v3967
      %v4038 = vunpack.c.l.b16 %v3971
      %v4039 = vunpack.c.l.b16 %v3974
      %v4040 = vunpack.c.l.b16 %v3978
      %v4041 = vunpack.c.l.b16 %v3981
      %v4042 = vunpack.c.l.b16 %v3985
      %v4043 = vunpack.c.l.b16 %v3988
      %v4044 = vunpack.c.l.b16 %v3992
      %v4045 = vunpack.c.l.b16 %v3995
      %v4046 = vunpack.c.l.b16 %v3999
      %v4047 = vunpack.c.l.b16 %v4002
      %v4048 = vunpack.c.l.b16 %v4006
      %v4049 = vunpack.c.l.b16 %v4009
      %v4050 = vunpack.c.l.b16 %v4013
      %v4051 = vunpack.c.l.b16 %v4016
      %v4052 = vunpack.c.l.b16 %v4020
      %v4053 = vunpack.c.l.b16 %v4023
      %v4054 = vpack.c.b16 %v4027, %v4026
      %v4055 = vpack.c.b16 %v4029, %v4028
      %v4056 = vpack.c.b16 %v4031, %v4030
      %v4057 = vpack.c.b16 %v4033, %v4032
      %v4058 = vpack.c.b16 %v4035, %v4034
      %v4059 = vpack.c.b16 %v4037, %v4036
      %v4060 = vpack.c.b16 %v4039, %v4038
      %v4061 = vpack.c.b16 %v4041, %v4040
      %v4062 = vpack.c.b16 %v4043, %v4042
      %v4063 = vpack.c.b16 %v4045, %v4044
      %v4064 = vpack.c.b16 %v4047, %v4046
      %v4065 = vpack.c.b16 %v4049, %v4048
      %v4066 = vpack.c.b16 %v4051, %v4050
      %v4067 = vpack.c.b16 %v4053, %v4052
      %v4069 = vsel %vm673, %v4054, 0
      %v4072 = vsel %vm673, %v4055, 0
      %v4075 = vsel %vm673, %v4056, 0
      %v4078 = vsel %vm673, %v4057, 0
      %v4081 = vsel %vm673, %v4058, 0
      %v4084 = vsel %vm673, %v4059, 0
      %v4087 = vsel %vm673, %v4060, 0
      %v4090 = vsel %vm673, %v4061, 0
      %v4093 = vsel %vm673, %v4062, 0
      %v4096 = vsel %vm673, %v4063, 0
      %v4099 = vsel %vm673, %v4064, 0
      %v4102 = vsel %vm673, %v4065, 0
      %v4105 = vsel %vm673, %v4066, 0
      %v4108 = vsel %vm673, %v4067, 0
      %v4111 = vsel %vm716, %v4025, 0
      %4113 = vmatprep.subr.bf16.mxu0 0
      %4114 = vmatpush1.bf16.msra.mxu0 %v4111
      %4115 = vmatprep.subr.bf16.mxu0 0
      %4116 = vmatpush1.bf16.msra.mxu0 0
      %4117 = vmatprep.subr.bf16.mxu0 0
      %4118 = vmatpush1.bf16.msra.mxu0 0
      %4119 = vmatprep.subr.bf16.mxu0 0
      %4120 = vmatpush1.bf16.msra.mxu0 0
      %4121 = vmatprep.subr.bf16.mxu0 0
      %4122 = vmatpush1.bf16.msra.mxu0 0
      %4123 = vmatprep.subr.bf16.mxu0 0
      %4124 = vmatpush1.bf16.msra.mxu0 0
      %4125 = vmatprep.subr.bf16.mxu0 0
      %4126 = vmatpush1.bf16.msra.mxu0 0
      %4127 = vmatprep.subr.bf16.mxu0 0
      %4128 = vmatpush1.bf16.msra.mxu0 0
      %4129 = vmatprep.subr.bf16.mxu0 0
      %4130 = vmatpush1.bf16.msra.mxu0 0
      %4131 = vmatprep.subr.bf16.mxu0 0
      %4132 = vmatpush1.bf16.msra.mxu0 0
      %4133 = vmatprep.subr.bf16.mxu0 0
      %4134 = vmatpush1.bf16.msra.mxu0 0
      %4135 = vmatprep.subr.bf16.mxu0 0
      %4136 = vmatpush1.bf16.msra.mxu0 0
      %4137 = vmatprep.subr.bf16.mxu0 0
      %4138 = vmatpush1.bf16.msra.mxu0 0
      %4139 = vmatprep.subr.bf16.mxu0 0
      %4140 = vmatpush1.bf16.msra.mxu0 0
      %4141 = vmatprep.subr.bf16.mxu0 0
      %4142 = vmatpush1.bf16.msra.mxu0 0
      %4143 = vmatprep.subr.bf16.mxu0 0
      %4144 = vmatpush1.bf16.msra.mxu0 0
      %4145 = vmatprep.mubr.bf16.mxu0 0
      %4146 = vmatmul.mubr.bf16.gmra.mrb[0].mxu0 %v4069
      %v4147 = vpop.f32.mrb[0].mxu0
      %v4148 = vadd.f32 0.0, %v4147
      %v4149 = vpop.f32.mrb[0].mxu0
      %v4150 = vpop.f32.mrb[0].mxu0
      %v4151 = vadd.f32 0.0, %v4150
      %v4152 = vpop.f32.mrb[0].mxu0
      %4153 = vmatprep.mubr.bf16.mxu0 0
      %4154 = vmatmul.mubr.bf16.gmra.mrb[0].mxu0 %v4072
      %v4155 = vpop.f32.mrb[0].mxu0
      %v4156 = vadd.f32 0.0, %v4155
      %v4157 = vpop.f32.mrb[0].mxu0
      %v4158 = vpop.f32.mrb[0].mxu0
      %v4159 = vadd.f32 0.0, %v4158
      %v4160 = vpop.f32.mrb[0].mxu0
      %4161 = vmatprep.mubr.bf16.mxu0 0
      %4162 = vmatmul.mubr.bf16.gmra.mrb[0].mxu0 %v4075
      %v4163 = vpop.f32.mrb[0].mxu0
      %v4164 = vadd.f32 0.0, %v4163
      %v4165 = vpop.f32.mrb[0].mxu0
      %v4166 = vpop.f32.mrb[0].mxu0
      %v4167 = vadd.f32 0.0, %v4166
      %v4168 = vpop.f32.mrb[0].mxu0
      %4169 = vmatprep.mubr.bf16.mxu0 0
      %4170 = vmatmul.mubr.bf16.gmra.mrb[0].mxu0 %v4078
      %v4171 = vpop.f32.mrb[0].mxu0
      %v4172 = vadd.f32 0.0, %v4171
      %v4173 = vpop.f32.mrb[0].mxu0
      %v4174 = vpop.f32.mrb[0].mxu0
      %v4175 = vadd.f32 0.0, %v4174
      %v4176 = vpop.f32.mrb[0].mxu0
      %4177 = vmatprep.mubr.bf16.mxu0 0
      %4178 = vmatmul.mubr.bf16.gmra.mrb[0].mxu0 %v4081
      %v4179 = vpop.f32.mrb[0].mxu0
      %v4180 = vadd.f32 0.0, %v4179
      %v4181 = vpop.f32.mrb[0].mxu0
      %v4182 = vpop.f32.mrb[0].mxu0
      %v4183 = vadd.f32 0.0, %v4182
      %v4184 = vpop.f32.mrb[0].mxu0
      %4185 = vmatprep.mubr.bf16.mxu0 0
      %4186 = vmatmul.mubr.bf16.gmra.mrb[0].mxu0 %v4084
      %v4187 = vpop.f32.mrb[0].mxu0
      %v4188 = vadd.f32 0.0, %v4187
      %v4189 = vpop.f32.mrb[0].mxu0
      %v4190 = vpop.f32.mrb[0].mxu0
      %v4191 = vadd.f32 0.0, %v4190
      %v4192 = vpop.f32.mrb[0].mxu0
      %4193 = vmatprep.mubr.bf16.mxu0 0
      %4194 = vmatmul.mubr.bf16.gmra.mrb[0].mxu0 %v4087
      %v4195 = vpop.f32.mrb[0].mxu0
      %v4196 = vadd.f32 0.0, %v4195
      %v4197 = vpop.f32.mrb[0].mxu0
      %v4198 = vpop.f32.mrb[0].mxu0
      %v4199 = vadd.f32 0.0, %v4198
      %v4200 = vpop.f32.mrb[0].mxu0
      %4201 = vmatprep.mubr.bf16.mxu0 0
      %4202 = vmatmul.mubr.bf16.gmra.mrb[0].mxu0 %v4090
      %v4203 = vpop.f32.mrb[0].mxu0
      %v4204 = vadd.f32 0.0, %v4203
      %v4205 = vpop.f32.mrb[0].mxu0
      %v4206 = vpop.f32.mrb[0].mxu0
      %v4207 = vadd.f32 0.0, %v4206
      %v4208 = vpop.f32.mrb[0].mxu0
      %4209 = vmatprep.mubr.bf16.mxu0 0
      %4210 = vmatmul.mubr.bf16.gmra.mrb[0].mxu0 %v4093
      %v4211 = vpop.f32.mrb[0].mxu0
      %v4212 = vadd.f32 0.0, %v4211
      %v4213 = vpop.f32.mrb[0].mxu0
      %v4214 = vpop.f32.mrb[0].mxu0
      %v4215 = vadd.f32 0.0, %v4214
      %v4216 = vpop.f32.mrb[0].mxu0
      %4217 = vmatprep.mubr.bf16.mxu0 0
      %4218 = vmatmul.mubr.bf16.gmra.mrb[0].mxu0 %v4096
      %v4219 = vpop.f32.mrb[0].mxu0
      %v4220 = vadd.f32 0.0, %v4219
      %v4221 = vpop.f32.mrb[0].mxu0
      %v4222 = vpop.f32.mrb[0].mxu0
      %v4223 = vadd.f32 0.0, %v4222
      %v4224 = vpop.f32.mrb[0].mxu0
      %4225 = vmatprep.mubr.bf16.mxu0 0
      %4226 = vmatmul.mubr.bf16.gmra.mrb[0].mxu0 %v4099
      %v4227 = vpop.f32.mrb[0].mxu0
      %v4228 = vadd.f32 0.0, %v4227
      %v4229 = vpop.f32.mrb[0].mxu0
      %v4230 = vpop.f32.mrb[0].mxu0
      %v4231 = vadd.f32 0.0, %v4230
      %v4232 = vpop.f32.mrb[0].mxu0
      %4233 = vmatprep.mubr.bf16.mxu0 0
      %4234 = vmatmul.mubr.bf16.gmra.mrb[0].mxu0 %v4102
      %v4235 = vpop.f32.mrb[0].mxu0
      %v4236 = vadd.f32 0.0, %v4235
      %v4237 = vpop.f32.mrb[0].mxu0
      %v4238 = vpop.f32.mrb[0].mxu0
      %v4239 = vadd.f32 0.0, %v4238
      %v4240 = vpop.f32.mrb[0].mxu0
      %4241 = vmatprep.mubr.bf16.mxu0 0
      %4242 = vmatmul.mubr.bf16.gmra.mrb[0].mxu0 %v4105
      %v4243 = vpop.f32.mrb[0].mxu0
      %v4244 = vadd.f32 0.0, %v4243
      %v4245 = vpop.f32.mrb[0].mxu0
      %v4246 = vpop.f32.mrb[0].mxu0
      %v4247 = vadd.f32 0.0, %v4246
      %v4248 = vpop.f32.mrb[0].mxu0
      %4249 = vmatprep.mubr.bf16.mxu0 0
      %4250 = vmatmul.mubr.bf16.gmra.mrb[0].mxu0 %v4108
      %v4251 = vpop.f32.mrb[0].mxu0
      %v4252 = vadd.f32 0.0, %v4251
      %v4253 = vpop.f32.mrb[0].mxu0
      %v4254 = vpop.f32.mrb[0].mxu0
      %v4255 = vadd.f32 0.0, %v4254
      %v4256 = vpop.f32.mrb[0].mxu0
      %4257 = vdwg.mxu0
      %v4258 = vadd.f32 %v3842, %v4148
      %v4259 = vadd.f32 %v3843, %v4151
      %v4260 = vadd.f32 %v3844, %v4156
      %v4261 = vadd.f32 %v3845, %v4159
      %v4262 = vadd.f32 %v3846, %v4164
      %v4263 = vadd.f32 %v3847, %v4167
      %v4264 = vadd.f32 %v3848, %v4172
      %v4265 = vadd.f32 %v3849, %v4175
      %v4266 = vadd.f32 %v3850, %v4180
      %v4267 = vadd.f32 %v3851, %v4183
      %v4268 = vadd.f32 %v3852, %v4188
      %v4269 = vadd.f32 %v3853, %v4191
      %v4270 = vadd.f32 %v3854, %v4196
      %v4271 = vadd.f32 %v3855, %v4199
      %v4272 = vadd.f32 %v3856, %v4204
      %v4273 = vadd.f32 %v3857, %v4207
      %v4274 = vadd.f32 %v3858, %v4212
      %v4275 = vadd.f32 %v3859, %v4215
      %v4276 = vadd.f32 %v3860, %v4220
      %v4277 = vadd.f32 %v3861, %v4223
      %v4278 = vadd.f32 %v3862, %v4228
      %v4279 = vadd.f32 %v3863, %v4231
      %v4280 = vadd.f32 %v3864, %v4236
      %v4281 = vadd.f32 %v3865, %v4239
      %v4282 = vadd.f32 %v3866, %v4244
      %v4283 = vadd.f32 %v3867, %v4247
      %v4284 = vadd.f32 %v3868, %v4252
      %v4285 = vadd.f32 %v3869, %v4255
      %v4286 = vld [vmem:[%s227] sm:$0x1]
      %v4288 = vlaneseq
      %v4289 = vshrl.u32 %v4288, 7
      %v4290 = vsub.s32 0, %v4289
      %v4291 = vrot.slane %v4286, %v4290
      %v4293 = vadd.f32 %v4258, %v4291
      %v4294 = vadd.f32 %v4259, %v4291
      %v4295 = vadd.f32 %v4260, %v4291
      %v4296 = vadd.f32 %v4261, %v4291
      %v4297 = vadd.f32 %v4262, %v4291
      %v4298 = vadd.f32 %v4263, %v4291
      %v4299 = vadd.f32 %v4264, %v4291
      %v4300 = vadd.f32 %v4265, %v4291
      %v4301 = vadd.f32 %v4266, %v4291
      %v4302 = vadd.f32 %v4267, %v4291
      %v4303 = vadd.f32 %v4268, %v4291
      %v4304 = vadd.f32 %v4269, %v4291
      %v4305 = vadd.f32 %v4270, %v4291
      %v4306 = vadd.f32 %v4271, %v4291
      %v4307 = vadd.f32 %v4272, %v4291
      %v4308 = vadd.f32 %v4273, %v4291
      %v4309 = vadd.f32 %v4274, %v4291
      %v4310 = vadd.f32 %v4275, %v4291
      %v4311 = vadd.f32 %v4276, %v4291
      %v4312 = vadd.f32 %v4277, %v4291
      %v4313 = vadd.f32 %v4278, %v4291
      %v4314 = vadd.f32 %v4279, %v4291
      %v4315 = vadd.f32 %v4280, %v4291
      %v4316 = vadd.f32 %v4281, %v4291
      %v4317 = vadd.f32 %v4282, %v4291
      %v4318 = vadd.f32 %v4283, %v4291
      %v4319 = vadd.f32 %v4284, %v4291
      %v4320 = vadd.f32 %v4285, %v4291
      %4321 = vst [vmem:[%s240] sm:$0xff] %v4293
      %4322 = vst [vmem:[%s240 + $0x8] sm:$0xff] %v4294
      %4323 = vst [vmem:[%s240 + $0x10] sm:$0xff] %v4295
      %4324 = vst [vmem:[%s240 + $0x18] sm:$0xff] %v4296
      %4325 = vst [vmem:[%s240 + $0x20] sm:$0xff] %v4297
      %4326 = vst [vmem:[%s240 + $0x28] sm:$0xff] %v4298
      %4327 = vst [vmem:[%s240 + $0x30] sm:$0xff] %v4299
      %4328 = vst [vmem:[%s240 + $0x38] sm:$0xff] %v4300
      %4329 = vst [vmem:[%s240 + $0x40] sm:$0xff] %v4301
      %4330 = vst [vmem:[%s240 + $0x48] sm:$0xff] %v4302
      %4331 = vst [vmem:[%s240 + $0x50] sm:$0xff] %v4303
      %4332 = vst [vmem:[%s240 + $0x58] sm:$0xff] %v4304
      %4333 = vst [vmem:[%s240 + $0x60] sm:$0xff] %v4305
      %4334 = vst [vmem:[%s240 + $0x68] sm:$0xff] %v4306
      %4335 = vst [vmem:[%s240 + $0x70] sm:$0xff] %v4307
      %4336 = vst [vmem:[%s240 + $0x78] sm:$0xff] %v4308
      %4337 = vst [vmem:[%s240 + $0x80] sm:$0xff] %v4309
      %4338 = vst [vmem:[%s240 + $0x88] sm:$0xff] %v4310
      %4339 = vst [vmem:[%s240 + $0x90] sm:$0xff] %v4311
      %4340 = vst [vmem:[%s240 + $0x98] sm:$0xff] %v4312
      %4341 = vst [vmem:[%s240 + $0xa0] sm:$0xff] %v4313
      %4342 = vst [vmem:[%s240 + $0xa8] sm:$0xff] %v4314
      %4343 = vst [vmem:[%s240 + $0xb0] sm:$0xff] %v4315
      %4344 = vst [vmem:[%s240 + $0xb8] sm:$0xff] %v4316
      %4345 = vst [vmem:[%s240 + $0xc0] sm:$0xff] %v4317
      %4346 = vst [vmem:[%s240 + $0xc8] sm:$0xff] %v4318
      %4347 = vst [vmem:[%s240 + $0xd0] sm:$0xff] %v4319
      %4348 = vst [vmem:[%s240 + $0xd8] sm:$0xff] %v4320
      %s4349 = smul.u32 14, %s21
      %p4350 = scmp.lt.s32.totalorder %s19, 1
      %s4351 = scalar_select %p4350, %s19, 1
      %p4352 = scmp.lt.s32.totalorder %s4349, 13
      %s4353 = scalar_select %p4352, %s4349, 13
      %p4354 = scmp.lt.s32.totalorder %s20, 0
      %s4355 = scalar_select %p4354, %s20, 0
      %s4356 = smul.addr %s4353, 2
      %s4357 = sadd.s32 %s4355, %s4356
      %s4358 = smul.addr %s4351, 28
      %s4359 = sadd.s32 %s4357, %s4358
      %s4360 = smul.addr %s4359, 8
      %s4361 = scalar_lea.vmem %s3, %s4360
      // Predicated region
      $region33: #{conv_layer_forward.1} parent=31 // pred_check
        %p4362 = pneg %p133
      $region34: #{conv_layer_forward.1} parent=31 // pred_check_branch
        %4364 = sbr.rel (%p4362) target = $region36
      $region35: #{conv_layer_forward.1} parent=31 // pred_region
        %s4365 = smul.u32 14, %s21
      $region36: #{conv_layer_forward.1} parent=31 // pred_fallthru
        _
    $region32: #{conv_layer_forward.1} parent=5 // pred_fallthru
      _
    %p4366 = scmp.le.s32.totalorder 2, %s9
    // Predicated region
    $region37: #{conv_layer_forward.1} parent=5 // pred_check
      %p4367 = pneg %p4366
    $region38: #{conv_layer_forward.1} parent=5 // pred_check_branch
      %4369 = sbr.rel (%p4367) target = $region40
    $region39: #{conv_layer_forward.1} parent=5 // pred_region
      %s4370 = ssub.s32 %s9, 2
      // Predicated region
      $region41: #{conv_layer_forward.1} parent=39 // pred_check
        %p4371 = pneg %p139
      $region42: #{conv_layer_forward.1} parent=39 // pred_check_branch
        %4373 = sbr.rel (%p4371) target = $region44
      $region43: #{conv_layer_forward.1} parent=39 // pred_region
        %s4374 = smul.u32 14, %s24
        %p4375 = scmp.lt.s32.totalorder %s22, 1
        %s4376 = scalar_select %p4375, %s22, 1
        %p4377 = scmp.lt.s32.totalorder %s4374, 13
        %s4378 = scalar_select %p4377, %s4374, 13
        %p4379 = scmp.lt.s32.totalorder %s23, 0
        %s4380 = scalar_select %p4379, %s23, 0
        %s4381 = smul.addr %s4378, 2
        %s4382 = sadd.s32 %s4380, %s4381
        %s4383 = smul.addr %s4376, 28
        %s4384 = sadd.s32 %s4382, %s4383
        %s4385 = smul.addr %s4384, 8
        %s4386 = scalar_lea.vmem %s3, %s4385
      $region44: #{conv_layer_forward.1} parent=39 // pred_fallthru
        _
    $region40: #{conv_layer_forward.1} parent=5 // pred_fallthru
      _
  $region6: #{conv_layer_forward.1} parent=0 // loop_footer
    %s13 = sadd.s32 1, %s9
  $region7: #{conv_layer_forward.1} parent=0 // loop_footer_branch
    %8 = sbr.rel target = $region3
  $region8: #{conv_layer_forward.1} parent=0 // loop_exit
    _

</llo_original>
